<compile_context>
chip_gen: v5e
topology: v5e:2x2
jax: 0.10.0
libtpu: 0.0.40
codegen_flags: <defaults>
</compile_context>

<pallas_src>
import jax
import jax.numpy as jnp
from jax.experimental import pallas as pl
from jax.experimental.pallas import tpu as pltpu

# ----------------------------------------------------------------------------
# Architecture constants implied by the PyTorch module (fc1 expects 32*3*3, so the
# spatial input must be 12x12: two 2x2 pools -> 3x3).
# ----------------------------------------------------------------------------
H = W = 12
C_IN = 5
C1 = 16
C2 = 32
HP1, WP1 = H + 2, W + 2          # padded conv1 input grid: 14 x 14
H1, W1 = H // 2, W // 2          # after pool1: 6 x 6
HP2, WP2 = H1 + 2, W1 + 2        # padded conv2 input grid: 8 x 8
H2, W2 = H1 // 2, W1 // 2        # after pool2: 3 x 3
Q1 = (H - 1) * WP1 + W           # 166 "padded-flat" conv1 output rows
Q2 = (H1 - 1) * WP2 + W1         # 46  "padded-flat" conv2 output rows
FC_IN = C2 * H2 * W2             # 288
FC1, FC2, FC3 = 64, 32, 9


# ----------------------------------------------------------------------------
# The fused kernel (runs once per batch element via grid=(B,))
# ----------------------------------------------------------------------------
def _fused_forward_kernel(
    x_ref,                       # (1, H*W, C_IN)   rows = h*W + w, lanes = cin
    w1_ref, b1_ref,              # (9*C_IN, C1), (1, C1)   row = (dh*3+dw)*C_IN + cin
    w2_ref, b2_ref,              # (9*C1,  C2), (1, C2)
    wf1_ref, bf1_ref,            # (FC_IN, FC1), (1, FC1)  row order = (h, w, c)
    wf2_ref, bf2_ref,            # (FC1, FC2), (1, FC2)
    wf3_ref, bf3_ref,            # (FC2, FC3), (1, FC3)
    o_ref,                       # (1, 1, FC3)
    xp1_s,                       # (HP1*WP1, C_IN)  zero-padded conv1 input
    y1_s,                        # (Q1, C1)         conv1 output, rows = h*WP1 + w
    xp2_s,                       # (HP2*WP2, C1)    zero-padded conv2 input
    y2_s,                        # (Q2, C2)         conv2 output, rows = h*WP2 + w
):
    f32 = jnp.float32

    # Padding borders must read back as exact zeros.
    xp1_s[...] = jnp.zeros_like(xp1_s)
    xp2_s[...] = jnp.zeros_like(xp2_s)

    # ---- scatter the input into the padded-flat layout (in-kernel "pad") ----------
    for h in range(H):
        dst = (h + 1) * WP1 + 1
        xp1_s[dst:dst + W, :] = x_ref[0, h * W:(h + 1) * W, :]

    # ---- conv1: 3x3, stride 1, pad 1 == 9 shifted dots, + bias + ReLU -------------
    acc = jnp.zeros((Q1, C1), f32)
    for kidx in range(9):
        dh, dw = divmod(kidx, 3)
        off = dh * WP1 + dw
        acc = acc + jnp.dot(
            xp1_s[off:off + Q1, :],
            w1_ref[kidx * C_IN:(kidx + 1) * C_IN, :],
            preferred_element_type=f32,
        )
    y1_s[...] = jnp.maximum(acc + b1_ref[...], 0.0)

    # ---- maxpool 2x2 / stride 2  -> padded-flat conv2 input ------------------------
    for ph in range(H1):
        r0 = (2 * ph) * WP1
        r1 = (2 * ph + 1) * WP1
        m = jnp.maximum(y1_s[r0:r0 + W, :], y1_s[r1:r1 + W, :])   # (W, C1)
        for pw in range(W1):
            p = jnp.maximum(m[2 * pw:2 * pw + 1, :], m[2 * pw + 1:2 * pw + 2, :])
            dst = (ph + 1) * WP2 + (pw + 1)
            xp2_s[dst:dst + 1, :] = p

    # ---- conv2 ---------------------------------------------------------------------
    acc2 = jnp.zeros((Q2, C2), f32)
    for kidx in range(9):
        dh, dw = divmod(kidx, 3)
        off = dh * WP2 + dw
        acc2 = acc2 + jnp.dot(
            xp2_s[off:off + Q2, :],
            w2_ref[kidx * C1:(kidx + 1) * C1, :],
            preferred_element_type=f32,
        )
    y2_s[...] = jnp.maximum(acc2 + b2_ref[...], 0.0)

    # ---- maxpool 2x2 / stride 2 fused straight into fc1 ---------------------------
    # h1 = relu(bias + sum_r pooled_row_r @ Wf1[r*C2:(r+1)*C2, :]); the flattened
    # (h, w, c) FC input never materialises in memory.
    h1 = bf1_ref[...]                                             # (1, FC1)
    for ph in range(H2):
        r0 = (2 * ph) * WP2
        r1 = (2 * ph + 1) * WP2
        m = jnp.maximum(y2_s[r0:r0 + W1, :], y2_s[r1:r1 + W1, :])  # (W1, C2)
        for pw in range(W2):
            p = jnp.maximum(m[2 * pw:2 * pw + 1, :], m[2 * pw + 1:2 * pw + 2, :])
            r = ph * W2 + pw
            h1 = h1 + jnp.dot(
                p, wf1_ref[r * C2:(r + 1) * C2, :], preferred_element_type=f32)
    h1 = jnp.maximum(h1, 0.0)

    # ---- fc2 -> fc3 (activations never leave vregs) --------------------------------
    h2 = jnp.maximum(
        jnp.dot(h1, wf2_ref[...], preferred_element_type=f32) + bf2_ref[...], 0.0)
    o_ref[0] = jnp.dot(h2, wf3_ref[...], preferred_element_type=f32) + bf3_ref[...]


def _resident_spec(shape):
    """Whole-array block whose index does not change across the batch grid."""
    zero_index = (0,) * len(shape)
    return pl.BlockSpec(shape, lambda b, _z=zero_index: _z)


@jax.jit
def cnn_model_overfit_forward(kparams, x_nchw):
    """x_nchw: (B, 5, 12, 12) -> (B, 9). Matches CNN_Model_Overfit.forward (in f32)."""
    B = x_nchw.shape[0]
    if x_nchw.shape[1:] != (C_IN, H, W):
        raise ValueError(f"expected (B, {C_IN}, {H}, {W}), got {x_nchw.shape}")

    # Single tiny layout op in XLA (NCHW -> (B, H*W, Cin)); all compute is one kernel.
    x = jnp.transpose(x_nchw, (0, 2, 3, 1)).astype(jnp.float32).reshape(B, H * W, C_IN)

    out = pl.pallas_call(
        _fused_forward_kernel,
        out_shape=jax.ShapeDtypeStruct((B, 1, FC3), jnp.float32),
        grid=(B,),
        in_specs=[
            pl.BlockSpec((1, H * W, C_IN), lambda b: (b, 0, 0)),
            _resident_spec((9 * C_IN, C1)),
            _resident_spec((1, C1)),
            _resident_spec((9 * C1, C2)),
            _resident_spec((1, C2)),
            _resident_spec((FC_IN, FC1)),
            _resident_spec((1, FC1)),
            _resident_spec((FC1, FC2)),
            _resident_spec((1, FC2)),
            _resident_spec((FC2, FC3)),
            _resident_spec((1, FC3)),
        ],
        out_specs=pl.BlockSpec((1, 1, FC3), lambda b: (b, 0, 0)),
        scratch_shapes=[
            pltpu.VMEM((HP1 * WP1, C_IN), jnp.float32),
            pltpu.VMEM((Q1, C1), jnp.float32),
            pltpu.VMEM((HP2 * WP2, C1), jnp.float32),
            pltpu.VMEM((Q2, C2), jnp.float32),
        ],
        compiler_params=pltpu.CompilerParams(dimension_semantics=("parallel",)),
    )(
        x,
        kparams["conv1_w"], kparams["conv1_b"],
        kparams["conv2_w"], kparams["conv2_b"],
        kparams["fc1_w"], kparams["fc1_b"],
        kparams["fc2_w"], kparams["fc2_b"],
        kparams["fc3_w"], kparams["fc3_b"],
    )
    return out.reshape(B, FC3)


# ----------------------------------------------------------------------------
# Parameters: PyTorch layouts at init, converted ONCE to kernel layouts.
# ----------------------------------------------------------------------------
def init_params(key):
    """Parameters in PyTorch layouts (as CNN_Model_Overfit stores them)."""
    ks = jax.random.split(key, 10)
    s = 0.1
    return {
        "conv1_w": s * jax.random.normal(ks[0], (C1, C_IN, 3, 3), jnp.float32),  # OIHW
        "conv1_b": s * jax.random.normal(ks[1], (C1,), jnp.float32),
        "conv2_w": s * jax.random.normal(ks[2], (C2, C1, 3, 3), jnp.float32),
        "conv2_b": s * jax.random.normal(ks[3], (C2,), jnp.float32),
        "fc1_w": s * jax.random.normal(ks[4], (FC1, FC_IN), jnp.float32),         # (out, in)
        "fc1_b": s * jax.random.normal(ks[5], (FC1,), jnp.float32),
        "fc2_w": s * jax.random.normal(ks[6], (FC2, FC1), jnp.float32),
        "fc2_b": s * jax.random.normal(ks[7], (FC2,), jnp.float32),
        "fc3_w": s * jax.random.normal(ks[8], (FC3, FC2), jnp.float32),
        "fc3_b": s * jax.random.normal(ks[9], (FC3,), jnp.float32),
    }


def prepare_params(p):
    """One-time conversion PyTorch layout -> kernel layout (no per-call transposes)."""
    def conv_w(w):  # (Cout, Cin, 3, 3) -> (9*Cin, Cout), row = (dh*3+dw)*Cin + cin
        co, ci, kh, kw = w.shape
        return jnp.transpose(w, (2, 3, 1, 0)).reshape(kh * kw * ci, co)

    # PyTorch fc1 input feature order is (c, h, w); the kernel traverses (h, w, c).
    fc1 = p["fc1_w"].reshape(FC1, C2, H2, W2)                       # (out, c, h, w)
    fc1 = jnp.transpose(fc1, (2, 3, 1, 0)).reshape(FC_IN, FC1)      # row = (h*W2+w)*C2+c
    return {
        "conv1_w": conv_w(p["conv1_w"]),
        "conv1_b": p["conv1_b"].reshape(1, C1),
        "conv2_w": conv_w(p["conv2_w"]),
        "conv2_b": p["conv2_b"].reshape(1, C2),
        "fc1_w": fc1,
        "fc1_b": p["fc1_b"].reshape(1, FC1),
        "fc2_w": jnp.transpose(p["fc2_w"]),
        "fc2_b": p["fc2_b"].reshape(1, FC2),
        "fc3_w": jnp.transpose(p["fc3_w"]),
        "fc3_b": p["fc3_b"].reshape(1, FC3),
    }


# ----------------------------------------------------------------------------
# Pure-JAX reference (mirrors the PyTorch forward, float32)
# ----------------------------------------------------------------------------
def _reference_forward(params, x_nchw):
    hi = jax.lax.Precision.HIGHEST
    y = x_nchw.astype(jnp.float32)
    y = jax.lax.conv_general_dilated(
        y, params["conv1_w"], window_strides=(1, 1), padding=((1, 1), (1, 1)),
        dimension_numbers=("NCHW", "OIHW", "NCHW"), precision=hi)
    y = jax.nn.relu(y + params["conv1_b"][None, :, None, None])
    y = jax.lax.reduce_window(y, -jnp.inf, jax.lax.max, (1, 1, 2, 2), (1, 1, 2, 2), "VALID")
    y = jax.lax.conv_general_dilated(
        y, params["conv2_w"], window_strides=(1, 1), padding=((1, 1), (1, 1)),
        dimension_numbers=("NCHW", "OIHW", "NCHW"), precision=hi)
    y = jax.nn.relu(y + params["conv2_b"][None, :, None, None])
    y = jax.lax.reduce_window(y, -jnp.inf, jax.lax.max, (1, 1, 2, 2), (1, 1, 2, 2), "VALID")
    y = y.reshape(y.shape[0], -1)                                   # NCHW flatten order
    y = jax.nn.relu(jnp.dot(y, params["fc1_w"].T, precision=hi) + params["fc1_b"])
    y = jax.nn.relu(jnp.dot(y, params["fc2_w"].T, precision=hi) + params["fc2_b"])
    return jnp.dot(y, params["fc3_w"].T, precision=hi) + params["fc3_b"]


if __name__ == "__main__":
    key = jax.random.PRNGKey(0)
    pkey, xkey = jax.random.split(key)

    params = init_params(pkey)
    kparams = prepare_params(params)   # one-time layout conversion (outside jit)

    x = jax.random.normal(xkey, (2, C_IN, H, W), jnp.float32)  # (B=2, 5, 12, 12)

    out = cnn_model_overfit_forward(kparams, x)
    out = jax.block_until_ready(out)
    assert out.shape == (2, FC3), out.shape

    ref = _reference_forward(params, x)
    if not bool(jnp.allclose(out, ref, rtol=2e-2, atol=2e-2)):
        max_err = float(jnp.max(jnp.abs(out - ref)))
        raise AssertionError(f"kernel/reference mismatch, max abs err = {max_err}")

    print("KERNEL_OK")
</pallas_src>

<mosaic_0001>
module attributes {stable_mosaic.version = 11 : i64} {
  func.func @_fused_forward_kernel(%arg0: i32, %arg1: memref<1x144x5xf32, #tpu.memory_space<vmem>>, %arg2: memref<45x16xf32, #tpu.memory_space<vmem>>, %arg3: memref<1x16xf32, #tpu.memory_space<vmem>>, %arg4: memref<144x32xf32, #tpu.memory_space<vmem>>, %arg5: memref<1x32xf32, #tpu.memory_space<vmem>>, %arg6: memref<288x64xf32, #tpu.memory_space<vmem>>, %arg7: memref<1x64xf32, #tpu.memory_space<vmem>>, %arg8: memref<64x32xf32, #tpu.memory_space<vmem>>, %arg9: memref<1x32xf32, #tpu.memory_space<vmem>>, %arg10: memref<32x9xf32, #tpu.memory_space<vmem>>, %arg11: memref<1x9xf32, #tpu.memory_space<vmem>>, %arg12: memref<1x1x9xf32, #tpu.memory_space<vmem>>, %arg13: memref<196x5xf32, #tpu.memory_space<vmem>>, %arg14: memref<166x16xf32, #tpu.memory_space<vmem>>, %arg15: memref<64x16xf32, #tpu.memory_space<vmem>>, %arg16: memref<46x32xf32, #tpu.memory_space<vmem>>) attributes {dimension_semantics = [#tpu.dimension_semantics<parallel>], iteration_bounds = array<i64: 2>, scalar_prefetch = 0 : i64, scratch_operands = 4 : i64, tpu.core_type = #tpu.core_type<tc>, window_params = [{transform_indices = @transform_0, window_bounds = array<i64: 1, 144, 5>}, {pipeline_mode = #tpu.pipeline_mode<synchronous>, transform_indices = @transform_1, window_bounds = array<i64: 45, 16>}, {pipeline_mode = #tpu.pipeline_mode<synchronous>, transform_indices = @transform_2, window_bounds = array<i64: 1, 16>}, {pipeline_mode = #tpu.pipeline_mode<synchronous>, transform_indices = @transform_3, window_bounds = array<i64: 144, 32>}, {pipeline_mode = #tpu.pipeline_mode<synchronous>, transform_indices = @transform_4, window_bounds = array<i64: 1, 32>}, {pipeline_mode = #tpu.pipeline_mode<synchronous>, transform_indices = @transform_5, window_bounds = array<i64: 288, 64>}, {pipeline_mode = #tpu.pipeline_mode<synchronous>, transform_indices = @transform_6, window_bounds = array<i64: 1, 64>}, {pipeline_mode = #tpu.pipeline_mode<synchronous>, transform_indices = @transform_7, window_bounds = array<i64: 64, 32>}, {pipeline_mode = #tpu.pipeline_mode<synchronous>, transform_indices = @transform_8, window_bounds = array<i64: 1, 32>}, {pipeline_mode = #tpu.pipeline_mode<synchronous>, transform_indices = @transform_9, window_bounds = array<i64: 32, 9>}, {pipeline_mode = #tpu.pipeline_mode<synchronous>, transform_indices = @transform_10, window_bounds = array<i64: 1, 9>}, {transform_indices = @transform_11, window_bounds = array<i64: 1, 1, 9>}]} {
    %cst = arith.constant 0.000000e+00 : f32
    %0 = vector.broadcast %cst : f32 to vector<196x5xf32>
    %c0 = arith.constant 0 : index
    %c0_0 = arith.constant 0 : index
    %1 = vector.load %arg13[%c0, %c0_0] : memref<196x5xf32, #tpu.memory_space<vmem>>, vector<196x5xf32>
    tpu.vector_store %arg13[%c0, %c0_0], %0 {strides = array<i32>} : memref<196x5xf32, #tpu.memory_space<vmem>>, vector<196x5xf32>,
    %cst_1 = arith.constant 0.000000e+00 : f32
    %2 = vector.broadcast %cst_1 : f32 to vector<64x16xf32>
    %c0_2 = arith.constant 0 : index
    %c0_3 = arith.constant 0 : index
    %3 = vector.load %arg15[%c0_2, %c0_3] : memref<64x16xf32, #tpu.memory_space<vmem>>, vector<64x16xf32>
    tpu.vector_store %arg15[%c0_2, %c0_3], %2 {strides = array<i32>} : memref<64x16xf32, #tpu.memory_space<vmem>>, vector<64x16xf32>,
    %c0_4 = arith.constant 0 : index
    %c0_5 = arith.constant 0 : index
    %c0_6 = arith.constant 0 : index
    %4 = vector.load %arg1[%c0_4, %c0_5, %c0_6] : memref<1x144x5xf32, #tpu.memory_space<vmem>>, vector<1x12x5xf32>
    %5 = vector.shape_cast %4 : vector<1x12x5xf32> to vector<12x5xf32>
    %c15 = arith.constant 15 : index
    %c0_7 = arith.constant 0 : index
    %6 = vector.load %arg13[%c15, %c0_7] : memref<196x5xf32, #tpu.memory_space<vmem>>, vector<12x5xf32>
    tpu.vector_store %arg13[%c15, %c0_7], %5 {strides = array<i32>} : memref<196x5xf32, #tpu.memory_space<vmem>>, vector<12x5xf32>,
    %c0_8 = arith.constant 0 : index
    %c12 = arith.constant 12 : index
    %c0_9 = arith.constant 0 : index
    %7 = vector.load %arg1[%c0_8, %c12, %c0_9] : memref<1x144x5xf32, #tpu.memory_space<vmem>>, vector<1x12x5xf32>
    %8 = vector.shape_cast %7 : vector<1x12x5xf32> to vector<12x5xf32>
    %c29 = arith.constant 29 : index
    %c0_10 = arith.constant 0 : index
    %9 = vector.load %arg13[%c29, %c0_10] : memref<196x5xf32, #tpu.memory_space<vmem>>, vector<12x5xf32>
    tpu.vector_store %arg13[%c29, %c0_10], %8 {strides = array<i32>} : memref<196x5xf32, #tpu.memory_space<vmem>>, vector<12x5xf32>,
    %c0_11 = arith.constant 0 : index
    %c24 = arith.constant 24 : index
    %c0_12 = arith.constant 0 : index
    %10 = vector.load %arg1[%c0_11, %c24, %c0_12] : memref<1x144x5xf32, #tpu.memory_space<vmem>>, vector<1x12x5xf32>
    %11 = vector.shape_cast %10 : vector<1x12x5xf32> to vector<12x5xf32>
    %c43 = arith.constant 43 : index
    %c0_13 = arith.constant 0 : index
    %12 = vector.load %arg13[%c43, %c0_13] : memref<196x5xf32, #tpu.memory_space<vmem>>, vector<12x5xf32>
    tpu.vector_store %arg13[%c43, %c0_13], %11 {strides = array<i32>} : memref<196x5xf32, #tpu.memory_space<vmem>>, vector<12x5xf32>,
    %c0_14 = arith.constant 0 : index
    %c36 = arith.constant 36 : index
    %c0_15 = arith.constant 0 : index
    %13 = vector.load %arg1[%c0_14, %c36, %c0_15] : memref<1x144x5xf32, #tpu.memory_space<vmem>>, vector<1x12x5xf32>
    %14 = vector.shape_cast %13 : vector<1x12x5xf32> to vector<12x5xf32>
    %c57 = arith.constant 57 : index
    %c0_16 = arith.constant 0 : index
    %15 = vector.load %arg13[%c57, %c0_16] : memref<196x5xf32, #tpu.memory_space<vmem>>, vector<12x5xf32>
    tpu.vector_store %arg13[%c57, %c0_16], %14 {strides = array<i32>} : memref<196x5xf32, #tpu.memory_space<vmem>>, vector<12x5xf32>,
    %c0_17 = arith.constant 0 : index
    %c48 = arith.constant 48 : index
    %c0_18 = arith.constant 0 : index
    %16 = vector.load %arg1[%c0_17, %c48, %c0_18] : memref<1x144x5xf32, #tpu.memory_space<vmem>>, vector<1x12x5xf32>
    %17 = vector.shape_cast %16 : vector<1x12x5xf32> to vector<12x5xf32>
    %c71 = arith.constant 71 : index
    %c0_19 = arith.constant 0 : index
    %18 = vector.load %arg13[%c71, %c0_19] : memref<196x5xf32, #tpu.memory_space<vmem>>, vector<12x5xf32>
    tpu.vector_store %arg13[%c71, %c0_19], %17 {strides = array<i32>} : memref<196x5xf32, #tpu.memory_space<vmem>>, vector<12x5xf32>,
    %c0_20 = arith.constant 0 : index
    %c60 = arith.constant 60 : index
    %c0_21 = arith.constant 0 : index
    %19 = vector.load %arg1[%c0_20, %c60, %c0_21] : memref<1x144x5xf32, #tpu.memory_space<vmem>>, vector<1x12x5xf32>
    %20 = vector.shape_cast %19 : vector<1x12x5xf32> to vector<12x5xf32>
    %c85 = arith.constant 85 : index
    %c0_22 = arith.constant 0 : index
    %21 = vector.load %arg13[%c85, %c0_22] : memref<196x5xf32, #tpu.memory_space<vmem>>, vector<12x5xf32>
    tpu.vector_store %arg13[%c85, %c0_22], %20 {strides = array<i32>} : memref<196x5xf32, #tpu.memory_space<vmem>>, vector<12x5xf32>,
    %c0_23 = arith.constant 0 : index
    %c72 = arith.constant 72 : index
    %c0_24 = arith.constant 0 : index
    %22 = vector.load %arg1[%c0_23, %c72, %c0_24] : memref<1x144x5xf32, #tpu.memory_space<vmem>>, vector<1x12x5xf32>
    %23 = vector.shape_cast %22 : vector<1x12x5xf32> to vector<12x5xf32>
    %c99 = arith.constant 99 : index
    %c0_25 = arith.constant 0 : index
    %24 = vector.load %arg13[%c99, %c0_25] : memref<196x5xf32, #tpu.memory_space<vmem>>, vector<12x5xf32>
    tpu.vector_store %arg13[%c99, %c0_25], %23 {strides = array<i32>} : memref<196x5xf32, #tpu.memory_space<vmem>>, vector<12x5xf32>,
    %c0_26 = arith.constant 0 : index
    %c84 = arith.constant 84 : index
    %c0_27 = arith.constant 0 : index
    %25 = vector.load %arg1[%c0_26, %c84, %c0_27] : memref<1x144x5xf32, #tpu.memory_space<vmem>>, vector<1x12x5xf32>
    %26 = vector.shape_cast %25 : vector<1x12x5xf32> to vector<12x5xf32>
    %c113 = arith.constant 113 : index
    %c0_28 = arith.constant 0 : index
    %27 = vector.load %arg13[%c113, %c0_28] : memref<196x5xf32, #tpu.memory_space<vmem>>, vector<12x5xf32>
    tpu.vector_store %arg13[%c113, %c0_28], %26 {strides = array<i32>} : memref<196x5xf32, #tpu.memory_space<vmem>>, vector<12x5xf32>,
    %c0_29 = arith.constant 0 : index
    %c96 = arith.constant 96 : index
    %c0_30 = arith.constant 0 : index
    %28 = vector.load %arg1[%c0_29, %c96, %c0_30] : memref<1x144x5xf32, #tpu.memory_space<vmem>>, vector<1x12x5xf32>
    %29 = vector.shape_cast %28 : vector<1x12x5xf32> to vector<12x5xf32>
    %c127 = arith.constant 127 : index
    %c0_31 = arith.constant 0 : index
    %30 = vector.load %arg13[%c127, %c0_31] : memref<196x5xf32, #tpu.memory_space<vmem>>, vector<12x5xf32>
    tpu.vector_store %arg13[%c127, %c0_31], %29 {strides = array<i32>} : memref<196x5xf32, #tpu.memory_space<vmem>>, vector<12x5xf32>,
    %c0_32 = arith.constant 0 : index
    %c108 = arith.constant 108 : index
    %c0_33 = arith.constant 0 : index
    %31 = vector.load %arg1[%c0_32, %c108, %c0_33] : memref<1x144x5xf32, #tpu.memory_space<vmem>>, vector<1x12x5xf32>
    %32 = vector.shape_cast %31 : vector<1x12x5xf32> to vector<12x5xf32>
    %c141 = arith.constant 141 : index
    %c0_34 = arith.constant 0 : index
    %33 = vector.load %arg13[%c141, %c0_34] : memref<196x5xf32, #tpu.memory_space<vmem>>, vector<12x5xf32>
    tpu.vector_store %arg13[%c141, %c0_34], %32 {strides = array<i32>} : memref<196x5xf32, #tpu.memory_space<vmem>>, vector<12x5xf32>,
    %c0_35 = arith.constant 0 : index
    %c120 = arith.constant 120 : index
    %c0_36 = arith.constant 0 : index
    %34 = vector.load %arg1[%c0_35, %c120, %c0_36] : memref<1x144x5xf32, #tpu.memory_space<vmem>>, vector<1x12x5xf32>
    %35 = vector.shape_cast %34 : vector<1x12x5xf32> to vector<12x5xf32>
    %c155 = arith.constant 155 : index
    %c0_37 = arith.constant 0 : index
    %36 = vector.load %arg13[%c155, %c0_37] : memref<196x5xf32, #tpu.memory_space<vmem>>, vector<12x5xf32>
    tpu.vector_store %arg13[%c155, %c0_37], %35 {strides = array<i32>} : memref<196x5xf32, #tpu.memory_space<vmem>>, vector<12x5xf32>,
    %c0_38 = arith.constant 0 : index
    %c132 = arith.constant 132 : index
    %c0_39 = arith.constant 0 : index
    %37 = vector.load %arg1[%c0_38, %c132, %c0_39] : memref<1x144x5xf32, #tpu.memory_space<vmem>>, vector<1x12x5xf32>
    %38 = vector.shape_cast %37 : vector<1x12x5xf32> to vector<12x5xf32>
    %c169 = arith.constant 169 : index
    %c0_40 = arith.constant 0 : index
    %39 = vector.load %arg13[%c169, %c0_40] : memref<196x5xf32, #tpu.memory_space<vmem>>, vector<12x5xf32>
    tpu.vector_store %arg13[%c169, %c0_40], %38 {strides = array<i32>} : memref<196x5xf32, #tpu.memory_space<vmem>>, vector<12x5xf32>,
    %cst_41 = arith.constant 0.000000e+00 : f32
    %40 = vector.broadcast %cst_41 : f32 to vector<166x16xf32>
    %c0_42 = arith.constant 0 : index
    %c0_43 = arith.constant 0 : index
    %41 = vector.load %arg13[%c0_42, %c0_43] : memref<196x5xf32, #tpu.memory_space<vmem>>, vector<166x5xf32>
    %c0_44 = arith.constant 0 : index
    %c0_45 = arith.constant 0 : index
    %42 = vector.load %arg2[%c0_44, %c0_45] : memref<45x16xf32, #tpu.memory_space<vmem>>, vector<5x16xf32>
    %cst_46 = arith.constant dense<0.000000e+00> : vector<166x16xf32>
    %43 = tpu.matmul %41, %42, %cst_46 {dimension_numbers = #tpu.dot_dimension_numbers<[1], [0], [0], [1], [0, 0, 1, 1], [], []>} : vector<166x5xf32>, vector<5x16xf32>, vector<166x16xf32> -> vector<166x16xf32>
    %44 = arith.addf %40, %43 : vector<166x16xf32>
    %c1 = arith.constant 1 : index
    %c0_47 = arith.constant 0 : index
    %45 = vector.load %arg13[%c1, %c0_47] : memref<196x5xf32, #tpu.memory_space<vmem>>, vector<166x5xf32>
    %c5 = arith.constant 5 : index
    %c0_48 = arith.constant 0 : index
    %46 = vector.load %arg2[%c5, %c0_48] : memref<45x16xf32, #tpu.memory_space<vmem>>, vector<5x16xf32>
    %cst_49 = arith.constant dense<0.000000e+00> : vector<166x16xf32>
    %47 = tpu.matmul %45, %46, %cst_49 {dimension_numbers = #tpu.dot_dimension_numbers<[1], [0], [0], [1], [0, 0, 1, 1], [], []>} : vector<166x5xf32>, vector<5x16xf32>, vector<166x16xf32> -> vector<166x16xf32>
    %48 = arith.addf %44, %47 : vector<166x16xf32>
    %c2 = arith.constant 2 : index
    %c0_50 = arith.constant 0 : index
    %49 = vector.load %arg13[%c2, %c0_50] : memref<196x5xf32, #tpu.memory_space<vmem>>, vector<166x5xf32>
    %c10 = arith.constant 10 : index
    %c0_51 = arith.constant 0 : index
    %50 = vector.load %arg2[%c10, %c0_51] : memref<45x16xf32, #tpu.memory_space<vmem>>, vector<5x16xf32>
    %cst_52 = arith.constant dense<0.000000e+00> : vector<166x16xf32>
    %51 = tpu.matmul %49, %50, %cst_52 {dimension_numbers = #tpu.dot_dimension_numbers<[1], [0], [0], [1], [0, 0, 1, 1], [], []>} : vector<166x5xf32>, vector<5x16xf32>, vector<166x16xf32> -> vector<166x16xf32>
    %52 = arith.addf %48, %51 : vector<166x16xf32>
    %c14 = arith.constant 14 : index
    %c0_53 = arith.constant 0 : index
    %53 = vector.load %arg13[%c14, %c0_53] : memref<196x5xf32, #tpu.memory_space<vmem>>, vector<166x5xf32>
    %c15_54 = arith.constant 15 : index
    %c0_55 = arith.constant 0 : index
    %54 = vector.load %arg2[%c15_54, %c0_55] : memref<45x16xf32, #tpu.memory_space<vmem>>, vector<5x16xf32>
    %cst_56 = arith.constant dense<0.000000e+00> : vector<166x16xf32>
    %55 = tpu.matmul %53, %54, %cst_56 {dimension_numbers = #tpu.dot_dimension_numbers<[1], [0], [0], [1], [0, 0, 1, 1], [], []>} : vector<166x5xf32>, vector<5x16xf32>, vector<166x16xf32> -> vector<166x16xf32>
    %56 = arith.addf %52, %55 : vector<166x16xf32>
    %c15_57 = arith.constant 15 : index
    %c0_58 = arith.constant 0 : index
    %57 = vector.load %arg13[%c15_57, %c0_58] : memref<196x5xf32, #tpu.memory_space<vmem>>, vector<166x5xf32>
    %c20 = arith.constant 20 : index
    %c0_59 = arith.constant 0 : index
    %58 = vector.load %arg2[%c20, %c0_59] : memref<45x16xf32, #tpu.memory_space<vmem>>, vector<5x16xf32>
    %cst_60 = arith.constant dense<0.000000e+00> : vector<166x16xf32>
    %59 = tpu.matmul %57, %58, %cst_60 {dimension_numbers = #tpu.dot_dimension_numbers<[1], [0], [0], [1], [0, 0, 1, 1], [], []>} : vector<166x5xf32>, vector<5x16xf32>, vector<166x16xf32> -> vector<166x16xf32>
    %60 = arith.addf %56, %59 : vector<166x16xf32>
    %c16 = arith.constant 16 : index
    %c0_61 = arith.constant 0 : index
    %61 = vector.load %arg13[%c16, %c0_61] : memref<196x5xf32, #tpu.memory_space<vmem>>, vector<166x5xf32>
    %c25 = arith.constant 25 : index
    %c0_62 = arith.constant 0 : index
    %62 = vector.load %arg2[%c25, %c0_62] : memref<45x16xf32, #tpu.memory_space<vmem>>, vector<5x16xf32>
    %cst_63 = arith.constant dense<0.000000e+00> : vector<166x16xf32>
    %63 = tpu.matmul %61, %62, %cst_63 {dimension_numbers = #tpu.dot_dimension_numbers<[1], [0], [0], [1], [0, 0, 1, 1], [], []>} : vector<166x5xf32>, vector<5x16xf32>, vector<166x16xf32> -> vector<166x16xf32>
    %64 = arith.addf %60, %63 : vector<166x16xf32>
    %c28 = arith.constant 28 : index
    %c0_64 = arith.constant 0 : index
    %65 = vector.load %arg13[%c28, %c0_64] : memref<196x5xf32, #tpu.memory_space<vmem>>, vector<166x5xf32>
    %c30 = arith.constant 30 : index
    %c0_65 = arith.constant 0 : index
    %66 = vector.load %arg2[%c30, %c0_65] : memref<45x16xf32, #tpu.memory_space<vmem>>, vector<5x16xf32>
    %cst_66 = arith.constant dense<0.000000e+00> : vector<166x16xf32>
    %67 = tpu.matmul %65, %66, %cst_66 {dimension_numbers = #tpu.dot_dimension_numbers<[1], [0], [0], [1], [0, 0, 1, 1], [], []>} : vector<166x5xf32>, vector<5x16xf32>, vector<166x16xf32> -> vector<166x16xf32>
    %68 = arith.addf %64, %67 : vector<166x16xf32>
    %c29_67 = arith.constant 29 : index
    %c0_68 = arith.constant 0 : index
    %69 = vector.load %arg13[%c29_67, %c0_68] : memref<196x5xf32, #tpu.memory_space<vmem>>, vector<166x5xf32>
    %c35 = arith.constant 35 : index
    %c0_69 = arith.constant 0 : index
    %70 = vector.load %arg2[%c35, %c0_69] : memref<45x16xf32, #tpu.memory_space<vmem>>, vector<5x16xf32>
    %cst_70 = arith.constant dense<0.000000e+00> : vector<166x16xf32>
    %71 = tpu.matmul %69, %70, %cst_70 {dimension_numbers = #tpu.dot_dimension_numbers<[1], [0], [0], [1], [0, 0, 1, 1], [], []>} : vector<166x5xf32>, vector<5x16xf32>, vector<166x16xf32> -> vector<166x16xf32>
    %72 = arith.addf %68, %71 : vector<166x16xf32>
    %c30_71 = arith.constant 30 : index
    %c0_72 = arith.constant 0 : index
    %73 = vector.load %arg13[%c30_71, %c0_72] : memref<196x5xf32, #tpu.memory_space<vmem>>, vector<166x5xf32>
    %c40 = arith.constant 40 : index
    %c0_73 = arith.constant 0 : index
    %74 = vector.load %arg2[%c40, %c0_73] : memref<45x16xf32, #tpu.memory_space<vmem>>, vector<5x16xf32>
    %cst_74 = arith.constant dense<0.000000e+00> : vector<166x16xf32>
    %75 = tpu.matmul %73, %74, %cst_74 {dimension_numbers = #tpu.dot_dimension_numbers<[1], [0], [0], [1], [0, 0, 1, 1], [], []>} : vector<166x5xf32>, vector<5x16xf32>, vector<166x16xf32> -> vector<166x16xf32>
    %76 = arith.addf %72, %75 : vector<166x16xf32>
    %c0_75 = arith.constant 0 : index
    %c0_76 = arith.constant 0 : index
    %77 = vector.load %arg3[%c0_75, %c0_76] : memref<1x16xf32, #tpu.memory_space<vmem>>, vector<1x16xf32>
    %78 = vector.broadcast %77 : vector<1x16xf32> to vector<166x16xf32>
    %79 = arith.addf %76, %78 : vector<166x16xf32>
    %cst_77 = arith.constant 0.000000e+00 : f32
    %80 = vector.broadcast %cst_77 : f32 to vector<166x16xf32>
    %81 = arith.maximumf %79, %80 : vector<166x16xf32>
    %c0_78 = arith.constant 0 : index
    %c0_79 = arith.constant 0 : index
    %82 = vector.load %arg14[%c0_78, %c0_79] : memref<166x16xf32, #tpu.memory_space<vmem>>, vector<166x16xf32>
    tpu.vector_store %arg14[%c0_78, %c0_79], %81 {strides = array<i32>} : memref<166x16xf32, #tpu.memory_space<vmem>>, vector<166x16xf32>,
    %c0_80 = arith.constant 0 : index
    %c0_81 = arith.constant 0 : index
    %83 = vector.load %arg14[%c0_80, %c0_81] : memref<166x16xf32, #tpu.memory_space<vmem>>, vector<12x16xf32>
    %c14_82 = arith.constant 14 : index
    %c0_83 = arith.constant 0 : index
    %84 = vector.load %arg14[%c14_82, %c0_83] : memref<166x16xf32, #tpu.memory_space<vmem>>, vector<12x16xf32>
    %85 = arith.maximumf %83, %84 : vector<12x16xf32>
    %86 = vector.extract_strided_slice %85 {offsets = [0, 0], sizes = [1, 16], strides = [1, 1]} : vector<12x16xf32> to vector<1x16xf32>
    %87 = vector.extract_strided_slice %85 {offsets = [1, 0], sizes = [1, 16], strides = [1, 1]} : vector<12x16xf32> to vector<1x16xf32>
    %88 = arith.maximumf %86, %87 : vector<1x16xf32>
    %c9 = arith.constant 9 : index
    %c0_84 = arith.constant 0 : index
    %89 = vector.load %arg15[%c9, %c0_84] : memref<64x16xf32, #tpu.memory_space<vmem>>, vector<1x16xf32>
    tpu.vector_store %arg15[%c9, %c0_84], %88 {strides = array<i32>} : memref<64x16xf32, #tpu.memory_space<vmem>>, vector<1x16xf32>,
    %90 = vector.extract_strided_slice %85 {offsets = [2, 0], sizes = [1, 16], strides = [1, 1]} : vector<12x16xf32> to vector<1x16xf32>
    %91 = vector.extract_strided_slice %85 {offsets = [3, 0], sizes = [1, 16], strides = [1, 1]} : vector<12x16xf32> to vector<1x16xf32>
    %92 = arith.maximumf %90, %91 : vector<1x16xf32>
    %c10_85 = arith.constant 10 : index
    %c0_86 = arith.constant 0 : index
    %93 = vector.load %arg15[%c10_85, %c0_86] : memref<64x16xf32, #tpu.memory_space<vmem>>, vector<1x16xf32>
    tpu.vector_store %arg15[%c10_85, %c0_86], %92 {strides = array<i32>} : memref<64x16xf32, #tpu.memory_space<vmem>>, vector<1x16xf32>,
    %94 = vector.extract_strided_slice %85 {offsets = [4, 0], sizes = [1, 16], strides = [1, 1]} : vector<12x16xf32> to vector<1x16xf32>
    %95 = vector.extract_strided_slice %85 {offsets = [5, 0], sizes = [1, 16], strides = [1, 1]} : vector<12x16xf32> to vector<1x16xf32>
    %96 = arith.maximumf %94, %95 : vector<1x16xf32>
    %c11 = arith.constant 11 : index
    %c0_87 = arith.constant 0 : index
    %97 = vector.load %arg15[%c11, %c0_87] : memref<64x16xf32, #tpu.memory_space<vmem>>, vector<1x16xf32>
    tpu.vector_store %arg15[%c11, %c0_87], %96 {strides = array<i32>} : memref<64x16xf32, #tpu.memory_space<vmem>>, vector<1x16xf32>,
    %98 = vector.extract_strided_slice %85 {offsets = [6, 0], sizes = [1, 16], strides = [1, 1]} : vector<12x16xf32> to vector<1x16xf32>
    %99 = vector.extract_strided_slice %85 {offsets = [7, 0], sizes = [1, 16], strides = [1, 1]} : vector<12x16xf32> to vector<1x16xf32>
    %100 = arith.maximumf %98, %99 : vector<1x16xf32>
    %c12_88 = arith.constant 12 : index
    %c0_89 = arith.constant 0 : index
    %101 = vector.load %arg15[%c12_88, %c0_89] : memref<64x16xf32, #tpu.memory_space<vmem>>, vector<1x16xf32>
    tpu.vector_store %arg15[%c12_88, %c0_89], %100 {strides = array<i32>} : memref<64x16xf32, #tpu.memory_space<vmem>>, vector<1x16xf32>,
    %102 = vector.extract_strided_slice %85 {offsets = [8, 0], sizes = [1, 16], strides = [1, 1]} : vector<12x16xf32> to vector<1x16xf32>
    %103 = vector.extract_strided_slice %85 {offsets = [9, 0], sizes = [1, 16], strides = [1, 1]} : vector<12x16xf32> to vector<1x16xf32>
    %104 = arith.maximumf %102, %103 : vector<1x16xf32>
    %c13 = arith.constant 13 : index
    %c0_90 = arith.constant 0 : index
    %105 = vector.load %arg15[%c13, %c0_90] : memref<64x16xf32, #tpu.memory_space<vmem>>, vector<1x16xf32>
    tpu.vector_store %arg15[%c13, %c0_90], %104 {strides = array<i32>} : memref<64x16xf32, #tpu.memory_space<vmem>>, vector<1x16xf32>,
    %106 = vector.extract_strided_slice %85 {offsets = [10, 0], sizes = [1, 16], strides = [1, 1]} : vector<12x16xf32> to vector<1x16xf32>
    %107 = vector.extract_strided_slice %85 {offsets = [11, 0], sizes = [1, 16], strides = [1, 1]} : vector<12x16xf32> to vector<1x16xf32>
    %108 = arith.maximumf %106, %107 : vector<1x16xf32>
    %c14_91 = arith.constant 14 : index
    %c0_92 = arith.constant 0 : index
    %109 = vector.load %arg15[%c14_91, %c0_92] : memref<64x16xf32, #tpu.memory_space<vmem>>, vector<1x16xf32>
    tpu.vector_store %arg15[%c14_91, %c0_92], %108 {strides = array<i32>} : memref<64x16xf32, #tpu.memory_space<vmem>>, vector<1x16xf32>,
    %c28_93 = arith.constant 28 : index
    %c0_94 = arith.constant 0 : index
    %110 = vector.load %arg14[%c28_93, %c0_94] : memref<166x16xf32, #tpu.memory_space<vmem>>, vector<12x16xf32>
    %c42 = arith.constant 42 : index
    %c0_95 = arith.constant 0 : index
    %111 = vector.load %arg14[%c42, %c0_95] : memref<166x16xf32, #tpu.memory_space<vmem>>, vector<12x16xf32>
    %112 = arith.maximumf %110, %111 : vector<12x16xf32>
    %113 = vector.extract_strided_slice %112 {offsets = [0, 0], sizes = [1, 16], strides = [1, 1]} : vector<12x16xf32> to vector<1x16xf32>
    %114 = vector.extract_strided_slice %112 {offsets = [1, 0], sizes = [1, 16], strides = [1, 1]} : vector<12x16xf32> to vector<1x16xf32>
    %115 = arith.maximumf %113, %114 : vector<1x16xf32>
    %c17 = arith.constant 17 : index
    %c0_96 = arith.constant 0 : index
    %116 = vector.load %arg15[%c17, %c0_96] : memref<64x16xf32, #tpu.memory_space<vmem>>, vector<1x16xf32>
    tpu.vector_store %arg15[%c17, %c0_96], %115 {strides = array<i32>} : memref<64x16xf32, #tpu.memory_space<vmem>>, vector<1x16xf32>,
    %117 = vector.extract_strided_slice %112 {offsets = [2, 0], sizes = [1, 16], strides = [1, 1]} : vector<12x16xf32> to vector<1x16xf32>
    %118 = vector.extract_strided_slice %112 {offsets = [3, 0], sizes = [1, 16], strides = [1, 1]} : vector<12x16xf32> to vector<1x16xf32>
    %119 = arith.maximumf %117, %118 : vector<1x16xf32>
    %c18 = arith.constant 18 : index
    %c0_97 = arith.constant 0 : index
    %120 = vector.load %arg15[%c18, %c0_97] : memref<64x16xf32, #tpu.memory_space<vmem>>, vector<1x16xf32>
    tpu.vector_store %arg15[%c18, %c0_97], %119 {strides = array<i32>} : memref<64x16xf32, #tpu.memory_space<vmem>>, vector<1x16xf32>,
    %121 = vector.extract_strided_slice %112 {offsets = [4, 0], sizes = [1, 16], strides = [1, 1]} : vector<12x16xf32> to vector<1x16xf32>
    %122 = vector.extract_strided_slice %112 {offsets = [5, 0], sizes = [1, 16], strides = [1, 1]} : vector<12x16xf32> to vector<1x16xf32>
    %123 = arith.maximumf %121, %122 : vector<1x16xf32>
    %c19 = arith.constant 19 : index
    %c0_98 = arith.constant 0 : index
    %124 = vector.load %arg15[%c19, %c0_98] : memref<64x16xf32, #tpu.memory_space<vmem>>, vector<1x16xf32>
    tpu.vector_store %arg15[%c19, %c0_98], %123 {strides = array<i32>} : memref<64x16xf32, #tpu.memory_space<vmem>>, vector<1x16xf32>,
    %125 = vector.extract_strided_slice %112 {offsets = [6, 0], sizes = [1, 16], strides = [1, 1]} : vector<12x16xf32> to vector<1x16xf32>
    %126 = vector.extract_strided_slice %112 {offsets = [7, 0], sizes = [1, 16], strides = [1, 1]} : vector<12x16xf32> to vector<1x16xf32>
    %127 = arith.maximumf %125, %126 : vector<1x16xf32>
    %c20_99 = arith.constant 20 : index
    %c0_100 = arith.constant 0 : index
    %128 = vector.load %arg15[%c20_99, %c0_100] : memref<64x16xf32, #tpu.memory_space<vmem>>, vector<1x16xf32>
    tpu.vector_store %arg15[%c20_99, %c0_100], %127 {strides = array<i32>} : memref<64x16xf32, #tpu.memory_space<vmem>>, vector<1x16xf32>,
    %129 = vector.extract_strided_slice %112 {offsets = [8, 0], sizes = [1, 16], strides = [1, 1]} : vector<12x16xf32> to vector<1x16xf32>
    %130 = vector.extract_strided_slice %112 {offsets = [9, 0], sizes = [1, 16], strides = [1, 1]} : vector<12x16xf32> to vector<1x16xf32>
    %131 = arith.maximumf %129, %130 : vector<1x16xf32>
    %c21 = arith.constant 21 : index
    %c0_101 = arith.constant 0 : index
    %132 = vector.load %arg15[%c21, %c0_101] : memref<64x16xf32, #tpu.memory_space<vmem>>, vector<1x16xf32>
    tpu.vector_store %arg15[%c21, %c0_101], %131 {strides = array<i32>} : memref<64x16xf32, #tpu.memory_space<vmem>>, vector<1x16xf32>,
    %133 = vector.extract_strided_slice %112 {offsets = [10, 0], sizes = [1, 16], strides = [1, 1]} : vector<12x16xf32> to vector<1x16xf32>
    %134 = vector.extract_strided_slice %112 {offsets = [11, 0], sizes = [1, 16], strides = [1, 1]} : vector<12x16xf32> to vector<1x16xf32>
    %135 = arith.maximumf %133, %134 : vector<1x16xf32>
    %c22 = arith.constant 22 : index
    %c0_102 = arith.constant 0 : index
    %136 = vector.load %arg15[%c22, %c0_102] : memref<64x16xf32, #tpu.memory_space<vmem>>, vector<1x16xf32>
    tpu.vector_store %arg15[%c22, %c0_102], %135 {strides = array<i32>} : memref<64x16xf32, #tpu.memory_space<vmem>>, vector<1x16xf32>,
    %c56 = arith.constant 56 : index
    %c0_103 = arith.constant 0 : index
    %137 = vector.load %arg14[%c56, %c0_103] : memref<166x16xf32, #tpu.memory_space<vmem>>, vector<12x16xf32>
    %c70 = arith.constant 70 : index
    %c0_104 = arith.constant 0 : index
    %138 = vector.load %arg14[%c70, %c0_104] : memref<166x16xf32, #tpu.memory_space<vmem>>, vector<12x16xf32>
    %139 = arith.maximumf %137, %138 : vector<12x16xf32>
    %140 = vector.extract_strided_slice %139 {offsets = [0, 0], sizes = [1, 16], strides = [1, 1]} : vector<12x16xf32> to vector<1x16xf32>
    %141 = vector.extract_strided_slice %139 {offsets = [1, 0], sizes = [1, 16], strides = [1, 1]} : vector<12x16xf32> to vector<1x16xf32>
    %142 = arith.maximumf %140, %141 : vector<1x16xf32>
    %c25_105 = arith.constant 25 : index
    %c0_106 = arith.constant 0 : index
    %143 = vector.load %arg15[%c25_105, %c0_106] : memref<64x16xf32, #tpu.memory_space<vmem>>, vector<1x16xf32>
    tpu.vector_store %arg15[%c25_105, %c0_106], %142 {strides = array<i32>} : memref<64x16xf32, #tpu.memory_space<vmem>>, vector<1x16xf32>,
    %144 = vector.extract_strided_slice %139 {offsets = [2, 0], sizes = [1, 16], strides = [1, 1]} : vector<12x16xf32> to vector<1x16xf32>
    %145 = vector.extract_strided_slice %139 {offsets = [3, 0], sizes = [1, 16], strides = [1, 1]} : vector<12x16xf32> to vector<1x16xf32>
    %146 = arith.maximumf %144, %145 : vector<1x16xf32>
    %c26 = arith.constant 26 : index
    %c0_107 = arith.constant 0 : index
    %147 = vector.load %arg15[%c26, %c0_107] : memref<64x16xf32, #tpu.memory_space<vmem>>, vector<1x16xf32>
    tpu.vector_store %arg15[%c26, %c0_107], %146 {strides = array<i32>} : memref<64x16xf32, #tpu.memory_space<vmem>>, vector<1x16xf32>,
    %148 = vector.extract_strided_slice %139 {offsets = [4, 0], sizes = [1, 16], strides = [1, 1]} : vector<12x16xf32> to vector<1x16xf32>
    %149 = vector.extract_strided_slice %139 {offsets = [5, 0], sizes = [1, 16], strides = [1, 1]} : vector<12x16xf32> to vector<1x16xf32>
    %150 = arith.maximumf %148, %149 : vector<1x16xf32>
    %c27 = arith.constant 27 : index
    %c0_108 = arith.constant 0 : index
    %151 = vector.load %arg15[%c27, %c0_108] : memref<64x16xf32, #tpu.memory_space<vmem>>, vector<1x16xf32>
    tpu.vector_store %arg15[%c27, %c0_108], %150 {strides = array<i32>} : memref<64x16xf32, #tpu.memory_space<vmem>>, vector<1x16xf32>,
    %152 = vector.extract_strided_slice %139 {offsets = [6, 0], sizes = [1, 16], strides = [1, 1]} : vector<12x16xf32> to vector<1x16xf32>
    %153 = vector.extract_strided_slice %139 {offsets = [7, 0], sizes = [1, 16], strides = [1, 1]} : vector<12x16xf32> to vector<1x16xf32>
    %154 = arith.maximumf %152, %153 : vector<1x16xf32>
    %c28_109 = arith.constant 28 : index
    %c0_110 = arith.constant 0 : index
    %155 = vector.load %arg15[%c28_109, %c0_110] : memref<64x16xf32, #tpu.memory_space<vmem>>, vector<1x16xf32>
    tpu.vector_store %arg15[%c28_109, %c0_110], %154 {strides = array<i32>} : memref<64x16xf32, #tpu.memory_space<vmem>>, vector<1x16xf32>,
    %156 = vector.extract_strided_slice %139 {offsets = [8, 0], sizes = [1, 16], strides = [1, 1]} : vector<12x16xf32> to vector<1x16xf32>
    %157 = vector.extract_strided_slice %139 {offsets = [9, 0], sizes = [1, 16], strides = [1, 1]} : vector<12x16xf32> to vector<1x16xf32>
    %158 = arith.maximumf %156, %157 : vector<1x16xf32>
    %c29_111 = arith.constant 29 : index
    %c0_112 = arith.constant 0 : index
    %159 = vector.load %arg15[%c29_111, %c0_112] : memref<64x16xf32, #tpu.memory_space<vmem>>, vector<1x16xf32>
    tpu.vector_store %arg15[%c29_111, %c0_112], %158 {strides = array<i32>} : memref<64x16xf32, #tpu.memory_space<vmem>>, vector<1x16xf32>,
    %160 = vector.extract_strided_slice %139 {offsets = [10, 0], sizes = [1, 16], strides = [1, 1]} : vector<12x16xf32> to vector<1x16xf32>
    %161 = vector.extract_strided_slice %139 {offsets = [11, 0], sizes = [1, 16], strides = [1, 1]} : vector<12x16xf32> to vector<1x16xf32>
    %162 = arith.maximumf %160, %161 : vector<1x16xf32>
    %c30_113 = arith.constant 30 : index
    %c0_114 = arith.constant 0 : index
    %163 = vector.load %arg15[%c30_113, %c0_114] : memref<64x16xf32, #tpu.memory_space<vmem>>, vector<1x16xf32>
    tpu.vector_store %arg15[%c30_113, %c0_114], %162 {strides = array<i32>} : memref<64x16xf32, #tpu.memory_space<vmem>>, vector<1x16xf32>,
    %c84_115 = arith.constant 84 : index
    %c0_116 = arith.constant 0 : index
    %164 = vector.load %arg14[%c84_115, %c0_116] : memref<166x16xf32, #tpu.memory_space<vmem>>, vector<12x16xf32>
    %c98 = arith.constant 98 : index
    %c0_117 = arith.constant 0 : index
    %165 = vector.load %arg14[%c98, %c0_117] : memref<166x16xf32, #tpu.memory_space<vmem>>, vector<12x16xf32>
    %166 = arith.maximumf %164, %165 : vector<12x16xf32>
    %167 = vector.extract_strided_slice %166 {offsets = [0, 0], sizes = [1, 16], strides = [1, 1]} : vector<12x16xf32> to vector<1x16xf32>
    %168 = vector.extract_strided_slice %166 {offsets = [1, 0], sizes = [1, 16], strides = [1, 1]} : vector<12x16xf32> to vector<1x16xf32>
    %169 = arith.maximumf %167, %168 : vector<1x16xf32>
    %c33 = arith.constant 33 : index
    %c0_118 = arith.constant 0 : index
    %170 = vector.load %arg15[%c33, %c0_118] : memref<64x16xf32, #tpu.memory_space<vmem>>, vector<1x16xf32>
    tpu.vector_store %arg15[%c33, %c0_118], %169 {strides = array<i32>} : memref<64x16xf32, #tpu.memory_space<vmem>>, vector<1x16xf32>,
    %171 = vector.extract_strided_slice %166 {offsets = [2, 0], sizes = [1, 16], strides = [1, 1]} : vector<12x16xf32> to vector<1x16xf32>
    %172 = vector.extract_strided_slice %166 {offsets = [3, 0], sizes = [1, 16], strides = [1, 1]} : vector<12x16xf32> to vector<1x16xf32>
    %173 = arith.maximumf %171, %172 : vector<1x16xf32>
    %c34 = arith.constant 34 : index
    %c0_119 = arith.constant 0 : index
    %174 = vector.load %arg15[%c34, %c0_119] : memref<64x16xf32, #tpu.memory_space<vmem>>, vector<1x16xf32>
    tpu.vector_store %arg15[%c34, %c0_119], %173 {strides = array<i32>} : memref<64x16xf32, #tpu.memory_space<vmem>>, vector<1x16xf32>,
    %175 = vector.extract_strided_slice %166 {offsets = [4, 0], sizes = [1, 16], strides = [1, 1]} : vector<12x16xf32> to vector<1x16xf32>
    %176 = vector.extract_strided_slice %166 {offsets = [5, 0], sizes = [1, 16], strides = [1, 1]} : vector<12x16xf32> to vector<1x16xf32>
    %177 = arith.maximumf %175, %176 : vector<1x16xf32>
    %c35_120 = arith.constant 35 : index
    %c0_121 = arith.constant 0 : index
    %178 = vector.load %arg15[%c35_120, %c0_121] : memref<64x16xf32, #tpu.memory_space<vmem>>, vector<1x16xf32>
    tpu.vector_store %arg15[%c35_120, %c0_121], %177 {strides = array<i32>} : memref<64x16xf32, #tpu.memory_space<vmem>>, vector<1x16xf32>,
    %179 = vector.extract_strided_slice %166 {offsets = [6, 0], sizes = [1, 16], strides = [1, 1]} : vector<12x16xf32> to vector<1x16xf32>
    %180 = vector.extract_strided_slice %166 {offsets = [7, 0], sizes = [1, 16], strides = [1, 1]} : vector<12x16xf32> to vector<1x16xf32>
    %181 = arith.maximumf %179, %180 : vector<1x16xf32>
    %c36_122 = arith.constant 36 : index
    %c0_123 = arith.constant 0 : index
    %182 = vector.load %arg15[%c36_122, %c0_123] : memref<64x16xf32, #tpu.memory_space<vmem>>, vector<1x16xf32>
    tpu.vector_store %arg15[%c36_122, %c0_123], %181 {strides = array<i32>} : memref<64x16xf32, #tpu.memory_space<vmem>>, vector<1x16xf32>,
    %183 = vector.extract_strided_slice %166 {offsets = [8, 0], sizes = [1, 16], strides = [1, 1]} : vector<12x16xf32> to vector<1x16xf32>
    %184 = vector.extract_strided_slice %166 {offsets = [9, 0], sizes = [1, 16], strides = [1, 1]} : vector<12x16xf32> to vector<1x16xf32>
    %185 = arith.maximumf %183, %184 : vector<1x16xf32>
    %c37 = arith.constant 37 : index
    %c0_124 = arith.constant 0 : index
    %186 = vector.load %arg15[%c37, %c0_124] : memref<64x16xf32, #tpu.memory_space<vmem>>, vector<1x16xf32>
    tpu.vector_store %arg15[%c37, %c0_124], %185 {strides = array<i32>} : memref<64x16xf32, #tpu.memory_space<vmem>>, vector<1x16xf32>,
    %187 = vector.extract_strided_slice %166 {offsets = [10, 0], sizes = [1, 16], strides = [1, 1]} : vector<12x16xf32> to vector<1x16xf32>
    %188 = vector.extract_strided_slice %166 {offsets = [11, 0], sizes = [1, 16], strides = [1, 1]} : vector<12x16xf32> to vector<1x16xf32>
    %189 = arith.maximumf %187, %188 : vector<1x16xf32>
    %c38 = arith.constant 38 : index
    %c0_125 = arith.constant 0 : index
    %190 = vector.load %arg15[%c38, %c0_125] : memref<64x16xf32, #tpu.memory_space<vmem>>, vector<1x16xf32>
    tpu.vector_store %arg15[%c38, %c0_125], %189 {strides = array<i32>} : memref<64x16xf32, #tpu.memory_space<vmem>>, vector<1x16xf32>,
    %c112 = arith.constant 112 : index
    %c0_126 = arith.constant 0 : index
    %191 = vector.load %arg14[%c112, %c0_126] : memref<166x16xf32, #tpu.memory_space<vmem>>, vector<12x16xf32>
    %c126 = arith.constant 126 : index
    %c0_127 = arith.constant 0 : index
    %192 = vector.load %arg14[%c126, %c0_127] : memref<166x16xf32, #tpu.memory_space<vmem>>, vector<12x16xf32>
    %193 = arith.maximumf %191, %192 : vector<12x16xf32>
    %194 = vector.extract_strided_slice %193 {offsets = [0, 0], sizes = [1, 16], strides = [1, 1]} : vector<12x16xf32> to vector<1x16xf32>
    %195 = vector.extract_strided_slice %193 {offsets = [1, 0], sizes = [1, 16], strides = [1, 1]} : vector<12x16xf32> to vector<1x16xf32>
    %196 = arith.maximumf %194, %195 : vector<1x16xf32>
    %c41 = arith.constant 41 : index
    %c0_128 = arith.constant 0 : index
    %197 = vector.load %arg15[%c41, %c0_128] : memref<64x16xf32, #tpu.memory_space<vmem>>, vector<1x16xf32>
    tpu.vector_store %arg15[%c41, %c0_128], %196 {strides = array<i32>} : memref<64x16xf32, #tpu.memory_space<vmem>>, vector<1x16xf32>,
    %198 = vector.extract_strided_slice %193 {offsets = [2, 0], sizes = [1, 16], strides = [1, 1]} : vector<12x16xf32> to vector<1x16xf32>
    %199 = vector.extract_strided_slice %193 {offsets = [3, 0], sizes = [1, 16], strides = [1, 1]} : vector<12x16xf32> to vector<1x16xf32>
    %200 = arith.maximumf %198, %199 : vector<1x16xf32>
    %c42_129 = arith.constant 42 : index
    %c0_130 = arith.constant 0 : index
    %201 = vector.load %arg15[%c42_129, %c0_130] : memref<64x16xf32, #tpu.memory_space<vmem>>, vector<1x16xf32>
    tpu.vector_store %arg15[%c42_129, %c0_130], %200 {strides = array<i32>} : memref<64x16xf32, #tpu.memory_space<vmem>>, vector<1x16xf32>,
    %202 = vector.extract_strided_slice %193 {offsets = [4, 0], sizes = [1, 16], strides = [1, 1]} : vector<12x16xf32> to vector<1x16xf32>
    %203 = vector.extract_strided_slice %193 {offsets = [5, 0], sizes = [1, 16], strides = [1, 1]} : vector<12x16xf32> to vector<1x16xf32>
    %204 = arith.maximumf %202, %203 : vector<1x16xf32>
    %c43_131 = arith.constant 43 : index
    %c0_132 = arith.constant 0 : index
    %205 = vector.load %arg15[%c43_131, %c0_132] : memref<64x16xf32, #tpu.memory_space<vmem>>, vector<1x16xf32>
    tpu.vector_store %arg15[%c43_131, %c0_132], %204 {strides = array<i32>} : memref<64x16xf32, #tpu.memory_space<vmem>>, vector<1x16xf32>,
    %206 = vector.extract_strided_slice %193 {offsets = [6, 0], sizes = [1, 16], strides = [1, 1]} : vector<12x16xf32> to vector<1x16xf32>
    %207 = vector.extract_strided_slice %193 {offsets = [7, 0], sizes = [1, 16], strides = [1, 1]} : vector<12x16xf32> to vector<1x16xf32>
    %208 = arith.maximumf %206, %207 : vector<1x16xf32>
    %c44 = arith.constant 44 : index
    %c0_133 = arith.constant 0 : index
    %209 = vector.load %arg15[%c44, %c0_133] : memref<64x16xf32, #tpu.memory_space<vmem>>, vector<1x16xf32>
    tpu.vector_store %arg15[%c44, %c0_133], %208 {strides = array<i32>} : memref<64x16xf32, #tpu.memory_space<vmem>>, vector<1x16xf32>,
    %210 = vector.extract_strided_slice %193 {offsets = [8, 0], sizes = [1, 16], strides = [1, 1]} : vector<12x16xf32> to vector<1x16xf32>
    %211 = vector.extract_strided_slice %193 {offsets = [9, 0], sizes = [1, 16], strides = [1, 1]} : vector<12x16xf32> to vector<1x16xf32>
    %212 = arith.maximumf %210, %211 : vector<1x16xf32>
    %c45 = arith.constant 45 : index
    %c0_134 = arith.constant 0 : index
    %213 = vector.load %arg15[%c45, %c0_134] : memref<64x16xf32, #tpu.memory_space<vmem>>, vector<1x16xf32>
    tpu.vector_store %arg15[%c45, %c0_134], %212 {strides = array<i32>} : memref<64x16xf32, #tpu.memory_space<vmem>>, vector<1x16xf32>,
    %214 = vector.extract_strided_slice %193 {offsets = [10, 0], sizes = [1, 16], strides = [1, 1]} : vector<12x16xf32> to vector<1x16xf32>
    %215 = vector.extract_strided_slice %193 {offsets = [11, 0], sizes = [1, 16], strides = [1, 1]} : vector<12x16xf32> to vector<1x16xf32>
    %216 = arith.maximumf %214, %215 : vector<1x16xf32>
    %c46 = arith.constant 46 : index
    %c0_135 = arith.constant 0 : index
    %217 = vector.load %arg15[%c46, %c0_135] : memref<64x16xf32, #tpu.memory_space<vmem>>, vector<1x16xf32>
    tpu.vector_store %arg15[%c46, %c0_135], %216 {strides = array<i32>} : memref<64x16xf32, #tpu.memory_space<vmem>>, vector<1x16xf32>,
    %c140 = arith.constant 140 : index
    %c0_136 = arith.constant 0 : index
    %218 = vector.load %arg14[%c140, %c0_136] : memref<166x16xf32, #tpu.memory_space<vmem>>, vector<12x16xf32>
    %c154 = arith.constant 154 : index
    %c0_137 = arith.constant 0 : index
    %219 = vector.load %arg14[%c154, %c0_137] : memref<166x16xf32, #tpu.memory_space<vmem>>, vector<12x16xf32>
    %220 = arith.maximumf %218, %219 : vector<12x16xf32>
    %221 = vector.extract_strided_slice %220 {offsets = [0, 0], sizes = [1, 16], strides = [1, 1]} : vector<12x16xf32> to vector<1x16xf32>
    %222 = vector.extract_strided_slice %220 {offsets = [1, 0], sizes = [1, 16], strides = [1, 1]} : vector<12x16xf32> to vector<1x16xf32>
    %223 = arith.maximumf %221, %222 : vector<1x16xf32>
    %c49 = arith.constant 49 : index
    %c0_138 = arith.constant 0 : index
    %224 = vector.load %arg15[%c49, %c0_138] : memref<64x16xf32, #tpu.memory_space<vmem>>, vector<1x16xf32>
    tpu.vector_store %arg15[%c49, %c0_138], %223 {strides = array<i32>} : memref<64x16xf32, #tpu.memory_space<vmem>>, vector<1x16xf32>,
    %225 = vector.extract_strided_slice %220 {offsets = [2, 0], sizes = [1, 16], strides = [1, 1]} : vector<12x16xf32> to vector<1x16xf32>
    %226 = vector.extract_strided_slice %220 {offsets = [3, 0], sizes = [1, 16], strides = [1, 1]} : vector<12x16xf32> to vector<1x16xf32>
    %227 = arith.maximumf %225, %226 : vector<1x16xf32>
    %c50 = arith.constant 50 : index
    %c0_139 = arith.constant 0 : index
    %228 = vector.load %arg15[%c50, %c0_139] : memref<64x16xf32, #tpu.memory_space<vmem>>, vector<1x16xf32>
    tpu.vector_store %arg15[%c50, %c0_139], %227 {strides = array<i32>} : memref<64x16xf32, #tpu.memory_space<vmem>>, vector<1x16xf32>,
    %229 = vector.extract_strided_slice %220 {offsets = [4, 0], sizes = [1, 16], strides = [1, 1]} : vector<12x16xf32> to vector<1x16xf32>
    %230 = vector.extract_strided_slice %220 {offsets = [5, 0], sizes = [1, 16], strides = [1, 1]} : vector<12x16xf32> to vector<1x16xf32>
    %231 = arith.maximumf %229, %230 : vector<1x16xf32>
    %c51 = arith.constant 51 : index
    %c0_140 = arith.constant 0 : index
    %232 = vector.load %arg15[%c51, %c0_140] : memref<64x16xf32, #tpu.memory_space<vmem>>, vector<1x16xf32>
    tpu.vector_store %arg15[%c51, %c0_140], %231 {strides = array<i32>} : memref<64x16xf32, #tpu.memory_space<vmem>>, vector<1x16xf32>,
    %233 = vector.extract_strided_slice %220 {offsets = [6, 0], sizes = [1, 16], strides = [1, 1]} : vector<12x16xf32> to vector<1x16xf32>
    %234 = vector.extract_strided_slice %220 {offsets = [7, 0], sizes = [1, 16], strides = [1, 1]} : vector<12x16xf32> to vector<1x16xf32>
    %235 = arith.maximumf %233, %234 : vector<1x16xf32>
    %c52 = arith.constant 52 : index
    %c0_141 = arith.constant 0 : index
    %236 = vector.load %arg15[%c52, %c0_141] : memref<64x16xf32, #tpu.memory_space<vmem>>, vector<1x16xf32>
    tpu.vector_store %arg15[%c52, %c0_141], %235 {strides = array<i32>} : memref<64x16xf32, #tpu.memory_space<vmem>>, vector<1x16xf32>,
    %237 = vector.extract_strided_slice %220 {offsets = [8, 0], sizes = [1, 16], strides = [1, 1]} : vector<12x16xf32> to vector<1x16xf32>
    %238 = vector.extract_strided_slice %220 {offsets = [9, 0], sizes = [1, 16], strides = [1, 1]} : vector<12x16xf32> to vector<1x16xf32>
    %239 = arith.maximumf %237, %238 : vector<1x16xf32>
    %c53 = arith.constant 53 : index
    %c0_142 = arith.constant 0 : index
    %240 = vector.load %arg15[%c53, %c0_142] : memref<64x16xf32, #tpu.memory_space<vmem>>, vector<1x16xf32>
    tpu.vector_store %arg15[%c53, %c0_142], %239 {strides = array<i32>} : memref<64x16xf32, #tpu.memory_space<vmem>>, vector<1x16xf32>,
    %241 = vector.extract_strided_slice %220 {offsets = [10, 0], sizes = [1, 16], strides = [1, 1]} : vector<12x16xf32> to vector<1x16xf32>
    %242 = vector.extract_strided_slice %220 {offsets = [11, 0], sizes = [1, 16], strides = [1, 1]} : vector<12x16xf32> to vector<1x16xf32>
    %243 = arith.maximumf %241, %242 : vector<1x16xf32>
    %c54 = arith.constant 54 : index
    %c0_143 = arith.constant 0 : index
    %244 = vector.load %arg15[%c54, %c0_143] : memref<64x16xf32, #tpu.memory_space<vmem>>, vector<1x16xf32>
    tpu.vector_store %arg15[%c54, %c0_143], %243 {strides = array<i32>} : memref<64x16xf32, #tpu.memory_space<vmem>>, vector<1x16xf32>,
    %cst_144 = arith.constant 0.000000e+00 : f32
    %245 = vector.broadcast %cst_144 : f32 to vector<46x32xf32>
    %c0_145 = arith.constant 0 : index
    %c0_146 = arith.constant 0 : index
    %246 = vector.load %arg15[%c0_145, %c0_146] : memref<64x16xf32, #tpu.memory_space<vmem>>, vector<46x16xf32>
    %c0_147 = arith.constant 0 : index
    %c0_148 = arith.constant 0 : index
    %247 = vector.load %arg4[%c0_147, %c0_148] : memref<144x32xf32, #tpu.memory_space<vmem>>, vector<16x32xf32>
    %cst_149 = arith.constant dense<0.000000e+00> : vector<46x32xf32>
    %248 = tpu.matmul %246, %247, %cst_149 {dimension_numbers = #tpu.dot_dimension_numbers<[1], [0], [0], [1], [0, 0, 1, 1], [], []>} : vector<46x16xf32>, vector<16x32xf32>, vector<46x32xf32> -> vector<46x32xf32>
    %249 = arith.addf %245, %248 : vector<46x32xf32>
    %c1_150 = arith.constant 1 : index
    %c0_151 = arith.constant 0 : index
    %250 = vector.load %arg15[%c1_150, %c0_151] : memref<64x16xf32, #tpu.memory_space<vmem>>, vector<46x16xf32>
    %c16_152 = arith.constant 16 : index
    %c0_153 = arith.constant 0 : index
    %251 = vector.load %arg4[%c16_152, %c0_153] : memref<144x32xf32, #tpu.memory_space<vmem>>, vector<16x32xf32>
    %cst_154 = arith.constant dense<0.000000e+00> : vector<46x32xf32>
    %252 = tpu.matmul %250, %251, %cst_154 {dimension_numbers = #tpu.dot_dimension_numbers<[1], [0], [0], [1], [0, 0, 1, 1], [], []>} : vector<46x16xf32>, vector<16x32xf32>, vector<46x32xf32> -> vector<46x32xf32>
    %253 = arith.addf %249, %252 : vector<46x32xf32>
    %c2_155 = arith.constant 2 : index
    %c0_156 = arith.constant 0 : index
    %254 = vector.load %arg15[%c2_155, %c0_156] : memref<64x16xf32, #tpu.memory_space<vmem>>, vector<46x16xf32>
    %c32 = arith.constant 32 : index
    %c0_157 = arith.constant 0 : index
    %255 = vector.load %arg4[%c32, %c0_157] : memref<144x32xf32, #tpu.memory_space<vmem>>, vector<16x32xf32>
    %cst_158 = arith.constant dense<0.000000e+00> : vector<46x32xf32>
    %256 = tpu.matmul %254, %255, %cst_158 {dimension_numbers = #tpu.dot_dimension_numbers<[1], [0], [0], [1], [0, 0, 1, 1], [], []>} : vector<46x16xf32>, vector<16x32xf32>, vector<46x32xf32> -> vector<46x32xf32>
    %257 = arith.addf %253, %256 : vector<46x32xf32>
    %c8 = arith.constant 8 : index
    %c0_159 = arith.constant 0 : index
    %258 = vector.load %arg15[%c8, %c0_159] : memref<64x16xf32, #tpu.memory_space<vmem>>, vector<46x16xf32>
    %c48_160 = arith.constant 48 : index
    %c0_161 = arith.constant 0 : index
    %259 = vector.load %arg4[%c48_160, %c0_161] : memref<144x32xf32, #tpu.memory_space<vmem>>, vector<16x32xf32>
    %cst_162 = arith.constant dense<0.000000e+00> : vector<46x32xf32>
    %260 = tpu.matmul %258, %259, %cst_162 {dimension_numbers = #tpu.dot_dimension_numbers<[1], [0], [0], [1], [0, 0, 1, 1], [], []>} : vector<46x16xf32>, vector<16x32xf32>, vector<46x32xf32> -> vector<46x32xf32>
    %261 = arith.addf %257, %260 : vector<46x32xf32>
    %c9_163 = arith.constant 9 : index
    %c0_164 = arith.constant 0 : index
    %262 = vector.load %arg15[%c9_163, %c0_164] : memref<64x16xf32, #tpu.memory_space<vmem>>, vector<46x16xf32>
    %c64 = arith.constant 64 : index
    %c0_165 = arith.constant 0 : index
    %263 = vector.load %arg4[%c64, %c0_165] : memref<144x32xf32, #tpu.memory_space<vmem>>, vector<16x32xf32>
    %cst_166 = arith.constant dense<0.000000e+00> : vector<46x32xf32>
    %264 = tpu.matmul %262, %263, %cst_166 {dimension_numbers = #tpu.dot_dimension_numbers<[1], [0], [0], [1], [0, 0, 1, 1], [], []>} : vector<46x16xf32>, vector<16x32xf32>, vector<46x32xf32> -> vector<46x32xf32>
    %265 = arith.addf %261, %264 : vector<46x32xf32>
    %c10_167 = arith.constant 10 : index
    %c0_168 = arith.constant 0 : index
    %266 = vector.load %arg15[%c10_167, %c0_168] : memref<64x16xf32, #tpu.memory_space<vmem>>, vector<46x16xf32>
    %c80 = arith.constant 80 : index
    %c0_169 = arith.constant 0 : index
    %267 = vector.load %arg4[%c80, %c0_169] : memref<144x32xf32, #tpu.memory_space<vmem>>, vector<16x32xf32>
    %cst_170 = arith.constant dense<0.000000e+00> : vector<46x32xf32>
    %268 = tpu.matmul %266, %267, %cst_170 {dimension_numbers = #tpu.dot_dimension_numbers<[1], [0], [0], [1], [0, 0, 1, 1], [], []>} : vector<46x16xf32>, vector<16x32xf32>, vector<46x32xf32> -> vector<46x32xf32>
    %269 = arith.addf %265, %268 : vector<46x32xf32>
    %c16_171 = arith.constant 16 : index
    %c0_172 = arith.constant 0 : index
    %270 = vector.load %arg15[%c16_171, %c0_172] : memref<64x16xf32, #tpu.memory_space<vmem>>, vector<46x16xf32>
    %c96_173 = arith.constant 96 : index
    %c0_174 = arith.constant 0 : index
    %271 = vector.load %arg4[%c96_173, %c0_174] : memref<144x32xf32, #tpu.memory_space<vmem>>, vector<16x32xf32>
    %cst_175 = arith.constant dense<0.000000e+00> : vector<46x32xf32>
    %272 = tpu.matmul %270, %271, %cst_175 {dimension_numbers = #tpu.dot_dimension_numbers<[1], [0], [0], [1], [0, 0, 1, 1], [], []>} : vector<46x16xf32>, vector<16x32xf32>, vector<46x32xf32> -> vector<46x32xf32>
    %273 = arith.addf %269, %272 : vector<46x32xf32>
    %c17_176 = arith.constant 17 : index
    %c0_177 = arith.constant 0 : index
    %274 = vector.load %arg15[%c17_176, %c0_177] : memref<64x16xf32, #tpu.memory_space<vmem>>, vector<46x16xf32>
    %c112_178 = arith.constant 112 : index
    %c0_179 = arith.constant 0 : index
    %275 = vector.load %arg4[%c112_178, %c0_179] : memref<144x32xf32, #tpu.memory_space<vmem>>, vector<16x32xf32>
    %cst_180 = arith.constant dense<0.000000e+00> : vector<46x32xf32>
    %276 = tpu.matmul %274, %275, %cst_180 {dimension_numbers = #tpu.dot_dimension_numbers<[1], [0], [0], [1], [0, 0, 1, 1], [], []>} : vector<46x16xf32>, vector<16x32xf32>, vector<46x32xf32> -> vector<46x32xf32>
    %277 = arith.addf %273, %276 : vector<46x32xf32>
    %c18_181 = arith.constant 18 : index
    %c0_182 = arith.constant 0 : index
    %278 = vector.load %arg15[%c18_181, %c0_182] : memref<64x16xf32, #tpu.memory_space<vmem>>, vector<46x16xf32>
    %c128 = arith.constant 128 : index
    %c0_183 = arith.constant 0 : index
    %279 = vector.load %arg4[%c128, %c0_183] : memref<144x32xf32, #tpu.memory_space<vmem>>, vector<16x32xf32>
    %cst_184 = arith.constant dense<0.000000e+00> : vector<46x32xf32>
    %280 = tpu.matmul %278, %279, %cst_184 {dimension_numbers = #tpu.dot_dimension_numbers<[1], [0], [0], [1], [0, 0, 1, 1], [], []>} : vector<46x16xf32>, vector<16x32xf32>, vector<46x32xf32> -> vector<46x32xf32>
    %281 = arith.addf %277, %280 : vector<46x32xf32>
    %c0_185 = arith.constant 0 : index
    %c0_186 = arith.constant 0 : index
    %282 = vector.load %arg5[%c0_185, %c0_186] : memref<1x32xf32, #tpu.memory_space<vmem>>, vector<1x32xf32>
    %283 = vector.broadcast %282 : vector<1x32xf32> to vector<46x32xf32>
    %284 = arith.addf %281, %283 : vector<46x32xf32>
    %cst_187 = arith.constant 0.000000e+00 : f32
    %285 = vector.broadcast %cst_187 : f32 to vector<46x32xf32>
    %286 = arith.maximumf %284, %285 : vector<46x32xf32>
    %c0_188 = arith.constant 0 : index
    %c0_189 = arith.constant 0 : index
    %287 = vector.load %arg16[%c0_188, %c0_189] : memref<46x32xf32, #tpu.memory_space<vmem>>, vector<46x32xf32>
    tpu.vector_store %arg16[%c0_188, %c0_189], %286 {strides = array<i32>} : memref<46x32xf32, #tpu.memory_space<vmem>>, vector<46x32xf32>,
    %c0_190 = arith.constant 0 : index
    %c0_191 = arith.constant 0 : index
    %288 = vector.load %arg7[%c0_190, %c0_191] : memref<1x64xf32, #tpu.memory_space<vmem>>, vector<1x64xf32>
    %c0_192 = arith.constant 0 : index
    %c0_193 = arith.constant 0 : index
    %289 = vector.load %arg16[%c0_192, %c0_193] : memref<46x32xf32, #tpu.memory_space<vmem>>, vector<6x32xf32>
    %c8_194 = arith.constant 8 : index
    %c0_195 = arith.constant 0 : index
    %290 = vector.load %arg16[%c8_194, %c0_195] : memref<46x32xf32, #tpu.memory_space<vmem>>, vector<6x32xf32>
    %291 = arith.maximumf %289, %290 : vector<6x32xf32>
    %292 = vector.extract_strided_slice %291 {offsets = [0, 0], sizes = [1, 32], strides = [1, 1]} : vector<6x32xf32> to vector<1x32xf32>
    %293 = vector.extract_strided_slice %291 {offsets = [1, 0], sizes = [1, 32], strides = [1, 1]} : vector<6x32xf32> to vector<1x32xf32>
    %294 = arith.maximumf %292, %293 : vector<1x32xf32>
    %c0_196 = arith.constant 0 : index
    %c0_197 = arith.constant 0 : index
    %295 = vector.load %arg6[%c0_196, %c0_197] : memref<288x64xf32, #tpu.memory_space<vmem>>, vector<32x64xf32>
    %cst_198 = arith.constant dense<0.000000e+00> : vector<1x64xf32>
    %296 = tpu.matmul %294, %295, %cst_198 {dimension_numbers = #tpu.dot_dimension_numbers<[1], [0], [0], [1], [0, 0, 1, 1], [], []>} : vector<1x32xf32>, vector<32x64xf32>, vector<1x64xf32> -> vector<1x64xf32>
    %297 = arith.addf %288, %296 : vector<1x64xf32>
    %298 = vector.extract_strided_slice %291 {offsets = [2, 0], sizes = [1, 32], strides = [1, 1]} : vector<6x32xf32> to vector<1x32xf32>
    %299 = vector.extract_strided_slice %291 {offsets = [3, 0], sizes = [1, 32], strides = [1, 1]} : vector<6x32xf32> to vector<1x32xf32>
    %300 = arith.maximumf %298, %299 : vector<1x32xf32>
    %c32_199 = arith.constant 32 : index
    %c0_200 = arith.constant 0 : index
    %301 = vector.load %arg6[%c32_199, %c0_200] : memref<288x64xf32, #tpu.memory_space<vmem>>, vector<32x64xf32>
    %cst_201 = arith.constant dense<0.000000e+00> : vector<1x64xf32>
    %302 = tpu.matmul %300, %301, %cst_201 {dimension_numbers = #tpu.dot_dimension_numbers<[1], [0], [0], [1], [0, 0, 1, 1], [], []>} : vector<1x32xf32>, vector<32x64xf32>, vector<1x64xf32> -> vector<1x64xf32>
    %303 = arith.addf %297, %302 : vector<1x64xf32>
    %304 = vector.extract_strided_slice %291 {offsets = [4, 0], sizes = [1, 32], strides = [1, 1]} : vector<6x32xf32> to vector<1x32xf32>
    %305 = vector.extract_strided_slice %291 {offsets = [5, 0], sizes = [1, 32], strides = [1, 1]} : vector<6x32xf32> to vector<1x32xf32>
    %306 = arith.maximumf %304, %305 : vector<1x32xf32>
    %c64_202 = arith.constant 64 : index
    %c0_203 = arith.constant 0 : index
    %307 = vector.load %arg6[%c64_202, %c0_203] : memref<288x64xf32, #tpu.memory_space<vmem>>, vector<32x64xf32>
    %cst_204 = arith.constant dense<0.000000e+00> : vector<1x64xf32>
    %308 = tpu.matmul %306, %307, %cst_204 {dimension_numbers = #tpu.dot_dimension_numbers<[1], [0], [0], [1], [0, 0, 1, 1], [], []>} : vector<1x32xf32>, vector<32x64xf32>, vector<1x64xf32> -> vector<1x64xf32>
    %309 = arith.addf %303, %308 : vector<1x64xf32>
    %c16_205 = arith.constant 16 : index
    %c0_206 = arith.constant 0 : index
    %310 = vector.load %arg16[%c16_205, %c0_206] : memref<46x32xf32, #tpu.memory_space<vmem>>, vector<6x32xf32>
    %c24_207 = arith.constant 24 : index
    %c0_208 = arith.constant 0 : index
    %311 = vector.load %arg16[%c24_207, %c0_208] : memref<46x32xf32, #tpu.memory_space<vmem>>, vector<6x32xf32>
    %312 = arith.maximumf %310, %311 : vector<6x32xf32>
    %313 = vector.extract_strided_slice %312 {offsets = [0, 0], sizes = [1, 32], strides = [1, 1]} : vector<6x32xf32> to vector<1x32xf32>
    %314 = vector.extract_strided_slice %312 {offsets = [1, 0], sizes = [1, 32], strides = [1, 1]} : vector<6x32xf32> to vector<1x32xf32>
    %315 = arith.maximumf %313, %314 : vector<1x32xf32>
    %c96_209 = arith.constant 96 : index
    %c0_210 = arith.constant 0 : index
    %316 = vector.load %arg6[%c96_209, %c0_210] : memref<288x64xf32, #tpu.memory_space<vmem>>, vector<32x64xf32>
    %cst_211 = arith.constant dense<0.000000e+00> : vector<1x64xf32>
    %317 = tpu.matmul %315, %316, %cst_211 {dimension_numbers = #tpu.dot_dimension_numbers<[1], [0], [0], [1], [0, 0, 1, 1], [], []>} : vector<1x32xf32>, vector<32x64xf32>, vector<1x64xf32> -> vector<1x64xf32>
    %318 = arith.addf %309, %317 : vector<1x64xf32>
    %319 = vector.extract_strided_slice %312 {offsets = [2, 0], sizes = [1, 32], strides = [1, 1]} : vector<6x32xf32> to vector<1x32xf32>
    %320 = vector.extract_strided_slice %312 {offsets = [3, 0], sizes = [1, 32], strides = [1, 1]} : vector<6x32xf32> to vector<1x32xf32>
    %321 = arith.maximumf %319, %320 : vector<1x32xf32>
    %c128_212 = arith.constant 128 : index
    %c0_213 = arith.constant 0 : index
    %322 = vector.load %arg6[%c128_212, %c0_213] : memref<288x64xf32, #tpu.memory_space<vmem>>, vector<32x64xf32>
    %cst_214 = arith.constant dense<0.000000e+00> : vector<1x64xf32>
    %323 = tpu.matmul %321, %322, %cst_214 {dimension_numbers = #tpu.dot_dimension_numbers<[1], [0], [0], [1], [0, 0, 1, 1], [], []>} : vector<1x32xf32>, vector<32x64xf32>, vector<1x64xf32> -> vector<1x64xf32>
    %324 = arith.addf %318, %323 : vector<1x64xf32>
    %325 = vector.extract_strided_slice %312 {offsets = [4, 0], sizes = [1, 32], strides = [1, 1]} : vector<6x32xf32> to vector<1x32xf32>
    %326 = vector.extract_strided_slice %312 {offsets = [5, 0], sizes = [1, 32], strides = [1, 1]} : vector<6x32xf32> to vector<1x32xf32>
    %327 = arith.maximumf %325, %326 : vector<1x32xf32>
    %c160 = arith.constant 160 : index
    %c0_215 = arith.constant 0 : index
    %328 = vector.load %arg6[%c160, %c0_215] : memref<288x64xf32, #tpu.memory_space<vmem>>, vector<32x64xf32>
    %cst_216 = arith.constant dense<0.000000e+00> : vector<1x64xf32>
    %329 = tpu.matmul %327, %328, %cst_216 {dimension_numbers = #tpu.dot_dimension_numbers<[1], [0], [0], [1], [0, 0, 1, 1], [], []>} : vector<1x32xf32>, vector<32x64xf32>, vector<1x64xf32> -> vector<1x64xf32>
    %330 = arith.addf %324, %329 : vector<1x64xf32>
    %c32_217 = arith.constant 32 : index
    %c0_218 = arith.constant 0 : index
    %331 = vector.load %arg16[%c32_217, %c0_218] : memref<46x32xf32, #tpu.memory_space<vmem>>, vector<6x32xf32>
    %c40_219 = arith.constant 40 : index
    %c0_220 = arith.constant 0 : index
    %332 = vector.load %arg16[%c40_219, %c0_220] : memref<46x32xf32, #tpu.memory_space<vmem>>, vector<6x32xf32>
    %333 = arith.maximumf %331, %332 : vector<6x32xf32>
    %334 = vector.extract_strided_slice %333 {offsets = [0, 0], sizes = [1, 32], strides = [1, 1]} : vector<6x32xf32> to vector<1x32xf32>
    %335 = vector.extract_strided_slice %333 {offsets = [1, 0], sizes = [1, 32], strides = [1, 1]} : vector<6x32xf32> to vector<1x32xf32>
    %336 = arith.maximumf %334, %335 : vector<1x32xf32>
    %c192 = arith.constant 192 : index
    %c0_221 = arith.constant 0 : index
    %337 = vector.load %arg6[%c192, %c0_221] : memref<288x64xf32, #tpu.memory_space<vmem>>, vector<32x64xf32>
    %cst_222 = arith.constant dense<0.000000e+00> : vector<1x64xf32>
    %338 = tpu.matmul %336, %337, %cst_222 {dimension_numbers = #tpu.dot_dimension_numbers<[1], [0], [0], [1], [0, 0, 1, 1], [], []>} : vector<1x32xf32>, vector<32x64xf32>, vector<1x64xf32> -> vector<1x64xf32>
    %339 = arith.addf %330, %338 : vector<1x64xf32>
    %340 = vector.extract_strided_slice %333 {offsets = [2, 0], sizes = [1, 32], strides = [1, 1]} : vector<6x32xf32> to vector<1x32xf32>
    %341 = vector.extract_strided_slice %333 {offsets = [3, 0], sizes = [1, 32], strides = [1, 1]} : vector<6x32xf32> to vector<1x32xf32>
    %342 = arith.maximumf %340, %341 : vector<1x32xf32>
    %c224 = arith.constant 224 : index
    %c0_223 = arith.constant 0 : index
    %343 = vector.load %arg6[%c224, %c0_223] : memref<288x64xf32, #tpu.memory_space<vmem>>, vector<32x64xf32>
    %cst_224 = arith.constant dense<0.000000e+00> : vector<1x64xf32>
    %344 = tpu.matmul %342, %343, %cst_224 {dimension_numbers = #tpu.dot_dimension_numbers<[1], [0], [0], [1], [0, 0, 1, 1], [], []>} : vector<1x32xf32>, vector<32x64xf32>, vector<1x64xf32> -> vector<1x64xf32>
    %345 = arith.addf %339, %344 : vector<1x64xf32>
    %346 = vector.extract_strided_slice %333 {offsets = [4, 0], sizes = [1, 32], strides = [1, 1]} : vector<6x32xf32> to vector<1x32xf32>
    %347 = vector.extract_strided_slice %333 {offsets = [5, 0], sizes = [1, 32], strides = [1, 1]} : vector<6x32xf32> to vector<1x32xf32>
    %348 = arith.maximumf %346, %347 : vector<1x32xf32>
    %c256 = arith.constant 256 : index
    %c0_225 = arith.constant 0 : index
    %349 = vector.load %arg6[%c256, %c0_225] : memref<288x64xf32, #tpu.memory_space<vmem>>, vector<32x64xf32>
    %cst_226 = arith.constant dense<0.000000e+00> : vector<1x64xf32>
    %350 = tpu.matmul %348, %349, %cst_226 {dimension_numbers = #tpu.dot_dimension_numbers<[1], [0], [0], [1], [0, 0, 1, 1], [], []>} : vector<1x32xf32>, vector<32x64xf32>, vector<1x64xf32> -> vector<1x64xf32>
    %351 = arith.addf %345, %350 : vector<1x64xf32>
    %cst_227 = arith.constant 0.000000e+00 : f32
    %352 = vector.broadcast %cst_227 : f32 to vector<1x64xf32>
    %353 = arith.maximumf %351, %352 : vector<1x64xf32>
    %c0_228 = arith.constant 0 : index
    %c0_229 = arith.constant 0 : index
    %354 = vector.load %arg8[%c0_228, %c0_229] : memref<64x32xf32, #tpu.memory_space<vmem>>, vector<64x32xf32>
    %cst_230 = arith.constant dense<0.000000e+00> : vector<1x32xf32>
    %355 = tpu.matmul %353, %354, %cst_230 {dimension_numbers = #tpu.dot_dimension_numbers<[1], [0], [0], [1], [0, 0, 1, 1], [], []>} : vector<1x64xf32>, vector<64x32xf32>, vector<1x32xf32> -> vector<1x32xf32>
    %c0_231 = arith.constant 0 : index
    %c0_232 = arith.constant 0 : index
    %356 = vector.load %arg9[%c0_231, %c0_232] : memref<1x32xf32, #tpu.memory_space<vmem>>, vector<1x32xf32>
    %357 = arith.addf %355, %356 : vector<1x32xf32>
    %cst_233 = arith.constant 0.000000e+00 : f32
    %358 = vector.broadcast %cst_233 : f32 to vector<1x32xf32>
    %359 = arith.maximumf %357, %358 : vector<1x32xf32>
    %c0_234 = arith.constant 0 : index
    %c0_235 = arith.constant 0 : index
    %360 = vector.load %arg10[%c0_234, %c0_235] : memref<32x9xf32, #tpu.memory_space<vmem>>, vector<32x9xf32>
    %cst_236 = arith.constant dense<0.000000e+00> : vector<1x9xf32>
    %361 = tpu.matmul %359, %360, %cst_236 {dimension_numbers = #tpu.dot_dimension_numbers<[1], [0], [0], [1], [0, 0, 1, 1], [], []>} : vector<1x32xf32>, vector<32x9xf32>, vector<1x9xf32> -> vector<1x9xf32>
    %c0_237 = arith.constant 0 : index
    %c0_238 = arith.constant 0 : index
    %362 = vector.load %arg11[%c0_237, %c0_238] : memref<1x9xf32, #tpu.memory_space<vmem>>, vector<1x9xf32>
    %363 = arith.addf %361, %362 : vector<1x9xf32>
    %c0_239 = arith.constant 0 : index
    %c0_240 = arith.constant 0 : index
    %c0_241 = arith.constant 0 : index
    %364 = vector.load %arg12[%c0_239, %c0_240, %c0_241] : memref<1x1x9xf32, #tpu.memory_space<vmem>>, vector<1x1x9xf32>
    %365 = vector.shape_cast %364 : vector<1x1x9xf32> to vector<1x9xf32>
    %366 = vector.shape_cast %363 : vector<1x9xf32> to vector<1x1x9xf32>
    tpu.vector_store %arg12[%c0_239, %c0_240, %c0_241], %366 {strides = array<i32>} : memref<1x1x9xf32, #tpu.memory_space<vmem>>, vector<1x1x9xf32>,
    return
  }
  func.func @transform_0(%arg0: i32) -> (i32, i32, i32) {
    %c0_i32 = arith.constant 0 : i32
    %c0_i32_0 = arith.constant 0 : i32
    %c0_i32_1 = arith.constant 0 : i32
    return %arg0, %c0_i32, %c0_i32_0 : i32, i32, i32
  }
  func.func @transform_1(%arg0: i32) -> (i32, i32) {
    %c0_i32 = arith.constant 0 : i32
    %c0_i32_0 = arith.constant 0 : i32
    %c0_i32_1 = arith.constant 0 : i32
    return %c0_i32, %c0_i32_0 : i32, i32
  }
  func.func @transform_2(%arg0: i32) -> (i32, i32) {
    %c0_i32 = arith.constant 0 : i32
    %c0_i32_0 = arith.constant 0 : i32
    %c0_i32_1 = arith.constant 0 : i32
    return %c0_i32, %c0_i32_0 : i32, i32
  }
  func.func @transform_3(%arg0: i32) -> (i32, i32) {
    %c0_i32 = arith.constant 0 : i32
    %c0_i32_0 = arith.constant 0 : i32
    %c0_i32_1 = arith.constant 0 : i32
    return %c0_i32, %c0_i32_0 : i32, i32
  }
  func.func @transform_4(%arg0: i32) -> (i32, i32) {
    %c0_i32 = arith.constant 0 : i32
    %c0_i32_0 = arith.constant 0 : i32
    %c0_i32_1 = arith.constant 0 : i32
    return %c0_i32, %c0_i32_0 : i32, i32
  }
  func.func @transform_5(%arg0: i32) -> (i32, i32) {
    %c0_i32 = arith.constant 0 : i32
    %c0_i32_0 = arith.constant 0 : i32
    %c0_i32_1 = arith.constant 0 : i32
    return %c0_i32, %c0_i32_0 : i32, i32
  }
  func.func @transform_6(%arg0: i32) -> (i32, i32) {
    %c0_i32 = arith.constant 0 : i32
    %c0_i32_0 = arith.constant 0 : i32
    %c0_i32_1 = arith.constant 0 : i32
    return %c0_i32, %c0_i32_0 : i32, i32
  }
  func.func @transform_7(%arg0: i32) -> (i32, i32) {
    %c0_i32 = arith.constant 0 : i32
    %c0_i32_0 = arith.constant 0 : i32
    %c0_i32_1 = arith.constant 0 : i32
    return %c0_i32, %c0_i32_0 : i32, i32
  }
  func.func @transform_8(%arg0: i32) -> (i32, i32) {
    %c0_i32 = arith.constant 0 : i32
    %c0_i32_0 = arith.constant 0 : i32
    %c0_i32_1 = arith.constant 0 : i32
    return %c0_i32, %c0_i32_0 : i32, i32
  }
  func.func @transform_9(%arg0: i32) -> (i32, i32) {
    %c0_i32 = arith.constant 0 : i32
    %c0_i32_0 = arith.constant 0 : i32
    %c0_i32_1 = arith.constant 0 : i32
    return %c0_i32, %c0_i32_0 : i32, i32
  }
  func.func @transform_10(%arg0: i32) -> (i32, i32) {
    %c0_i32 = arith.constant 0 : i32
    %c0_i32_0 = arith.constant 0 : i32
    %c0_i32_1 = arith.constant 0 : i32
    return %c0_i32, %c0_i32_0 : i32, i32
  }
  func.func @transform_11(%arg0: i32) -> (i32, i32, i32) {
    %c0_i32 = arith.constant 0 : i32
    %c0_i32_0 = arith.constant 0 : i32
    %c0_i32_1 = arith.constant 0 : i32
    return %arg0, %c0_i32, %c0_i32_0 : i32, i32, i32
  }
}

</mosaic_0001>

<llo_original>
// kernel: cnn_model_overfit_forward.1
$region0: #{cnn_model_overfit_forward.1}
  #allocation0 [shape = 'u32[]', space=smem, size = 0x4, offset = 0x4, fixed_abs, tag = 'smem constant byte address 0x4 - core index']
  #allocation1 [shape = 'u32[72,128]{1,0:T(1,128)}', space=vmem, size = 0x9000, scoped, tag = 'internal scratch']
  #allocation2 [shape = 'f32[196,5]{1,0:T(8,128)}', space=vmem, size = 0x19000, scoped, tag = 'scratch operand']
  #allocation3 [shape = 'f32[166,16]{1,0:T(8,128)}', space=vmem, size = 0x15000, scoped, tag = 'scratch operand']
  #allocation4 [shape = 'f32[64,16]{1,0:T(8,128)}', space=vmem, size = 0x8000, scoped, tag = 'scratch operand']
  #allocation5 [shape = 'f32[46,32]{1,0:T(8,128)}', space=vmem, size = 0x6000, scoped, tag = 'scratch operand']
  %s0 = inlined_call_operand.vmem [shape: f32[2,144,5], index: 0, kind: input, shape index: {}]
  %s1 = inlined_call_operand.vmem [shape: f32[45,16], index: 1, kind: input, shape index: {}]
  %s2 = inlined_call_operand.vmem [shape: f32[1,16], index: 2, kind: input, shape index: {}]
  %s3 = inlined_call_operand.vmem [shape: f32[144,32], index: 3, kind: input, shape index: {}]
  %s4 = inlined_call_operand.vmem [shape: f32[1,32], index: 4, kind: input, shape index: {}]
  %s5 = inlined_call_operand.vmem [shape: f32[288,64], index: 5, kind: input, shape index: {}]
  %s6 = inlined_call_operand.vmem [shape: f32[1,64], index: 6, kind: input, shape index: {}]
  %s7 = inlined_call_operand.vmem [shape: f32[64,32], index: 7, kind: input, shape index: {}]
  %s8 = inlined_call_operand.vmem [shape: f32[1,32], index: 8, kind: input, shape index: {}]
  %s9 = inlined_call_operand.vmem [shape: f32[32,9], index: 9, kind: input, shape index: {}]
  %s10 = inlined_call_operand.vmem [shape: f32[1,9], index: 10, kind: input, shape index: {}]
  %s11 = inlined_call_operand.hbm [shape: f32[2,1,9], index: 11, kind: output, shape index: {}]
  %s12 = sld [smem:[#allocation0]]
  $region77: #{cnn_model_overfit_forward.1} parent=0
    _
  %s14 = ssub.s32 1, %s12
  %s15 = scalar_select 0, %s14, %s12
  $region1: #{cnn_model_overfit_forward.1} parent=0
    #allocation6 [shape = 'u8[1024]{0}', space=vmem, size = 0x400, scoped, tag = 'output window, operand 0']
    #allocation7 [shape = 's32[2]{0}', space=sflag, size = 0x8, scoped, tag = 'scoped memory for cnn_model_overfit_forward.1']
    %16 = vsyncpa [#allocation7], 0
    %s17 = scalar_lea.sflag [#allocation7], 1
    %18 = vsyncpa %s17, 0
    loop: start=0, step=1, limit=4
    $region2: #{cnn_model_overfit_forward.1} parent=1 // loop_pre_header
      _
    $region3: #{cnn_model_overfit_forward.1} parent=1 // loop_header
      %s20 = sphi 0, %s24
      %p21 = scmp.ge.s32.totalorder %s20, 4
      %s30 = sphi 0, %s32
      %s33 = sphi 0, %s30
      %s34 = sphi 0, %s33
      %s50 = sphi 0, %s34
      %s54 = sphi 0, %s54
      %s56 = sphi 0, %s54
      %s57 = sphi 0, %s56
      %s71 = sphi 0, %s57
      %s75 = sphi 0, %s75
      %s77 = sphi 0, %s75
      %s78 = sphi 0, %s77
      %s92 = sphi 0, %s78
      %s96 = sphi 0, %s96
      %s98 = sphi 0, %s96
      %s99 = sphi 0, %s98
      %s113 = sphi 0, %s99
      %s117 = sphi 0, %s117
      %s119 = sphi 0, %s117
      %s120 = sphi 0, %s119
      %s134 = sphi 0, %s120
      %s138 = sphi 0, %s138
      %s140 = sphi 0, %s138
      %s141 = sphi 0, %s140
      %s155 = sphi 0, %s141
      %s159 = sphi 0, %s159
      %s161 = sphi 0, %s159
      %s162 = sphi 0, %s161
      %s176 = sphi 0, %s162
      %s180 = sphi 0, %s180
      %s182 = sphi 0, %s180
      %s183 = sphi 0, %s182
      %s197 = sphi 0, %s183
      %s201 = sphi 0, %s201
      %s203 = sphi 0, %s201
      %s204 = sphi 0, %s203
      %s218 = sphi 0, %s204
      %s222 = sphi 0, %s222
      %s224 = sphi 0, %s222
      %s225 = sphi 0, %s224
      %s239 = sphi 0, %s225
      %s243 = sphi 0, %s243
      %s245 = sphi 0, %s243
      %s246 = sphi 0, %s245
      %s260 = sphi 0, %s246
      %s266 = sphi 0, %s268
      %s269 = sphi 0, %s266
      %s270 = sphi 0, %s269
      %s286 = sphi 0, %s270
    $region4: #{cnn_model_overfit_forward.1} parent=1 // loop_header_branch
      %23 = sbr.rel (%p21) target = $region8
    $region5: #{cnn_model_overfit_forward.1} parent=1 // loop_body
      %s25 = ssub.s32 %s20, 1
      %s26 = ssub.s32 %s20, 2
      %s27 = sadd.s32 %s20, 1
      %s28 = ssub.s32 %s20, %s27
      %p29 = scmp.eq.s32.totalorder %s28, 0
      %s31 = sadd.s32 %s30, 1
      %s32 = scalar_select %p29, %s30, %s31
      %p35 = pneg %p29
      %p36 = scmp.eq.s32.totalorder %s20, 1
      %p37 = por %p35, %p36
      %p38 = scmp.ne.s32.totalorder %s30, %s33
      %p39 = scmp.eq.s32.totalorder %s20, 0
      %p40 = por %p38, %p39
      %p41 = scmp.ne.s32.totalorder %s30, %s33
      %p42 = scmp.eq.s32.totalorder %s25, 1
      %p43 = por %p41, %p42
      %p44 = scmp.ne.s32.totalorder %s33, %s34
      %p45 = scmp.eq.s32.totalorder %s25, 0
      %p46 = por %p44, %p45
      %p47 = scmp.ne.s32.totalorder %s33, %s34
      %p48 = scmp.eq.s32.totalorder %s26, 1
      %p49 = por %p47, %p48
      %p51 = scmp.ne.s32.totalorder %s34, %s50
      %p52 = scmp.eq.s32.totalorder %s26, 0
      %p53 = por %p51, %p52
      %s55 = sadd.s32 %s54, 1
      %p58 = scmp.eq.s32.totalorder %s20, 1
      %p59 = scmp.ne.s32.totalorder %s54, %s56
      %p60 = scmp.eq.s32.totalorder %s20, 0
      %p61 = por %p59, %p60
      %p62 = scmp.ne.s32.totalorder %s54, %s56
      %p63 = scmp.eq.s32.totalorder %s25, 1
      %p64 = por %p62, %p63
      %p65 = scmp.ne.s32.totalorder %s56, %s57
      %p66 = scmp.eq.s32.totalorder %s25, 0
      %p67 = por %p65, %p66
      %p68 = scmp.ne.s32.totalorder %s56, %s57
      %p69 = scmp.eq.s32.totalorder %s26, 1
      %p70 = por %p68, %p69
      %p72 = scmp.ne.s32.totalorder %s57, %s71
      %p73 = scmp.eq.s32.totalorder %s26, 0
      %p74 = por %p72, %p73
      %s76 = sadd.s32 %s75, 1
      %p79 = scmp.eq.s32.totalorder %s20, 1
      %p80 = scmp.ne.s32.totalorder %s75, %s77
      %p81 = scmp.eq.s32.totalorder %s20, 0
      %p82 = por %p80, %p81
      %p83 = scmp.ne.s32.totalorder %s75, %s77
      %p84 = scmp.eq.s32.totalorder %s25, 1
      %p85 = por %p83, %p84
      %p86 = scmp.ne.s32.totalorder %s77, %s78
      %p87 = scmp.eq.s32.totalorder %s25, 0
      %p88 = por %p86, %p87
      %p89 = scmp.ne.s32.totalorder %s77, %s78
      %p90 = scmp.eq.s32.totalorder %s26, 1
      %p91 = por %p89, %p90
      %p93 = scmp.ne.s32.totalorder %s78, %s92
      %p94 = scmp.eq.s32.totalorder %s26, 0
      %p95 = por %p93, %p94
      %s97 = sadd.s32 %s96, 1
      %p100 = scmp.eq.s32.totalorder %s20, 1
      %p101 = scmp.ne.s32.totalorder %s96, %s98
      %p102 = scmp.eq.s32.totalorder %s20, 0
      %p103 = por %p101, %p102
      %p104 = scmp.ne.s32.totalorder %s96, %s98
      %p105 = scmp.eq.s32.totalorder %s25, 1
      %p106 = por %p104, %p105
      %p107 = scmp.ne.s32.totalorder %s98, %s99
      %p108 = scmp.eq.s32.totalorder %s25, 0
      %p109 = por %p107, %p108
      %p110 = scmp.ne.s32.totalorder %s98, %s99
      %p111 = scmp.eq.s32.totalorder %s26, 1
      %p112 = por %p110, %p111
      %p114 = scmp.ne.s32.totalorder %s99, %s113
      %p115 = scmp.eq.s32.totalorder %s26, 0
      %p116 = por %p114, %p115
      %s118 = sadd.s32 %s117, 1
      %p121 = scmp.eq.s32.totalorder %s20, 1
      %p122 = scmp.ne.s32.totalorder %s117, %s119
      %p123 = scmp.eq.s32.totalorder %s20, 0
      %p124 = por %p122, %p123
      %p125 = scmp.ne.s32.totalorder %s117, %s119
      %p126 = scmp.eq.s32.totalorder %s25, 1
      %p127 = por %p125, %p126
      %p128 = scmp.ne.s32.totalorder %s119, %s120
      %p129 = scmp.eq.s32.totalorder %s25, 0
      %p130 = por %p128, %p129
      %p131 = scmp.ne.s32.totalorder %s119, %s120
      %p132 = scmp.eq.s32.totalorder %s26, 1
      %p133 = por %p131, %p132
      %p135 = scmp.ne.s32.totalorder %s120, %s134
      %p136 = scmp.eq.s32.totalorder %s26, 0
      %p137 = por %p135, %p136
      %s139 = sadd.s32 %s138, 1
      %p142 = scmp.eq.s32.totalorder %s20, 1
      %p143 = scmp.ne.s32.totalorder %s138, %s140
      %p144 = scmp.eq.s32.totalorder %s20, 0
      %p145 = por %p143, %p144
      %p146 = scmp.ne.s32.totalorder %s138, %s140
      %p147 = scmp.eq.s32.totalorder %s25, 1
      %p148 = por %p146, %p147
      %p149 = scmp.ne.s32.totalorder %s140, %s141
      %p150 = scmp.eq.s32.totalorder %s25, 0
      %p151 = por %p149, %p150
      %p152 = scmp.ne.s32.totalorder %s140, %s141
      %p153 = scmp.eq.s32.totalorder %s26, 1
      %p154 = por %p152, %p153
      %p156 = scmp.ne.s32.totalorder %s141, %s155
      %p157 = scmp.eq.s32.totalorder %s26, 0
      %p158 = por %p156, %p157
      %s160 = sadd.s32 %s159, 1
      %p163 = scmp.eq.s32.totalorder %s20, 1
      %p164 = scmp.ne.s32.totalorder %s159, %s161
      %p165 = scmp.eq.s32.totalorder %s20, 0
      %p166 = por %p164, %p165
      %p167 = scmp.ne.s32.totalorder %s159, %s161
      %p168 = scmp.eq.s32.totalorder %s25, 1
      %p169 = por %p167, %p168
      %p170 = scmp.ne.s32.totalorder %s161, %s162
      %p171 = scmp.eq.s32.totalorder %s25, 0
      %p172 = por %p170, %p171
      %p173 = scmp.ne.s32.totalorder %s161, %s162
      %p174 = scmp.eq.s32.totalorder %s26, 1
      %p175 = por %p173, %p174
      %p177 = scmp.ne.s32.totalorder %s162, %s176
      %p178 = scmp.eq.s32.totalorder %s26, 0
      %p179 = por %p177, %p178
      %s181 = sadd.s32 %s180, 1
      %p184 = scmp.eq.s32.totalorder %s20, 1
      %p185 = scmp.ne.s32.totalorder %s180, %s182
      %p186 = scmp.eq.s32.totalorder %s20, 0
      %p187 = por %p185, %p186
      %p188 = scmp.ne.s32.totalorder %s180, %s182
      %p189 = scmp.eq.s32.totalorder %s25, 1
      %p190 = por %p188, %p189
      %p191 = scmp.ne.s32.totalorder %s182, %s183
      %p192 = scmp.eq.s32.totalorder %s25, 0
      %p193 = por %p191, %p192
      %p194 = scmp.ne.s32.totalorder %s182, %s183
      %p195 = scmp.eq.s32.totalorder %s26, 1
      %p196 = por %p194, %p195
      %p198 = scmp.ne.s32.totalorder %s183, %s197
      %p199 = scmp.eq.s32.totalorder %s26, 0
      %p200 = por %p198, %p199
      %s202 = sadd.s32 %s201, 1
      %p205 = scmp.eq.s32.totalorder %s20, 1
      %p206 = scmp.ne.s32.totalorder %s201, %s203
      %p207 = scmp.eq.s32.totalorder %s20, 0
      %p208 = por %p206, %p207
      %p209 = scmp.ne.s32.totalorder %s201, %s203
      %p210 = scmp.eq.s32.totalorder %s25, 1
      %p211 = por %p209, %p210
      %p212 = scmp.ne.s32.totalorder %s203, %s204
      %p213 = scmp.eq.s32.totalorder %s25, 0
      %p214 = por %p212, %p213
      %p215 = scmp.ne.s32.totalorder %s203, %s204
      %p216 = scmp.eq.s32.totalorder %s26, 1
      %p217 = por %p215, %p216
      %p219 = scmp.ne.s32.totalorder %s204, %s218
      %p220 = scmp.eq.s32.totalorder %s26, 0
      %p221 = por %p219, %p220
      %s223 = sadd.s32 %s222, 1
      %p226 = scmp.eq.s32.totalorder %s20, 1
      %p227 = scmp.ne.s32.totalorder %s222, %s224
      %p228 = scmp.eq.s32.totalorder %s20, 0
      %p229 = por %p227, %p228
      %p230 = scmp.ne.s32.totalorder %s222, %s224
      %p231 = scmp.eq.s32.totalorder %s25, 1
      %p232 = por %p230, %p231
      %p233 = scmp.ne.s32.totalorder %s224, %s225
      %p234 = scmp.eq.s32.totalorder %s25, 0
      %p235 = por %p233, %p234
      %p236 = scmp.ne.s32.totalorder %s224, %s225
      %p237 = scmp.eq.s32.totalorder %s26, 1
      %p238 = por %p236, %p237
      %p240 = scmp.ne.s32.totalorder %s225, %s239
      %p241 = scmp.eq.s32.totalorder %s26, 0
      %p242 = por %p240, %p241
      %s244 = sadd.s32 %s243, 1
      %p247 = scmp.eq.s32.totalorder %s20, 1
      %p248 = scmp.ne.s32.totalorder %s243, %s245
      %p249 = scmp.eq.s32.totalorder %s20, 0
      %p250 = por %p248, %p249
      %p251 = scmp.ne.s32.totalorder %s243, %s245
      %p252 = scmp.eq.s32.totalorder %s25, 1
      %p253 = por %p251, %p252
      %p254 = scmp.ne.s32.totalorder %s245, %s246
      %p255 = scmp.eq.s32.totalorder %s25, 0
      %p256 = por %p254, %p255
      %p257 = scmp.ne.s32.totalorder %s245, %s246
      %p258 = scmp.eq.s32.totalorder %s26, 1
      %p259 = por %p257, %p258
      %p261 = scmp.ne.s32.totalorder %s246, %s260
      %p262 = scmp.eq.s32.totalorder %s26, 0
      %p263 = por %p261, %p262
      %s264 = ssub.s32 %s20, %s27
      %p265 = scmp.eq.s32.totalorder %s264, 0
      %s267 = sadd.s32 %s266, 1
      %s268 = scalar_select %p265, %s266, %s267
      %p271 = pneg %p265
      %p272 = scmp.eq.s32.totalorder %s20, 1
      %p273 = por %p271, %p272
      %p274 = scmp.ne.s32.totalorder %s266, %s269
      %p275 = scmp.eq.s32.totalorder %s20, 0
      %p276 = por %p274, %p275
      %p277 = scmp.ne.s32.totalorder %s266, %s269
      %p278 = scmp.eq.s32.totalorder %s25, 1
      %p279 = por %p277, %p278
      %p280 = scmp.ne.s32.totalorder %s269, %s270
      %p281 = scmp.eq.s32.totalorder %s25, 0
      %p282 = por %p280, %p281
      %p283 = scmp.ne.s32.totalorder %s269, %s270
      %p284 = scmp.eq.s32.totalorder %s26, 1
      %p285 = por %p283, %p284
      %p287 = scmp.ne.s32.totalorder %s270, %s286
      %p288 = scmp.eq.s32.totalorder %s26, 0
      %p289 = por %p287, %p288
      %p290 = scmp.le.s32.totalorder 1, %s20
      %p291 = scmp.lt.s32.totalorder %s20, 3
      %p292 = pnand %p290, %p291
      %p293 = pneg %p292
      // Predicated region
      $region9: #{cnn_model_overfit_forward.1} parent=5 // pred_check
        _
      $region10: #{cnn_model_overfit_forward.1} parent=5 // pred_check_branch
        %295 = sbr.rel (%p292) target = $region12
      $region11: #{cnn_model_overfit_forward.1} parent=5 // pred_region
        %s296 = ssub.s32 %s20, 1
        // Predicated region
        $region13: #{cnn_model_overfit_forward.1} parent=11 // pred_check
          %p297 = pneg %p67
        $region14: #{cnn_model_overfit_forward.1} parent=11 // pred_check_branch
          %299 = sbr.rel (%p297) target = $region16
        $region15: #{cnn_model_overfit_forward.1} parent=11 // pred_region
          _
        $region16: #{cnn_model_overfit_forward.1} parent=11 // pred_fallthru
          _
        // Predicated region
        $region17: #{cnn_model_overfit_forward.1} parent=11 // pred_check
          %p300 = pneg %p88
        $region18: #{cnn_model_overfit_forward.1} parent=11 // pred_check_branch
          %302 = sbr.rel (%p300) target = $region20
        $region19: #{cnn_model_overfit_forward.1} parent=11 // pred_region
          _
        $region20: #{cnn_model_overfit_forward.1} parent=11 // pred_fallthru
          _
        // Predicated region
        $region21: #{cnn_model_overfit_forward.1} parent=11 // pred_check
          %p303 = pneg %p109
        $region22: #{cnn_model_overfit_forward.1} parent=11 // pred_check_branch
          %305 = sbr.rel (%p303) target = $region24
        $region23: #{cnn_model_overfit_forward.1} parent=11 // pred_region
          _
        $region24: #{cnn_model_overfit_forward.1} parent=11 // pred_fallthru
          _
        // Predicated region
        $region25: #{cnn_model_overfit_forward.1} parent=11 // pred_check
          %p306 = pneg %p130
        $region26: #{cnn_model_overfit_forward.1} parent=11 // pred_check_branch
          %308 = sbr.rel (%p306) target = $region28
        $region27: #{cnn_model_overfit_forward.1} parent=11 // pred_region
          _
        $region28: #{cnn_model_overfit_forward.1} parent=11 // pred_fallthru
          _
        // Predicated region
        $region29: #{cnn_model_overfit_forward.1} parent=11 // pred_check
          %p309 = pneg %p151
        $region30: #{cnn_model_overfit_forward.1} parent=11 // pred_check_branch
          %311 = sbr.rel (%p309) target = $region32
        $region31: #{cnn_model_overfit_forward.1} parent=11 // pred_region
          _
        $region32: #{cnn_model_overfit_forward.1} parent=11 // pred_fallthru
          _
        // Predicated region
        $region33: #{cnn_model_overfit_forward.1} parent=11 // pred_check
          %p312 = pneg %p172
        $region34: #{cnn_model_overfit_forward.1} parent=11 // pred_check_branch
          %314 = sbr.rel (%p312) target = $region36
        $region35: #{cnn_model_overfit_forward.1} parent=11 // pred_region
          _
        $region36: #{cnn_model_overfit_forward.1} parent=11 // pred_fallthru
          _
        // Predicated region
        $region37: #{cnn_model_overfit_forward.1} parent=11 // pred_check
          %p315 = pneg %p193
        $region38: #{cnn_model_overfit_forward.1} parent=11 // pred_check_branch
          %317 = sbr.rel (%p315) target = $region40
        $region39: #{cnn_model_overfit_forward.1} parent=11 // pred_region
          _
        $region40: #{cnn_model_overfit_forward.1} parent=11 // pred_fallthru
          _
        // Predicated region
        $region41: #{cnn_model_overfit_forward.1} parent=11 // pred_check
          %p318 = pneg %p214
        $region42: #{cnn_model_overfit_forward.1} parent=11 // pred_check_branch
          %320 = sbr.rel (%p318) target = $region44
        $region43: #{cnn_model_overfit_forward.1} parent=11 // pred_region
          _
        $region44: #{cnn_model_overfit_forward.1} parent=11 // pred_fallthru
          _
        // Predicated region
        $region45: #{cnn_model_overfit_forward.1} parent=11 // pred_check
          %p321 = pneg %p235
        $region46: #{cnn_model_overfit_forward.1} parent=11 // pred_check_branch
          %323 = sbr.rel (%p321) target = $region48
        $region47: #{cnn_model_overfit_forward.1} parent=11 // pred_region
          _
        $region48: #{cnn_model_overfit_forward.1} parent=11 // pred_fallthru
          _
        // Predicated region
        $region49: #{cnn_model_overfit_forward.1} parent=11 // pred_check
          %p324 = pneg %p256
        $region50: #{cnn_model_overfit_forward.1} parent=11 // pred_check_branch
          %326 = sbr.rel (%p324) target = $region52
        $region51: #{cnn_model_overfit_forward.1} parent=11 // pred_region
          _
        $region52: #{cnn_model_overfit_forward.1} parent=11 // pred_fallthru
          _
      $region12: #{cnn_model_overfit_forward.1} parent=5 // pred_fallthru
        _
      %p327 = scmp.lt.s32.totalorder %s20, 2
      // Predicated region
      $region53: #{cnn_model_overfit_forward.1} parent=5 // pred_check
        %p328 = pneg %p327
      $region54: #{cnn_model_overfit_forward.1} parent=5 // pred_check_branch
        %330 = sbr.rel (%p328) target = $region56
      $region55: #{cnn_model_overfit_forward.1} parent=5 // pred_region
        // Predicated region
        $region57: #{cnn_model_overfit_forward.1} parent=55 // pred_check
          %p331 = pneg %p40
        $region58: #{cnn_model_overfit_forward.1} parent=55 // pred_check_branch
          %333 = sbr.rel (%p331) target = $region60
        $region59: #{cnn_model_overfit_forward.1} parent=55 // pred_region
          %p334 = scmp.lt.s32.totalorder %s20, 1
          %s335 = scalar_select %p334, %s20, 1
          %s336 = smul.addr %s335, 18
          %s337 = smul.addr %s336, 8
          %s338 = scalar_lea.vmem %s0, %s337
        $region60: #{cnn_model_overfit_forward.1} parent=55 // pred_fallthru
          _
      $region56: #{cnn_model_overfit_forward.1} parent=5 // pred_fallthru
        _
      %p339 = scmp.le.s32.totalorder 1, %s20
      %p340 = scmp.lt.s32.totalorder %s20, 3
      %p341 = pnand %p339, %p340
      %p342 = pneg %p341
      // Predicated region
      $region61: #{cnn_model_overfit_forward.1} parent=5 // pred_check
        _
      $region62: #{cnn_model_overfit_forward.1} parent=5 // pred_check_branch
        %344 = sbr.rel (%p341) target = $region64
      $region63: #{cnn_model_overfit_forward.1} parent=5 // pred_region
        %s345 = ssub.s32 %s20, 1
        %p346 = scmp.lt.s32.totalorder %s25, 1
        %s347 = scalar_select %p346, %s25, 1
        %s348 = smul.addr %s347, 18
        %s349 = smul.addr %s348, 8
        %s350 = scalar_lea.vmem %s0, %s349
        %p351 = pneg %p46
        %p352 = pneg %p43
        %p353 = pneg %p67
        %p354 = pneg %p64
        %p355 = pneg %p88
        %p356 = pneg %p85
        %p357 = pneg %p109
        %p358 = pneg %p106
        %p359 = pneg %p130
        %p360 = pneg %p127
        %p361 = pneg %p151
        %p362 = pneg %p148
        %p363 = pneg %p172
        %p364 = pneg %p169
        %p365 = pneg %p193
        %p366 = pneg %p190
        %p367 = pneg %p214
        %p368 = pneg %p211
        %p369 = pneg %p235
        %p370 = pneg %p232
        %p371 = pneg %p256
        %p372 = pneg %p253
        %p373 = pneg %p282
        %p374 = pneg %p279
        %s375 = sand.u32 %s269, 1
        %s376 = scalar_lea.sflag [#allocation7], %s375
        %s377 = sand.u32 %s269, 1
        %s378 = scalar_lea.vmem [#allocation6], %s377
        %p379 = scmp.lt.s32.totalorder %s25, 1
        %s380 = scalar_select %p379, %s25, 1
        %s381 = smul.addr %s380, 18
        %s382 = smul.addr %s381, 8
        %s383 = scalar_lea.vmem %s0, %s382
        %vm384 = vcmask 39936
        %385 = vst.msk [vmem:[#allocation2] sm:$0xff] %vm384, 0.0
        %386 = vst.msk [vmem:[#allocation2 + $0x8] sm:$0xff] %vm384, 0.0
        %387 = vst.msk [vmem:[#allocation2 + $0x10] sm:$0xff] %vm384, 0.0
        %388 = vst.msk [vmem:[#allocation2 + $0x18] sm:$0xff] %vm384, 0.0
        %389 = vst.msk [vmem:[#allocation2 + $0x20] sm:$0xff] %vm384, 0.0
        %390 = vst.msk [vmem:[#allocation2 + $0x28] sm:$0xff] %vm384, 0.0
        %391 = vst.msk [vmem:[#allocation2 + $0x30] sm:$0xff] %vm384, 0.0
        %392 = vst.msk [vmem:[#allocation2 + $0x38] sm:$0xff] %vm384, 0.0
        %393 = vst.msk [vmem:[#allocation2 + $0x40] sm:$0xff] %vm384, 0.0
        %394 = vst.msk [vmem:[#allocation2 + $0x48] sm:$0xff] %vm384, 0.0
        %395 = vst.msk [vmem:[#allocation2 + $0x50] sm:$0xff] %vm384, 0.0
        %396 = vst.msk [vmem:[#allocation2 + $0x58] sm:$0xff] %vm384, 0.0
        %397 = vst.msk [vmem:[#allocation2 + $0x60] sm:$0xff] %vm384, 0.0
        %398 = vst.msk [vmem:[#allocation2 + $0x68] sm:$0xff] %vm384, 0.0
        %399 = vst.msk [vmem:[#allocation2 + $0x70] sm:$0xff] %vm384, 0.0
        %400 = vst.msk [vmem:[#allocation2 + $0x78] sm:$0xff] %vm384, 0.0
        %401 = vst.msk [vmem:[#allocation2 + $0x80] sm:$0xff] %vm384, 0.0
        %402 = vst.msk [vmem:[#allocation2 + $0x88] sm:$0xff] %vm384, 0.0
        %403 = vst.msk [vmem:[#allocation2 + $0x90] sm:$0xff] %vm384, 0.0
        %404 = vst.msk [vmem:[#allocation2 + $0x98] sm:$0xff] %vm384, 0.0
        %405 = vst.msk [vmem:[#allocation2 + $0xa0] sm:$0xff] %vm384, 0.0
        %406 = vst.msk [vmem:[#allocation2 + $0xa8] sm:$0xff] %vm384, 0.0
        %407 = vst.msk [vmem:[#allocation2 + $0xb0] sm:$0xff] %vm384, 0.0
        %408 = vst.msk [vmem:[#allocation2 + $0xb8] sm:$0xff] %vm384, 0.0
        %vm409 = vcmask 35840
        %410 = vst.msk [vmem:[#allocation2 + $0xc0] sm:$0xf] %vm409, 0.0
        %vm411 = vcmask 130048
        %412 = vst.msk [vmem:[#allocation4] sm:$0xff] %vm411, 0.0
        %413 = vst.msk [vmem:[#allocation4 + $0x8] sm:$0xff] %vm411, 0.0
        %414 = vst.msk [vmem:[#allocation4 + $0x10] sm:$0xff] %vm411, 0.0
        %415 = vst.msk [vmem:[#allocation4 + $0x18] sm:$0xff] %vm411, 0.0
        %416 = vst.msk [vmem:[#allocation4 + $0x20] sm:$0xff] %vm411, 0.0
        %417 = vst.msk [vmem:[#allocation4 + $0x28] sm:$0xff] %vm411, 0.0
        %418 = vst.msk [vmem:[#allocation4 + $0x30] sm:$0xff] %vm411, 0.0
        %419 = vst.msk [vmem:[#allocation4 + $0x38] sm:$0xff] %vm411, 0.0
        %v420 = vld [vmem:[%s383] sm:$0xff]
        %v421 = vld [vmem:[%s383 + $0x8] sm:$0xf]
        %422 = vst.msk [vmem:[#allocation2 + $0xf] sm:$0xff] %vm384, %v420
        %423 = vst.msk [vmem:[#allocation2 + $0x17] sm:$0xf] %vm409, %v421
        %v424 = vld [vmem:[%s383 + $0xc] sm:$0xff]
        %v425 = vld [vmem:[%s383 + $0x14] sm:$0xf]
        %426 = vst.msk [vmem:[#allocation2 + $0x1d] sm:$0xff] %vm384, %v424
        %427 = vst.msk [vmem:[#allocation2 + $0x25] sm:$0xf] %vm409, %v425
        %v428 = vld [vmem:[%s383 + $0x18] sm:$0xff]
        %v429 = vld [vmem:[%s383 + $0x20] sm:$0xf]
        %430 = vst.msk [vmem:[#allocation2 + $0x2b] sm:$0xff] %vm384, %v428
        %431 = vst.msk [vmem:[#allocation2 + $0x33] sm:$0xf] %vm409, %v429
        %v432 = vld [vmem:[%s383 + $0x24] sm:$0xff]
        %v433 = vld [vmem:[%s383 + $0x2c] sm:$0xf]
        %434 = vst.msk [vmem:[#allocation2 + $0x39] sm:$0xff] %vm384, %v432
        %435 = vst.msk [vmem:[#allocation2 + $0x41] sm:$0xf] %vm409, %v433
        %v436 = vld [vmem:[%s383 + $0x30] sm:$0xff]
        %v437 = vld [vmem:[%s383 + $0x38] sm:$0xf]
        %438 = vst.msk [vmem:[#allocation2 + $0x47] sm:$0xff] %vm384, %v436
        %439 = vst.msk [vmem:[#allocation2 + $0x4f] sm:$0xf] %vm409, %v437
        %v440 = vld [vmem:[%s383 + $0x3c] sm:$0xff]
        %v441 = vld [vmem:[%s383 + $0x44] sm:$0xf]
        %442 = vst.msk [vmem:[#allocation2 + $0x55] sm:$0xff] %vm384, %v440
        %443 = vst.msk [vmem:[#allocation2 + $0x5d] sm:$0xf] %vm409, %v441
        %v444 = vld [vmem:[%s383 + $0x48] sm:$0xff]
        %v445 = vld [vmem:[%s383 + $0x50] sm:$0xf]
        %446 = vst.msk [vmem:[#allocation2 + $0x63] sm:$0xff] %vm384, %v444
        %447 = vst.msk [vmem:[#allocation2 + $0x6b] sm:$0xf] %vm409, %v445
        %v448 = vld [vmem:[%s383 + $0x54] sm:$0xff]
        %v449 = vld [vmem:[%s383 + $0x5c] sm:$0xf]
        %450 = vst.msk [vmem:[#allocation2 + $0x71] sm:$0xff] %vm384, %v448
        %451 = vst.msk [vmem:[#allocation2 + $0x79] sm:$0xf] %vm409, %v449
        %v452 = vld [vmem:[%s383 + $0x60] sm:$0xff]
        %v453 = vld [vmem:[%s383 + $0x68] sm:$0xf]
        %454 = vst.msk [vmem:[#allocation2 + $0x7f] sm:$0xff] %vm384, %v452
        %455 = vst.msk [vmem:[#allocation2 + $0x87] sm:$0xf] %vm409, %v453
        %v456 = vld [vmem:[%s383 + $0x6c] sm:$0xff]
        %v457 = vld [vmem:[%s383 + $0x74] sm:$0xf]
        %458 = vst.msk [vmem:[#allocation2 + $0x8d] sm:$0xff] %vm384, %v456
        %459 = vst.msk [vmem:[#allocation2 + $0x95] sm:$0xf] %vm409, %v457
        %v460 = vld [vmem:[%s383 + $0x78] sm:$0xff]
        %v461 = vld [vmem:[%s383 + $0x80] sm:$0xf]
        %462 = vst.msk [vmem:[#allocation2 + $0x9b] sm:$0xff] %vm384, %v460
        %463 = vst.msk [vmem:[#allocation2 + $0xa3] sm:$0xf] %vm409, %v461
        %v464 = vld [vmem:[%s383 + $0x84] sm:$0xff]
        %v465 = vld [vmem:[%s383 + $0x8c] sm:$0xf]
        %466 = vst.msk [vmem:[#allocation2 + $0xa9] sm:$0xff] %vm384, %v464
        %467 = vst.msk [vmem:[#allocation2 + $0xb1] sm:$0xf] %vm409, %v465
        %v468 = vld [vmem:[#allocation2] sm:$0xff]
        %v469 = vld [vmem:[#allocation2 + $0x8] sm:$0xff]
        %v470 = vld [vmem:[#allocation2 + $0x10] sm:$0xff]
        %v471 = vld [vmem:[#allocation2 + $0x18] sm:$0xff]
        %v472 = vld [vmem:[#allocation2 + $0x20] sm:$0xff]
        %v473 = vld [vmem:[#allocation2 + $0x28] sm:$0xff]
        %v474 = vld [vmem:[#allocation2 + $0x30] sm:$0xff]
        %v475 = vld [vmem:[#allocation2 + $0x38] sm:$0xff]
        %v476 = vld [vmem:[#allocation2 + $0x40] sm:$0xff]
        %v477 = vld [vmem:[#allocation2 + $0x48] sm:$0xff]
        %v478 = vld [vmem:[#allocation2 + $0x50] sm:$0xff]
        %v479 = vld [vmem:[#allocation2 + $0x58] sm:$0xff]
        %v480 = vld [vmem:[#allocation2 + $0x60] sm:$0xff]
        %v481 = vld [vmem:[#allocation2 + $0x68] sm:$0xff]
        %v482 = vld [vmem:[#allocation2 + $0x70] sm:$0xff]
        %v483 = vld [vmem:[#allocation2 + $0x78] sm:$0xff]
        %v484 = vld [vmem:[#allocation2 + $0x80] sm:$0xff]
        %v485 = vld [vmem:[#allocation2 + $0x88] sm:$0xff]
        %v486 = vld [vmem:[#allocation2 + $0x90] sm:$0xff]
        %v487 = vld [vmem:[#allocation2 + $0x98] sm:$0xff]
        %v488 = vld [vmem:[#allocation2 + $0xa0] sm:$0x3f]
        %v489 = vld [vmem:[%s1] sm:$0x1f]
        %v490 = vld [vmem:[#allocation2 + $0x1] sm:$0xff]
        %v491 = vld [vmem:[#allocation2 + $0x9] sm:$0xff]
        %v492 = vld [vmem:[#allocation2 + $0x11] sm:$0xff]
        %v493 = vld [vmem:[#allocation2 + $0x19] sm:$0xff]
        %v494 = vld [vmem:[#allocation2 + $0x21] sm:$0xff]
        %v495 = vld [vmem:[#allocation2 + $0x29] sm:$0xff]
        %v496 = vld [vmem:[#allocation2 + $0x31] sm:$0xff]
        %v497 = vld [vmem:[#allocation2 + $0x39] sm:$0xff]
        %v498 = vld [vmem:[#allocation2 + $0x41] sm:$0xff]
        %v499 = vld [vmem:[#allocation2 + $0x49] sm:$0xff]
        %v500 = vld [vmem:[#allocation2 + $0x51] sm:$0xff]
        %v501 = vld [vmem:[#allocation2 + $0x59] sm:$0xff]
        %v502 = vld [vmem:[#allocation2 + $0x61] sm:$0xff]
        %v503 = vld [vmem:[#allocation2 + $0x69] sm:$0xff]
        %v504 = vld [vmem:[#allocation2 + $0x71] sm:$0xff]
        %v505 = vld [vmem:[#allocation2 + $0x79] sm:$0xff]
        %v506 = vld [vmem:[#allocation2 + $0x81] sm:$0xff]
        %v507 = vld [vmem:[#allocation2 + $0x89] sm:$0xff]
        %v508 = vld [vmem:[#allocation2 + $0x91] sm:$0xff]
        %v509 = vld [vmem:[#allocation2 + $0x99] sm:$0xff]
        %v510 = vld [vmem:[#allocation2 + $0xa1] sm:$0x3f]
        %v511 = vld [vmem:[%s1 + $0x5] sm:$0x1f]
        %v513 = vsel %vm384, %v490, 0
        %v516 = vsel %vm384, %v491, 0
        %v519 = vsel %vm384, %v492, 0
        %v522 = vsel %vm384, %v493, 0
        %v525 = vsel %vm384, %v494, 0
        %v528 = vsel %vm384, %v495, 0
        %v531 = vsel %vm384, %v496, 0
        %v534 = vsel %vm384, %v497, 0
        %v537 = vsel %vm384, %v498, 0
        %v540 = vsel %vm384, %v499, 0
        %v543 = vsel %vm384, %v500, 0
        %v546 = vsel %vm384, %v501, 0
        %v549 = vsel %vm384, %v502, 0
        %v552 = vsel %vm384, %v503, 0
        %v555 = vsel %vm384, %v504, 0
        %v558 = vsel %vm384, %v505, 0
        %v561 = vsel %vm384, %v506, 0
        %v564 = vsel %vm384, %v507, 0
        %v567 = vsel %vm384, %v508, 0
        %v570 = vsel %vm384, %v509, 0
        %v573 = vsel %vm384, %v510, 0
        %vm575 = vcmask 1044480
        %v577 = vsel %vm575, %v511, 0
        %579 = vmatpush.msra.mxu0 0.0
        %580 = vmatpush.msra.mxu0 0.0
        %581 = vmatpush.msra.mxu0 0.0
        %582 = vmatpush.msra.mxu0 0.0
        %583 = vmatpush.msra.mxu0 0.0
        %584 = vmatpush.msra.mxu0 0.0
        %585 = vmatpush.msra.mxu0 0.0
        %586 = vmatpush.msra.mxu0 0.0
        %587 = vmatpush.msra.mxu0 0.0
        %588 = vmatpush.msra.mxu0 0.0
        %589 = vmatpush.msra.mxu0 0.0
        %590 = vmatpush.msra.mxu0 0.0
        %591 = vmatpush.msra.mxu0 0.0
        %592 = vmatpush.msra.mxu0 0.0
        %593 = vmatpush.msra.mxu0 0.0
        %594 = vmatpush.msra.mxu0 %v577
        %595 = vmatmul.f32.gmra.mxu0 %v513
        %v596 = vpop.f32.mrf.mxu0
        %v597 = vadd.f32 0.0, %v596
        %598 = vmatmul.f32.gmra.mxu0 %v516
        %v599 = vpop.f32.mrf.mxu0
        %v600 = vadd.f32 0.0, %v599
        %601 = vmatmul.f32.gmra.mxu0 %v519
        %v602 = vpop.f32.mrf.mxu0
        %v603 = vadd.f32 0.0, %v602
        %604 = vmatmul.f32.gmra.mxu0 %v522
        %v605 = vpop.f32.mrf.mxu0
        %v606 = vadd.f32 0.0, %v605
        %607 = vmatmul.f32.gmra.mxu0 %v525
        %v608 = vpop.f32.mrf.mxu0
        %v609 = vadd.f32 0.0, %v608
        %610 = vmatmul.f32.gmra.mxu0 %v528
        %v611 = vpop.f32.mrf.mxu0
        %v612 = vadd.f32 0.0, %v611
        %613 = vmatmul.f32.gmra.mxu0 %v531
        %v614 = vpop.f32.mrf.mxu0
        %v615 = vadd.f32 0.0, %v614
        %616 = vmatmul.f32.gmra.mxu0 %v534
        %v617 = vpop.f32.mrf.mxu0
        %v618 = vadd.f32 0.0, %v617
        %619 = vmatmul.f32.gmra.mxu0 %v537
        %v620 = vpop.f32.mrf.mxu0
        %v621 = vadd.f32 0.0, %v620
        %622 = vmatmul.f32.gmra.mxu0 %v540
        %v623 = vpop.f32.mrf.mxu0
        %v624 = vadd.f32 0.0, %v623
        %625 = vmatmul.f32.gmra.mxu0 %v543
        %v626 = vpop.f32.mrf.mxu0
        %v627 = vadd.f32 0.0, %v626
        %628 = vmatmul.f32.gmra.mxu0 %v546
        %v629 = vpop.f32.mrf.mxu0
        %v630 = vadd.f32 0.0, %v629
        %631 = vmatmul.f32.gmra.mxu0 %v549
        %v632 = vpop.f32.mrf.mxu0
        %v633 = vadd.f32 0.0, %v632
        %634 = vmatmul.f32.gmra.mxu0 %v552
        %v635 = vpop.f32.mrf.mxu0
        %v636 = vadd.f32 0.0, %v635
        %637 = vmatmul.f32.gmra.mxu0 %v555
        %v638 = vpop.f32.mrf.mxu0
        %v639 = vadd.f32 0.0, %v638
        %640 = vmatmul.f32.gmra.mxu0 %v558
        %v641 = vpop.f32.mrf.mxu0
        %v642 = vadd.f32 0.0, %v641
        %643 = vmatmul.f32.gmra.mxu0 %v561
        %v644 = vpop.f32.mrf.mxu0
        %v645 = vadd.f32 0.0, %v644
        %646 = vmatmul.f32.gmra.mxu0 %v564
        %v647 = vpop.f32.mrf.mxu0
        %v648 = vadd.f32 0.0, %v647
        %649 = vmatmul.f32.gmra.mxu0 %v567
        %v650 = vpop.f32.mrf.mxu0
        %v651 = vadd.f32 0.0, %v650
        %652 = vmatmul.f32.gmra.mxu0 %v570
        %v653 = vpop.f32.mrf.mxu0
        %v654 = vadd.f32 0.0, %v653
        %655 = vmatmul.f32.gmra.mxu0 %v573
        %v656 = vpop.f32.mrf.mxu0
        %v657 = vadd.f32 0.0, %v656
        %658 = vdwg.mxu0
        %v660 = vsel %vm384, %v468, 0
        %v663 = vsel %vm384, %v469, 0
        %v666 = vsel %vm384, %v470, 0
        %v669 = vsel %vm384, %v471, 0
        %v672 = vsel %vm384, %v472, 0
        %v675 = vsel %vm384, %v473, 0
        %v678 = vsel %vm384, %v474, 0
        %v681 = vsel %vm384, %v475, 0
        %v684 = vsel %vm384, %v476, 0
        %v687 = vsel %vm384, %v477, 0
        %v690 = vsel %vm384, %v478, 0
        %v693 = vsel %vm384, %v479, 0
        %v696 = vsel %vm384, %v480, 0
        %v699 = vsel %vm384, %v481, 0
        %v702 = vsel %vm384, %v482, 0
        %v705 = vsel %vm384, %v483, 0
        %v708 = vsel %vm384, %v484, 0
        %v711 = vsel %vm384, %v485, 0
        %v714 = vsel %vm384, %v486, 0
        %v717 = vsel %vm384, %v487, 0
        %v720 = vsel %vm384, %v488, 0
        %v723 = vsel %vm575, %v489, 0
        %725 = vmatpush.msra.mxu0 0.0
        %726 = vmatpush.msra.mxu0 0.0
        %727 = vmatpush.msra.mxu0 0.0
        %728 = vmatpush.msra.mxu0 0.0
        %729 = vmatpush.msra.mxu0 0.0
        %730 = vmatpush.msra.mxu0 0.0
        %731 = vmatpush.msra.mxu0 0.0
        %732 = vmatpush.msra.mxu0 0.0
        %733 = vmatpush.msra.mxu0 0.0
        %734 = vmatpush.msra.mxu0 0.0
        %735 = vmatpush.msra.mxu0 0.0
        %736 = vmatpush.msra.mxu0 0.0
        %737 = vmatpush.msra.mxu0 0.0
        %738 = vmatpush.msra.mxu0 0.0
        %739 = vmatpush.msra.mxu0 0.0
        %740 = vmatpush.msra.mxu0 %v723
        %741 = vmatmul.f32.gmra.mxu0 %v660
        %v742 = vpop.f32.mrf.mxu0
        %v743 = vadd.f32 %v597, %v742
        %744 = vmatmul.f32.gmra.mxu0 %v663
        %v745 = vpop.f32.mrf.mxu0
        %v746 = vadd.f32 %v600, %v745
        %747 = vmatmul.f32.gmra.mxu0 %v666
        %v748 = vpop.f32.mrf.mxu0
        %v749 = vadd.f32 %v603, %v748
        %750 = vmatmul.f32.gmra.mxu0 %v669
        %v751 = vpop.f32.mrf.mxu0
        %v752 = vadd.f32 %v606, %v751
        %753 = vmatmul.f32.gmra.mxu0 %v672
        %v754 = vpop.f32.mrf.mxu0
        %v755 = vadd.f32 %v609, %v754
        %756 = vmatmul.f32.gmra.mxu0 %v675
        %v757 = vpop.f32.mrf.mxu0
        %v758 = vadd.f32 %v612, %v757
        %759 = vmatmul.f32.gmra.mxu0 %v678
        %v760 = vpop.f32.mrf.mxu0
        %v761 = vadd.f32 %v615, %v760
        %762 = vmatmul.f32.gmra.mxu0 %v681
        %v763 = vpop.f32.mrf.mxu0
        %v764 = vadd.f32 %v618, %v763
        %765 = vmatmul.f32.gmra.mxu0 %v684
        %v766 = vpop.f32.mrf.mxu0
        %v767 = vadd.f32 %v621, %v766
        %768 = vmatmul.f32.gmra.mxu0 %v687
        %v769 = vpop.f32.mrf.mxu0
        %v770 = vadd.f32 %v624, %v769
        %771 = vmatmul.f32.gmra.mxu0 %v690
        %v772 = vpop.f32.mrf.mxu0
        %v773 = vadd.f32 %v627, %v772
        %774 = vmatmul.f32.gmra.mxu0 %v693
        %v775 = vpop.f32.mrf.mxu0
        %v776 = vadd.f32 %v630, %v775
        %777 = vmatmul.f32.gmra.mxu0 %v696
        %v778 = vpop.f32.mrf.mxu0
        %v779 = vadd.f32 %v633, %v778
        %780 = vmatmul.f32.gmra.mxu0 %v699
        %v781 = vpop.f32.mrf.mxu0
        %v782 = vadd.f32 %v636, %v781
        %783 = vmatmul.f32.gmra.mxu0 %v702
        %v784 = vpop.f32.mrf.mxu0
        %v785 = vadd.f32 %v639, %v784
        %786 = vmatmul.f32.gmra.mxu0 %v705
        %v787 = vpop.f32.mrf.mxu0
        %v788 = vadd.f32 %v642, %v787
        %789 = vmatmul.f32.gmra.mxu0 %v708
        %v790 = vpop.f32.mrf.mxu0
        %v791 = vadd.f32 %v645, %v790
        %792 = vmatmul.f32.gmra.mxu0 %v711
        %v793 = vpop.f32.mrf.mxu0
        %v794 = vadd.f32 %v648, %v793
        %795 = vmatmul.f32.gmra.mxu0 %v714
        %v796 = vpop.f32.mrf.mxu0
        %v797 = vadd.f32 %v651, %v796
        %798 = vmatmul.f32.gmra.mxu0 %v717
        %v799 = vpop.f32.mrf.mxu0
        %v800 = vadd.f32 %v654, %v799
        %801 = vmatmul.f32.gmra.mxu0 %v720
        %v802 = vpop.f32.mrf.mxu0
        %v803 = vadd.f32 %v657, %v802
        %804 = vdwg.mxu0
        %v805 = vld [vmem:[#allocation2 + $0x2] sm:$0xff]
        %v806 = vld [vmem:[#allocation2 + $0xa] sm:$0xff]
        %v807 = vld [vmem:[#allocation2 + $0x12] sm:$0xff]
        %v808 = vld [vmem:[#allocation2 + $0x1a] sm:$0xff]
        %v809 = vld [vmem:[#allocation2 + $0x22] sm:$0xff]
        %v810 = vld [vmem:[#allocation2 + $0x2a] sm:$0xff]
        %v811 = vld [vmem:[#allocation2 + $0x32] sm:$0xff]
        %v812 = vld [vmem:[#allocation2 + $0x3a] sm:$0xff]
        %v813 = vld [vmem:[#allocation2 + $0x42] sm:$0xff]
        %v814 = vld [vmem:[#allocation2 + $0x4a] sm:$0xff]
        %v815 = vld [vmem:[#allocation2 + $0x52] sm:$0xff]
        %v816 = vld [vmem:[#allocation2 + $0x5a] sm:$0xff]
        %v817 = vld [vmem:[#allocation2 + $0x62] sm:$0xff]
        %v818 = vld [vmem:[#allocation2 + $0x6a] sm:$0xff]
        %v819 = vld [vmem:[#allocation2 + $0x72] sm:$0xff]
        %v820 = vld [vmem:[#allocation2 + $0x7a] sm:$0xff]
        %v821 = vld [vmem:[#allocation2 + $0x82] sm:$0xff]
        %v822 = vld [vmem:[#allocation2 + $0x8a] sm:$0xff]
        %v823 = vld [vmem:[#allocation2 + $0x92] sm:$0xff]
        %v824 = vld [vmem:[#allocation2 + $0x9a] sm:$0xff]
        %v825 = vld [vmem:[#allocation2 + $0xa2] sm:$0x3f]
        %v826 = vld [vmem:[%s1 + $0xa] sm:$0x1f]
        %v828 = vsel %vm384, %v805, 0
        %v831 = vsel %vm384, %v806, 0
        %v834 = vsel %vm384, %v807, 0
        %v837 = vsel %vm384, %v808, 0
        %v840 = vsel %vm384, %v809, 0
        %v843 = vsel %vm384, %v810, 0
        %v846 = vsel %vm384, %v811, 0
        %v849 = vsel %vm384, %v812, 0
        %v852 = vsel %vm384, %v813, 0
        %v855 = vsel %vm384, %v814, 0
        %v858 = vsel %vm384, %v815, 0
        %v861 = vsel %vm384, %v816, 0
        %v864 = vsel %vm384, %v817, 0
        %v867 = vsel %vm384, %v818, 0
        %v870 = vsel %vm384, %v819, 0
        %v873 = vsel %vm384, %v820, 0
        %v876 = vsel %vm384, %v821, 0
        %v879 = vsel %vm384, %v822, 0
        %v882 = vsel %vm384, %v823, 0
        %v885 = vsel %vm384, %v824, 0
        %v888 = vsel %vm384, %v825, 0
        %v891 = vsel %vm575, %v826, 0
        %893 = vmatpush.msra.mxu0 0.0
        %894 = vmatpush.msra.mxu0 0.0
        %895 = vmatpush.msra.mxu0 0.0
        %896 = vmatpush.msra.mxu0 0.0
        %897 = vmatpush.msra.mxu0 0.0
        %898 = vmatpush.msra.mxu0 0.0
        %899 = vmatpush.msra.mxu0 0.0
        %900 = vmatpush.msra.mxu0 0.0
        %901 = vmatpush.msra.mxu0 0.0
        %902 = vmatpush.msra.mxu0 0.0
        %903 = vmatpush.msra.mxu0 0.0
        %904 = vmatpush.msra.mxu0 0.0
        %905 = vmatpush.msra.mxu0 0.0
        %906 = vmatpush.msra.mxu0 0.0
        %907 = vmatpush.msra.mxu0 0.0
        %908 = vmatpush.msra.mxu0 %v891
        %909 = vmatmul.f32.gmra.mxu0 %v828
        %v910 = vpop.f32.mrf.mxu0
        %v911 = vadd.f32 0.0, %v910
        %912 = vmatmul.f32.gmra.mxu0 %v831
        %v913 = vpop.f32.mrf.mxu0
        %v914 = vadd.f32 0.0, %v913
        %915 = vmatmul.f32.gmra.mxu0 %v834
        %v916 = vpop.f32.mrf.mxu0
        %v917 = vadd.f32 0.0, %v916
        %918 = vmatmul.f32.gmra.mxu0 %v837
        %v919 = vpop.f32.mrf.mxu0
        %v920 = vadd.f32 0.0, %v919
        %921 = vmatmul.f32.gmra.mxu0 %v840
        %v922 = vpop.f32.mrf.mxu0
        %v923 = vadd.f32 0.0, %v922
        %924 = vmatmul.f32.gmra.mxu0 %v843
        %v925 = vpop.f32.mrf.mxu0
        %v926 = vadd.f32 0.0, %v925
        %927 = vmatmul.f32.gmra.mxu0 %v846
        %v928 = vpop.f32.mrf.mxu0
        %v929 = vadd.f32 0.0, %v928
        %930 = vmatmul.f32.gmra.mxu0 %v849
        %v931 = vpop.f32.mrf.mxu0
        %v932 = vadd.f32 0.0, %v931
        %933 = vmatmul.f32.gmra.mxu0 %v852
        %v934 = vpop.f32.mrf.mxu0
        %v935 = vadd.f32 0.0, %v934
        %936 = vmatmul.f32.gmra.mxu0 %v855
        %v937 = vpop.f32.mrf.mxu0
        %v938 = vadd.f32 0.0, %v937
        %939 = vmatmul.f32.gmra.mxu0 %v858
        %v940 = vpop.f32.mrf.mxu0
        %v941 = vadd.f32 0.0, %v940
        %942 = vmatmul.f32.gmra.mxu0 %v861
        %v943 = vpop.f32.mrf.mxu0
        %v944 = vadd.f32 0.0, %v943
        %945 = vmatmul.f32.gmra.mxu0 %v864
        %v946 = vpop.f32.mrf.mxu0
        %v947 = vadd.f32 0.0, %v946
        %948 = vmatmul.f32.gmra.mxu0 %v867
        %v949 = vpop.f32.mrf.mxu0
        %v950 = vadd.f32 0.0, %v949
        %951 = vmatmul.f32.gmra.mxu0 %v870
        %v952 = vpop.f32.mrf.mxu0
        %v953 = vadd.f32 0.0, %v952
        %954 = vmatmul.f32.gmra.mxu0 %v873
        %v955 = vpop.f32.mrf.mxu0
        %v956 = vadd.f32 0.0, %v955
        %957 = vmatmul.f32.gmra.mxu0 %v876
        %v958 = vpop.f32.mrf.mxu0
        %v959 = vadd.f32 0.0, %v958
        %960 = vmatmul.f32.gmra.mxu0 %v879
        %v961 = vpop.f32.mrf.mxu0
        %v962 = vadd.f32 0.0, %v961
        %963 = vmatmul.f32.gmra.mxu0 %v882
        %v964 = vpop.f32.mrf.mxu0
        %v965 = vadd.f32 0.0, %v964
        %966 = vmatmul.f32.gmra.mxu0 %v885
        %v967 = vpop.f32.mrf.mxu0
        %v968 = vadd.f32 0.0, %v967
        %969 = vmatmul.f32.gmra.mxu0 %v888
        %v970 = vpop.f32.mrf.mxu0
        %v971 = vadd.f32 0.0, %v970
        %972 = vdwg.mxu0
        %v973 = vadd.f32 %v743, %v911
        %v974 = vadd.f32 %v746, %v914
        %v975 = vadd.f32 %v749, %v917
        %v976 = vadd.f32 %v752, %v920
        %v977 = vadd.f32 %v755, %v923
        %v978 = vadd.f32 %v758, %v926
        %v979 = vadd.f32 %v761, %v929
        %v980 = vadd.f32 %v764, %v932
        %v981 = vadd.f32 %v767, %v935
        %v982 = vadd.f32 %v770, %v938
        %v983 = vadd.f32 %v773, %v941
        %v984 = vadd.f32 %v776, %v944
        %v985 = vadd.f32 %v779, %v947
        %v986 = vadd.f32 %v782, %v950
        %v987 = vadd.f32 %v785, %v953
        %v988 = vadd.f32 %v788, %v956
        %v989 = vadd.f32 %v791, %v959
        %v990 = vadd.f32 %v794, %v962
        %v991 = vadd.f32 %v797, %v965
        %v992 = vadd.f32 %v800, %v968
        %v993 = vadd.f32 %v803, %v971
        %v994 = vld [vmem:[#allocation2 + $0xe] sm:$0xff]
        %v995 = vld [vmem:[#allocation2 + $0x16] sm:$0xff]
        %v996 = vld [vmem:[#allocation2 + $0x1e] sm:$0xff]
        %v997 = vld [vmem:[#allocation2 + $0x26] sm:$0xff]
        %v998 = vld [vmem:[#allocation2 + $0x2e] sm:$0xff]
        %v999 = vld [vmem:[#allocation2 + $0x36] sm:$0xff]
        %v1000 = vld [vmem:[#allocation2 + $0x3e] sm:$0xff]
        %v1001 = vld [vmem:[#allocation2 + $0x46] sm:$0xff]
        %v1002 = vld [vmem:[#allocation2 + $0x4e] sm:$0xff]
        %v1003 = vld [vmem:[#allocation2 + $0x56] sm:$0xff]
        %v1004 = vld [vmem:[#allocation2 + $0x5e] sm:$0xff]
        %v1005 = vld [vmem:[#allocation2 + $0x66] sm:$0xff]
        %v1006 = vld [vmem:[#allocation2 + $0x6e] sm:$0xff]
        %v1007 = vld [vmem:[#allocation2 + $0x76] sm:$0xff]
        %v1008 = vld [vmem:[#allocation2 + $0x7e] sm:$0xff]
        %v1009 = vld [vmem:[#allocation2 + $0x86] sm:$0xff]
        %v1010 = vld [vmem:[#allocation2 + $0x8e] sm:$0xff]
        %v1011 = vld [vmem:[#allocation2 + $0x96] sm:$0xff]
        %v1012 = vld [vmem:[#allocation2 + $0x9e] sm:$0xff]
        %v1013 = vld [vmem:[#allocation2 + $0xa6] sm:$0xff]
        %v1014 = vld [vmem:[#allocation2 + $0xae] sm:$0x3f]
        %v1015 = vld [vmem:[%s1 + $0xf] sm:$0x1f]
        %v1017 = vsel %vm384, %v994, 0
        %v1020 = vsel %vm384, %v995, 0
        %v1023 = vsel %vm384, %v996, 0
        %v1026 = vsel %vm384, %v997, 0
        %v1029 = vsel %vm384, %v998, 0
        %v1032 = vsel %vm384, %v999, 0
        %v1035 = vsel %vm384, %v1000, 0
        %v1038 = vsel %vm384, %v1001, 0
        %v1041 = vsel %vm384, %v1002, 0
        %v1044 = vsel %vm384, %v1003, 0
        %v1047 = vsel %vm384, %v1004, 0
        %v1050 = vsel %vm384, %v1005, 0
        %v1053 = vsel %vm384, %v1006, 0
        %v1056 = vsel %vm384, %v1007, 0
        %v1059 = vsel %vm384, %v1008, 0
        %v1062 = vsel %vm384, %v1009, 0
        %v1065 = vsel %vm384, %v1010, 0
        %v1068 = vsel %vm384, %v1011, 0
        %v1071 = vsel %vm384, %v1012, 0
        %v1074 = vsel %vm384, %v1013, 0
        %v1077 = vsel %vm384, %v1014, 0
        %v1080 = vsel %vm575, %v1015, 0
        %1082 = vmatpush.msra.mxu0 0.0
        %1083 = vmatpush.msra.mxu0 0.0
        %1084 = vmatpush.msra.mxu0 0.0
        %1085 = vmatpush.msra.mxu0 0.0
        %1086 = vmatpush.msra.mxu0 0.0
        %1087 = vmatpush.msra.mxu0 0.0
        %1088 = vmatpush.msra.mxu0 0.0
        %1089 = vmatpush.msra.mxu0 0.0
        %1090 = vmatpush.msra.mxu0 0.0
        %1091 = vmatpush.msra.mxu0 0.0
        %1092 = vmatpush.msra.mxu0 0.0
        %1093 = vmatpush.msra.mxu0 0.0
        %1094 = vmatpush.msra.mxu0 0.0
        %1095 = vmatpush.msra.mxu0 0.0
        %1096 = vmatpush.msra.mxu0 0.0
        %1097 = vmatpush.msra.mxu0 %v1080
        %1098 = vmatmul.f32.gmra.mxu0 %v1017
        %v1099 = vpop.f32.mrf.mxu0
        %v1100 = vadd.f32 0.0, %v1099
        %1101 = vmatmul.f32.gmra.mxu0 %v1020
        %v1102 = vpop.f32.mrf.mxu0
        %v1103 = vadd.f32 0.0, %v1102
        %1104 = vmatmul.f32.gmra.mxu0 %v1023
        %v1105 = vpop.f32.mrf.mxu0
        %v1106 = vadd.f32 0.0, %v1105
        %1107 = vmatmul.f32.gmra.mxu0 %v1026
        %v1108 = vpop.f32.mrf.mxu0
        %v1109 = vadd.f32 0.0, %v1108
        %1110 = vmatmul.f32.gmra.mxu0 %v1029
        %v1111 = vpop.f32.mrf.mxu0
        %v1112 = vadd.f32 0.0, %v1111
        %1113 = vmatmul.f32.gmra.mxu0 %v1032
        %v1114 = vpop.f32.mrf.mxu0
        %v1115 = vadd.f32 0.0, %v1114
        %1116 = vmatmul.f32.gmra.mxu0 %v1035
        %v1117 = vpop.f32.mrf.mxu0
        %v1118 = vadd.f32 0.0, %v1117
        %1119 = vmatmul.f32.gmra.mxu0 %v1038
        %v1120 = vpop.f32.mrf.mxu0
        %v1121 = vadd.f32 0.0, %v1120
        %1122 = vmatmul.f32.gmra.mxu0 %v1041
        %v1123 = vpop.f32.mrf.mxu0
        %v1124 = vadd.f32 0.0, %v1123
        %1125 = vmatmul.f32.gmra.mxu0 %v1044
        %v1126 = vpop.f32.mrf.mxu0
        %v1127 = vadd.f32 0.0, %v1126
        %1128 = vmatmul.f32.gmra.mxu0 %v1047
        %v1129 = vpop.f32.mrf.mxu0
        %v1130 = vadd.f32 0.0, %v1129
        %1131 = vmatmul.f32.gmra.mxu0 %v1050
        %v1132 = vpop.f32.mrf.mxu0
        %v1133 = vadd.f32 0.0, %v1132
        %1134 = vmatmul.f32.gmra.mxu0 %v1053
        %v1135 = vpop.f32.mrf.mxu0
        %v1136 = vadd.f32 0.0, %v1135
        %1137 = vmatmul.f32.gmra.mxu0 %v1056
        %v1138 = vpop.f32.mrf.mxu0
        %v1139 = vadd.f32 0.0, %v1138
        %1140 = vmatmul.f32.gmra.mxu0 %v1059
        %v1141 = vpop.f32.mrf.mxu0
        %v1142 = vadd.f32 0.0, %v1141
        %1143 = vmatmul.f32.gmra.mxu0 %v1062
        %v1144 = vpop.f32.mrf.mxu0
        %v1145 = vadd.f32 0.0, %v1144
        %1146 = vmatmul.f32.gmra.mxu0 %v1065
        %v1147 = vpop.f32.mrf.mxu0
        %v1148 = vadd.f32 0.0, %v1147
        %1149 = vmatmul.f32.gmra.mxu0 %v1068
        %v1150 = vpop.f32.mrf.mxu0
        %v1151 = vadd.f32 0.0, %v1150
        %1152 = vmatmul.f32.gmra.mxu0 %v1071
        %v1153 = vpop.f32.mrf.mxu0
        %v1154 = vadd.f32 0.0, %v1153
        %1155 = vmatmul.f32.gmra.mxu0 %v1074
        %v1156 = vpop.f32.mrf.mxu0
        %v1157 = vadd.f32 0.0, %v1156
        %1158 = vmatmul.f32.gmra.mxu0 %v1077
        %v1159 = vpop.f32.mrf.mxu0
        %v1160 = vadd.f32 0.0, %v1159
        %1161 = vdwg.mxu0
        %v1162 = vadd.f32 %v973, %v1100
        %v1163 = vadd.f32 %v974, %v1103
        %v1164 = vadd.f32 %v975, %v1106
        %v1165 = vadd.f32 %v976, %v1109
        %v1166 = vadd.f32 %v977, %v1112
        %v1167 = vadd.f32 %v978, %v1115
        %v1168 = vadd.f32 %v979, %v1118
        %v1169 = vadd.f32 %v980, %v1121
        %v1170 = vadd.f32 %v981, %v1124
        %v1171 = vadd.f32 %v982, %v1127
        %v1172 = vadd.f32 %v983, %v1130
        %v1173 = vadd.f32 %v984, %v1133
        %v1174 = vadd.f32 %v985, %v1136
        %v1175 = vadd.f32 %v986, %v1139
        %v1176 = vadd.f32 %v987, %v1142
        %v1177 = vadd.f32 %v988, %v1145
        %v1178 = vadd.f32 %v989, %v1148
        %v1179 = vadd.f32 %v990, %v1151
        %v1180 = vadd.f32 %v991, %v1154
        %v1181 = vadd.f32 %v992, %v1157
        %v1182 = vadd.f32 %v993, %v1160
        %v1183 = vld [vmem:[#allocation2 + $0xf] sm:$0xff]
        %v1184 = vld [vmem:[#allocation2 + $0x17] sm:$0xff]
        %v1185 = vld [vmem:[#allocation2 + $0x1f] sm:$0xff]
        %v1186 = vld [vmem:[#allocation2 + $0x27] sm:$0xff]
        %v1187 = vld [vmem:[#allocation2 + $0x2f] sm:$0xff]
        %v1188 = vld [vmem:[#allocation2 + $0x37] sm:$0xff]
        %v1189 = vld [vmem:[#allocation2 + $0x3f] sm:$0xff]
        %v1190 = vld [vmem:[#allocation2 + $0x47] sm:$0xff]
        %v1191 = vld [vmem:[#allocation2 + $0x4f] sm:$0xff]
        %v1192 = vld [vmem:[#allocation2 + $0x57] sm:$0xff]
        %v1193 = vld [vmem:[#allocation2 + $0x5f] sm:$0xff]
        %v1194 = vld [vmem:[#allocation2 + $0x67] sm:$0xff]
        %v1195 = vld [vmem:[#allocation2 + $0x6f] sm:$0xff]
        %v1196 = vld [vmem:[#allocation2 + $0x77] sm:$0xff]
        %v1197 = vld [vmem:[#allocation2 + $0x7f] sm:$0xff]
        %v1198 = vld [vmem:[#allocation2 + $0x87] sm:$0xff]
        %v1199 = vld [vmem:[#allocation2 + $0x8f] sm:$0xff]
        %v1200 = vld [vmem:[#allocation2 + $0x97] sm:$0xff]
        %v1201 = vld [vmem:[#allocation2 + $0x9f] sm:$0xff]
        %v1202 = vld [vmem:[#allocation2 + $0xa7] sm:$0xff]
        %v1203 = vld [vmem:[#allocation2 + $0xaf] sm:$0x3f]
        %v1204 = vld [vmem:[%s1 + $0x14] sm:$0x1f]
        %v1206 = vsel %vm384, %v1183, 0
        %v1209 = vsel %vm384, %v1184, 0
        %v1212 = vsel %vm384, %v1185, 0
        %v1215 = vsel %vm384, %v1186, 0
        %v1218 = vsel %vm384, %v1187, 0
        %v1221 = vsel %vm384, %v1188, 0
        %v1224 = vsel %vm384, %v1189, 0
        %v1227 = vsel %vm384, %v1190, 0
        %v1230 = vsel %vm384, %v1191, 0
        %v1233 = vsel %vm384, %v1192, 0
        %v1236 = vsel %vm384, %v1193, 0
        %v1239 = vsel %vm384, %v1194, 0
        %v1242 = vsel %vm384, %v1195, 0
        %v1245 = vsel %vm384, %v1196, 0
        %v1248 = vsel %vm384, %v1197, 0
        %v1251 = vsel %vm384, %v1198, 0
        %v1254 = vsel %vm384, %v1199, 0
        %v1257 = vsel %vm384, %v1200, 0
        %v1260 = vsel %vm384, %v1201, 0
        %v1263 = vsel %vm384, %v1202, 0
        %v1266 = vsel %vm384, %v1203, 0
        %v1269 = vsel %vm575, %v1204, 0
        %1271 = vmatpush.msra.mxu0 0.0
        %1272 = vmatpush.msra.mxu0 0.0
        %1273 = vmatpush.msra.mxu0 0.0
        %1274 = vmatpush.msra.mxu0 0.0
        %1275 = vmatpush.msra.mxu0 0.0
        %1276 = vmatpush.msra.mxu0 0.0
        %1277 = vmatpush.msra.mxu0 0.0
        %1278 = vmatpush.msra.mxu0 0.0
        %1279 = vmatpush.msra.mxu0 0.0
        %1280 = vmatpush.msra.mxu0 0.0
        %1281 = vmatpush.msra.mxu0 0.0
        %1282 = vmatpush.msra.mxu0 0.0
        %1283 = vmatpush.msra.mxu0 0.0
        %1284 = vmatpush.msra.mxu0 0.0
        %1285 = vmatpush.msra.mxu0 0.0
        %1286 = vmatpush.msra.mxu0 %v1269
        %1287 = vmatmul.f32.gmra.mxu0 %v1206
        %v1288 = vpop.f32.mrf.mxu0
        %v1289 = vadd.f32 0.0, %v1288
        %1290 = vmatmul.f32.gmra.mxu0 %v1209
        %v1291 = vpop.f32.mrf.mxu0
        %v1292 = vadd.f32 0.0, %v1291
        %1293 = vmatmul.f32.gmra.mxu0 %v1212
        %v1294 = vpop.f32.mrf.mxu0
        %v1295 = vadd.f32 0.0, %v1294
        %1296 = vmatmul.f32.gmra.mxu0 %v1215
        %v1297 = vpop.f32.mrf.mxu0
        %v1298 = vadd.f32 0.0, %v1297
        %1299 = vmatmul.f32.gmra.mxu0 %v1218
        %v1300 = vpop.f32.mrf.mxu0
        %v1301 = vadd.f32 0.0, %v1300
        %1302 = vmatmul.f32.gmra.mxu0 %v1221
        %v1303 = vpop.f32.mrf.mxu0
        %v1304 = vadd.f32 0.0, %v1303
        %1305 = vmatmul.f32.gmra.mxu0 %v1224
        %v1306 = vpop.f32.mrf.mxu0
        %v1307 = vadd.f32 0.0, %v1306
        %1308 = vmatmul.f32.gmra.mxu0 %v1227
        %v1309 = vpop.f32.mrf.mxu0
        %v1310 = vadd.f32 0.0, %v1309
        %1311 = vmatmul.f32.gmra.mxu0 %v1230
        %v1312 = vpop.f32.mrf.mxu0
        %v1313 = vadd.f32 0.0, %v1312
        %1314 = vmatmul.f32.gmra.mxu0 %v1233
        %v1315 = vpop.f32.mrf.mxu0
        %v1316 = vadd.f32 0.0, %v1315
        %1317 = vmatmul.f32.gmra.mxu0 %v1236
        %v1318 = vpop.f32.mrf.mxu0
        %v1319 = vadd.f32 0.0, %v1318
        %1320 = vmatmul.f32.gmra.mxu0 %v1239
        %v1321 = vpop.f32.mrf.mxu0
        %v1322 = vadd.f32 0.0, %v1321
        %1323 = vmatmul.f32.gmra.mxu0 %v1242
        %v1324 = vpop.f32.mrf.mxu0
        %v1325 = vadd.f32 0.0, %v1324
        %1326 = vmatmul.f32.gmra.mxu0 %v1245
        %v1327 = vpop.f32.mrf.mxu0
        %v1328 = vadd.f32 0.0, %v1327
        %1329 = vmatmul.f32.gmra.mxu0 %v1248
        %v1330 = vpop.f32.mrf.mxu0
        %v1331 = vadd.f32 0.0, %v1330
        %1332 = vmatmul.f32.gmra.mxu0 %v1251
        %v1333 = vpop.f32.mrf.mxu0
        %v1334 = vadd.f32 0.0, %v1333
        %1335 = vmatmul.f32.gmra.mxu0 %v1254
        %v1336 = vpop.f32.mrf.mxu0
        %v1337 = vadd.f32 0.0, %v1336
        %1338 = vmatmul.f32.gmra.mxu0 %v1257
        %v1339 = vpop.f32.mrf.mxu0
        %v1340 = vadd.f32 0.0, %v1339
        %1341 = vmatmul.f32.gmra.mxu0 %v1260
        %v1342 = vpop.f32.mrf.mxu0
        %v1343 = vadd.f32 0.0, %v1342
        %1344 = vmatmul.f32.gmra.mxu0 %v1263
        %v1345 = vpop.f32.mrf.mxu0
        %v1346 = vadd.f32 0.0, %v1345
        %1347 = vmatmul.f32.gmra.mxu0 %v1266
        %v1348 = vpop.f32.mrf.mxu0
        %v1349 = vadd.f32 0.0, %v1348
        %1350 = vdwg.mxu0
        %v1351 = vadd.f32 %v1162, %v1289
        %v1352 = vadd.f32 %v1163, %v1292
        %v1353 = vadd.f32 %v1164, %v1295
        %v1354 = vadd.f32 %v1165, %v1298
        %v1355 = vadd.f32 %v1166, %v1301
        %v1356 = vadd.f32 %v1167, %v1304
        %v1357 = vadd.f32 %v1168, %v1307
        %v1358 = vadd.f32 %v1169, %v1310
        %v1359 = vadd.f32 %v1170, %v1313
        %v1360 = vadd.f32 %v1171, %v1316
        %v1361 = vadd.f32 %v1172, %v1319
        %v1362 = vadd.f32 %v1173, %v1322
        %v1363 = vadd.f32 %v1174, %v1325
        %v1364 = vadd.f32 %v1175, %v1328
        %v1365 = vadd.f32 %v1176, %v1331
        %v1366 = vadd.f32 %v1177, %v1334
        %v1367 = vadd.f32 %v1178, %v1337
        %v1368 = vadd.f32 %v1179, %v1340
        %v1369 = vadd.f32 %v1180, %v1343
        %v1370 = vadd.f32 %v1181, %v1346
        %v1371 = vadd.f32 %v1182, %v1349
        %v1372 = vld [vmem:[#allocation2 + $0x10] sm:$0xff]
        %v1373 = vld [vmem:[#allocation2 + $0x18] sm:$0xff]
        %v1374 = vld [vmem:[#allocation2 + $0x20] sm:$0xff]
        %v1375 = vld [vmem:[#allocation2 + $0x28] sm:$0xff]
        %v1376 = vld [vmem:[#allocation2 + $0x30] sm:$0xff]
        %v1377 = vld [vmem:[#allocation2 + $0x38] sm:$0xff]
        %v1378 = vld [vmem:[#allocation2 + $0x40] sm:$0xff]
        %v1379 = vld [vmem:[#allocation2 + $0x48] sm:$0xff]
        %v1380 = vld [vmem:[#allocation2 + $0x50] sm:$0xff]
        %v1381 = vld [vmem:[#allocation2 + $0x58] sm:$0xff]
        %v1382 = vld [vmem:[#allocation2 + $0x60] sm:$0xff]
        %v1383 = vld [vmem:[#allocation2 + $0x68] sm:$0xff]
        %v1384 = vld [vmem:[#allocation2 + $0x70] sm:$0xff]
        %v1385 = vld [vmem:[#allocation2 + $0x78] sm:$0xff]
        %v1386 = vld [vmem:[#allocation2 + $0x80] sm:$0xff]
        %v1387 = vld [vmem:[#allocation2 + $0x88] sm:$0xff]
        %v1388 = vld [vmem:[#allocation2 + $0x90] sm:$0xff]
        %v1389 = vld [vmem:[#allocation2 + $0x98] sm:$0xff]
        %v1390 = vld [vmem:[#allocation2 + $0xa0] sm:$0xff]
        %v1391 = vld [vmem:[#allocation2 + $0xa8] sm:$0xff]
        %v1392 = vld [vmem:[#allocation2 + $0xb0] sm:$0x3f]
        %v1393 = vld [vmem:[%s1 + $0x19] sm:$0x1f]
        %v1395 = vsel %vm384, %v1372, 0
        %v1398 = vsel %vm384, %v1373, 0
        %v1401 = vsel %vm384, %v1374, 0
        %v1404 = vsel %vm384, %v1375, 0
        %v1407 = vsel %vm384, %v1376, 0
        %v1410 = vsel %vm384, %v1377, 0
        %v1413 = vsel %vm384, %v1378, 0
        %v1416 = vsel %vm384, %v1379, 0
        %v1419 = vsel %vm384, %v1380, 0
        %v1422 = vsel %vm384, %v1381, 0
        %v1425 = vsel %vm384, %v1382, 0
        %v1428 = vsel %vm384, %v1383, 0
        %v1431 = vsel %vm384, %v1384, 0
        %v1434 = vsel %vm384, %v1385, 0
        %v1437 = vsel %vm384, %v1386, 0
        %v1440 = vsel %vm384, %v1387, 0
        %v1443 = vsel %vm384, %v1388, 0
        %v1446 = vsel %vm384, %v1389, 0
        %v1449 = vsel %vm384, %v1390, 0
        %v1452 = vsel %vm384, %v1391, 0
        %v1455 = vsel %vm384, %v1392, 0
        %v1458 = vsel %vm575, %v1393, 0
        %1460 = vmatpush.msra.mxu0 0.0
        %1461 = vmatpush.msra.mxu0 0.0
        %1462 = vmatpush.msra.mxu0 0.0
        %1463 = vmatpush.msra.mxu0 0.0
        %1464 = vmatpush.msra.mxu0 0.0
        %1465 = vmatpush.msra.mxu0 0.0
        %1466 = vmatpush.msra.mxu0 0.0
        %1467 = vmatpush.msra.mxu0 0.0
        %1468 = vmatpush.msra.mxu0 0.0
        %1469 = vmatpush.msra.mxu0 0.0
        %1470 = vmatpush.msra.mxu0 0.0
        %1471 = vmatpush.msra.mxu0 0.0
        %1472 = vmatpush.msra.mxu0 0.0
        %1473 = vmatpush.msra.mxu0 0.0
        %1474 = vmatpush.msra.mxu0 0.0
        %1475 = vmatpush.msra.mxu0 %v1458
        %1476 = vmatmul.f32.gmra.mxu0 %v1395
        %v1477 = vpop.f32.mrf.mxu0
        %v1478 = vadd.f32 0.0, %v1477
        %1479 = vmatmul.f32.gmra.mxu0 %v1398
        %v1480 = vpop.f32.mrf.mxu0
        %v1481 = vadd.f32 0.0, %v1480
        %1482 = vmatmul.f32.gmra.mxu0 %v1401
        %v1483 = vpop.f32.mrf.mxu0
        %v1484 = vadd.f32 0.0, %v1483
        %1485 = vmatmul.f32.gmra.mxu0 %v1404
        %v1486 = vpop.f32.mrf.mxu0
        %v1487 = vadd.f32 0.0, %v1486
        %1488 = vmatmul.f32.gmra.mxu0 %v1407
        %v1489 = vpop.f32.mrf.mxu0
        %v1490 = vadd.f32 0.0, %v1489
        %1491 = vmatmul.f32.gmra.mxu0 %v1410
        %v1492 = vpop.f32.mrf.mxu0
        %v1493 = vadd.f32 0.0, %v1492
        %1494 = vmatmul.f32.gmra.mxu0 %v1413
        %v1495 = vpop.f32.mrf.mxu0
        %v1496 = vadd.f32 0.0, %v1495
        %1497 = vmatmul.f32.gmra.mxu0 %v1416
        %v1498 = vpop.f32.mrf.mxu0
        %v1499 = vadd.f32 0.0, %v1498
        %1500 = vmatmul.f32.gmra.mxu0 %v1419
        %v1501 = vpop.f32.mrf.mxu0
        %v1502 = vadd.f32 0.0, %v1501
        %1503 = vmatmul.f32.gmra.mxu0 %v1422
        %v1504 = vpop.f32.mrf.mxu0
        %v1505 = vadd.f32 0.0, %v1504
        %1506 = vmatmul.f32.gmra.mxu0 %v1425
        %v1507 = vpop.f32.mrf.mxu0
        %v1508 = vadd.f32 0.0, %v1507
        %1509 = vmatmul.f32.gmra.mxu0 %v1428
        %v1510 = vpop.f32.mrf.mxu0
        %v1511 = vadd.f32 0.0, %v1510
        %1512 = vmatmul.f32.gmra.mxu0 %v1431
        %v1513 = vpop.f32.mrf.mxu0
        %v1514 = vadd.f32 0.0, %v1513
        %1515 = vmatmul.f32.gmra.mxu0 %v1434
        %v1516 = vpop.f32.mrf.mxu0
        %v1517 = vadd.f32 0.0, %v1516
        %1518 = vmatmul.f32.gmra.mxu0 %v1437
        %v1519 = vpop.f32.mrf.mxu0
        %v1520 = vadd.f32 0.0, %v1519
        %1521 = vmatmul.f32.gmra.mxu0 %v1440
        %v1522 = vpop.f32.mrf.mxu0
        %v1523 = vadd.f32 0.0, %v1522
        %1524 = vmatmul.f32.gmra.mxu0 %v1443
        %v1525 = vpop.f32.mrf.mxu0
        %v1526 = vadd.f32 0.0, %v1525
        %1527 = vmatmul.f32.gmra.mxu0 %v1446
        %v1528 = vpop.f32.mrf.mxu0
        %v1529 = vadd.f32 0.0, %v1528
        %1530 = vmatmul.f32.gmra.mxu0 %v1449
        %v1531 = vpop.f32.mrf.mxu0
        %v1532 = vadd.f32 0.0, %v1531
        %1533 = vmatmul.f32.gmra.mxu0 %v1452
        %v1534 = vpop.f32.mrf.mxu0
        %v1535 = vadd.f32 0.0, %v1534
        %1536 = vmatmul.f32.gmra.mxu0 %v1455
        %v1537 = vpop.f32.mrf.mxu0
        %v1538 = vadd.f32 0.0, %v1537
        %1539 = vdwg.mxu0
        %v1540 = vadd.f32 %v1351, %v1478
        %v1541 = vadd.f32 %v1352, %v1481
        %v1542 = vadd.f32 %v1353, %v1484
        %v1543 = vadd.f32 %v1354, %v1487
        %v1544 = vadd.f32 %v1355, %v1490
        %v1545 = vadd.f32 %v1356, %v1493
        %v1546 = vadd.f32 %v1357, %v1496
        %v1547 = vadd.f32 %v1358, %v1499
        %v1548 = vadd.f32 %v1359, %v1502
        %v1549 = vadd.f32 %v1360, %v1505
        %v1550 = vadd.f32 %v1361, %v1508
        %v1551 = vadd.f32 %v1362, %v1511
        %v1552 = vadd.f32 %v1363, %v1514
        %v1553 = vadd.f32 %v1364, %v1517
        %v1554 = vadd.f32 %v1365, %v1520
        %v1555 = vadd.f32 %v1366, %v1523
        %v1556 = vadd.f32 %v1367, %v1526
        %v1557 = vadd.f32 %v1368, %v1529
        %v1558 = vadd.f32 %v1369, %v1532
        %v1559 = vadd.f32 %v1370, %v1535
        %v1560 = vadd.f32 %v1371, %v1538
        %v1561 = vld [vmem:[#allocation2 + $0x1c] sm:$0xff]
        %v1562 = vld [vmem:[#allocation2 + $0x24] sm:$0xff]
        %v1563 = vld [vmem:[#allocation2 + $0x2c] sm:$0xff]
        %v1564 = vld [vmem:[#allocation2 + $0x34] sm:$0xff]
        %v1565 = vld [vmem:[#allocation2 + $0x3c] sm:$0xff]
        %v1566 = vld [vmem:[#allocation2 + $0x44] sm:$0xff]
        %v1567 = vld [vmem:[#allocation2 + $0x4c] sm:$0xff]
        %v1568 = vld [vmem:[#allocation2 + $0x54] sm:$0xff]
        %v1569 = vld [vmem:[#allocation2 + $0x5c] sm:$0xff]
        %v1570 = vld [vmem:[#allocation2 + $0x64] sm:$0xff]
        %v1571 = vld [vmem:[#allocation2 + $0x6c] sm:$0xff]
        %v1572 = vld [vmem:[#allocation2 + $0x74] sm:$0xff]
        %v1573 = vld [vmem:[#allocation2 + $0x7c] sm:$0xff]
        %v1574 = vld [vmem:[#allocation2 + $0x84] sm:$0xff]
        %v1575 = vld [vmem:[#allocation2 + $0x8c] sm:$0xff]
        %v1576 = vld [vmem:[#allocation2 + $0x94] sm:$0xff]
        %v1577 = vld [vmem:[#allocation2 + $0x9c] sm:$0xff]
        %v1578 = vld [vmem:[#allocation2 + $0xa4] sm:$0xff]
        %v1579 = vld [vmem:[#allocation2 + $0xac] sm:$0xff]
        %v1580 = vld [vmem:[#allocation2 + $0xb4] sm:$0xff]
        %v1581 = vld [vmem:[#allocation2 + $0xbc] sm:$0x3f]
        %v1582 = vld [vmem:[%s1 + $0x1e] sm:$0x1f]
        %v1584 = vsel %vm384, %v1561, 0
        %v1587 = vsel %vm384, %v1562, 0
        %v1590 = vsel %vm384, %v1563, 0
        %v1593 = vsel %vm384, %v1564, 0
        %v1596 = vsel %vm384, %v1565, 0
        %v1599 = vsel %vm384, %v1566, 0
        %v1602 = vsel %vm384, %v1567, 0
        %v1605 = vsel %vm384, %v1568, 0
        %v1608 = vsel %vm384, %v1569, 0
        %v1611 = vsel %vm384, %v1570, 0
        %v1614 = vsel %vm384, %v1571, 0
        %v1617 = vsel %vm384, %v1572, 0
        %v1620 = vsel %vm384, %v1573, 0
        %v1623 = vsel %vm384, %v1574, 0
        %v1626 = vsel %vm384, %v1575, 0
        %v1629 = vsel %vm384, %v1576, 0
        %v1632 = vsel %vm384, %v1577, 0
        %v1635 = vsel %vm384, %v1578, 0
        %v1638 = vsel %vm384, %v1579, 0
        %v1641 = vsel %vm384, %v1580, 0
        %v1644 = vsel %vm384, %v1581, 0
        %v1647 = vsel %vm575, %v1582, 0
        %1649 = vmatpush.msra.mxu0 0.0
        %1650 = vmatpush.msra.mxu0 0.0
        %1651 = vmatpush.msra.mxu0 0.0
        %1652 = vmatpush.msra.mxu0 0.0
        %1653 = vmatpush.msra.mxu0 0.0
        %1654 = vmatpush.msra.mxu0 0.0
        %1655 = vmatpush.msra.mxu0 0.0
        %1656 = vmatpush.msra.mxu0 0.0
        %1657 = vmatpush.msra.mxu0 0.0
        %1658 = vmatpush.msra.mxu0 0.0
        %1659 = vmatpush.msra.mxu0 0.0
        %1660 = vmatpush.msra.mxu0 0.0
        %1661 = vmatpush.msra.mxu0 0.0
        %1662 = vmatpush.msra.mxu0 0.0
        %1663 = vmatpush.msra.mxu0 0.0
        %1664 = vmatpush.msra.mxu0 %v1647
        %1665 = vmatmul.f32.gmra.mxu0 %v1584
        %v1666 = vpop.f32.mrf.mxu0
        %v1667 = vadd.f32 0.0, %v1666
        %1668 = vmatmul.f32.gmra.mxu0 %v1587
        %v1669 = vpop.f32.mrf.mxu0
        %v1670 = vadd.f32 0.0, %v1669
        %1671 = vmatmul.f32.gmra.mxu0 %v1590
        %v1672 = vpop.f32.mrf.mxu0
        %v1673 = vadd.f32 0.0, %v1672
        %1674 = vmatmul.f32.gmra.mxu0 %v1593
        %v1675 = vpop.f32.mrf.mxu0
        %v1676 = vadd.f32 0.0, %v1675
        %1677 = vmatmul.f32.gmra.mxu0 %v1596
        %v1678 = vpop.f32.mrf.mxu0
        %v1679 = vadd.f32 0.0, %v1678
        %1680 = vmatmul.f32.gmra.mxu0 %v1599
        %v1681 = vpop.f32.mrf.mxu0
        %v1682 = vadd.f32 0.0, %v1681
        %1683 = vmatmul.f32.gmra.mxu0 %v1602
        %v1684 = vpop.f32.mrf.mxu0
        %v1685 = vadd.f32 0.0, %v1684
        %1686 = vmatmul.f32.gmra.mxu0 %v1605
        %v1687 = vpop.f32.mrf.mxu0
        %v1688 = vadd.f32 0.0, %v1687
        %1689 = vmatmul.f32.gmra.mxu0 %v1608
        %v1690 = vpop.f32.mrf.mxu0
        %v1691 = vadd.f32 0.0, %v1690
        %1692 = vmatmul.f32.gmra.mxu0 %v1611
        %v1693 = vpop.f32.mrf.mxu0
        %v1694 = vadd.f32 0.0, %v1693
        %1695 = vmatmul.f32.gmra.mxu0 %v1614
        %v1696 = vpop.f32.mrf.mxu0
        %v1697 = vadd.f32 0.0, %v1696
        %1698 = vmatmul.f32.gmra.mxu0 %v1617
        %v1699 = vpop.f32.mrf.mxu0
        %v1700 = vadd.f32 0.0, %v1699
        %1701 = vmatmul.f32.gmra.mxu0 %v1620
        %v1702 = vpop.f32.mrf.mxu0
        %v1703 = vadd.f32 0.0, %v1702
        %1704 = vmatmul.f32.gmra.mxu0 %v1623
        %v1705 = vpop.f32.mrf.mxu0
        %v1706 = vadd.f32 0.0, %v1705
        %1707 = vmatmul.f32.gmra.mxu0 %v1626
        %v1708 = vpop.f32.mrf.mxu0
        %v1709 = vadd.f32 0.0, %v1708
        %1710 = vmatmul.f32.gmra.mxu0 %v1629
        %v1711 = vpop.f32.mrf.mxu0
        %v1712 = vadd.f32 0.0, %v1711
        %1713 = vmatmul.f32.gmra.mxu0 %v1632
        %v1714 = vpop.f32.mrf.mxu0
        %v1715 = vadd.f32 0.0, %v1714
        %1716 = vmatmul.f32.gmra.mxu0 %v1635
        %v1717 = vpop.f32.mrf.mxu0
        %v1718 = vadd.f32 0.0, %v1717
        %1719 = vmatmul.f32.gmra.mxu0 %v1638
        %v1720 = vpop.f32.mrf.mxu0
        %v1721 = vadd.f32 0.0, %v1720
        %1722 = vmatmul.f32.gmra.mxu0 %v1641
        %v1723 = vpop.f32.mrf.mxu0
        %v1724 = vadd.f32 0.0, %v1723
        %1725 = vmatmul.f32.gmra.mxu0 %v1644
        %v1726 = vpop.f32.mrf.mxu0
        %v1727 = vadd.f32 0.0, %v1726
        %1728 = vdwg.mxu0
        %v1729 = vadd.f32 %v1540, %v1667
        %v1730 = vadd.f32 %v1541, %v1670
        %v1731 = vadd.f32 %v1542, %v1673
        %v1732 = vadd.f32 %v1543, %v1676
        %v1733 = vadd.f32 %v1544, %v1679
        %v1734 = vadd.f32 %v1545, %v1682
        %v1735 = vadd.f32 %v1546, %v1685
        %v1736 = vadd.f32 %v1547, %v1688
        %v1737 = vadd.f32 %v1548, %v1691
        %v1738 = vadd.f32 %v1549, %v1694
        %v1739 = vadd.f32 %v1550, %v1697
        %v1740 = vadd.f32 %v1551, %v1700
        %v1741 = vadd.f32 %v1552, %v1703
        %v1742 = vadd.f32 %v1553, %v1706
        %v1743 = vadd.f32 %v1554, %v1709
        %v1744 = vadd.f32 %v1555, %v1712
        %v1745 = vadd.f32 %v1556, %v1715
        %v1746 = vadd.f32 %v1557, %v1718
        %v1747 = vadd.f32 %v1558, %v1721
        %v1748 = vadd.f32 %v1559, %v1724
        %v1749 = vadd.f32 %v1560, %v1727
        %v1750 = vld [vmem:[#allocation2 + $0x1d] sm:$0xff]
        %v1751 = vld [vmem:[#allocation2 + $0x25] sm:$0xff]
        %v1752 = vld [vmem:[#allocation2 + $0x2d] sm:$0xff]
        %v1753 = vld [vmem:[#allocation2 + $0x35] sm:$0xff]
        %v1754 = vld [vmem:[#allocation2 + $0x3d] sm:$0xff]
        %v1755 = vld [vmem:[#allocation2 + $0x45] sm:$0xff]
        %v1756 = vld [vmem:[#allocation2 + $0x4d] sm:$0xff]
        %v1757 = vld [vmem:[#allocation2 + $0x55] sm:$0xff]
        %v1758 = vld [vmem:[#allocation2 + $0x5d] sm:$0xff]
        %v1759 = vld [vmem:[#allocation2 + $0x65] sm:$0xff]
        %v1760 = vld [vmem:[#allocation2 + $0x6d] sm:$0xff]
        %v1761 = vld [vmem:[#allocation2 + $0x75] sm:$0xff]
        %v1762 = vld [vmem:[#allocation2 + $0x7d] sm:$0xff]
        %v1763 = vld [vmem:[#allocation2 + $0x85] sm:$0xff]
        %v1764 = vld [vmem:[#allocation2 + $0x8d] sm:$0xff]
        %v1765 = vld [vmem:[#allocation2 + $0x95] sm:$0xff]
        %v1766 = vld [vmem:[#allocation2 + $0x9d] sm:$0xff]
        %v1767 = vld [vmem:[#allocation2 + $0xa5] sm:$0xff]
        %v1768 = vld [vmem:[#allocation2 + $0xad] sm:$0xff]
        %v1769 = vld [vmem:[#allocation2 + $0xb5] sm:$0xff]
        %v1770 = vld [vmem:[#allocation2 + $0xbd] sm:$0x3f]
        %v1771 = vld [vmem:[%s1 + $0x23] sm:$0x1f]
        %v1773 = vsel %vm384, %v1750, 0
        %v1776 = vsel %vm384, %v1751, 0
        %v1779 = vsel %vm384, %v1752, 0
        %v1782 = vsel %vm384, %v1753, 0
        %v1785 = vsel %vm384, %v1754, 0
        %v1788 = vsel %vm384, %v1755, 0
        %v1791 = vsel %vm384, %v1756, 0
        %v1794 = vsel %vm384, %v1757, 0
        %v1797 = vsel %vm384, %v1758, 0
        %v1800 = vsel %vm384, %v1759, 0
        %v1803 = vsel %vm384, %v1760, 0
        %v1806 = vsel %vm384, %v1761, 0
        %v1809 = vsel %vm384, %v1762, 0
        %v1812 = vsel %vm384, %v1763, 0
        %v1815 = vsel %vm384, %v1764, 0
        %v1818 = vsel %vm384, %v1765, 0
        %v1821 = vsel %vm384, %v1766, 0
        %v1824 = vsel %vm384, %v1767, 0
        %v1827 = vsel %vm384, %v1768, 0
        %v1830 = vsel %vm384, %v1769, 0
        %v1833 = vsel %vm384, %v1770, 0
        %v1836 = vsel %vm575, %v1771, 0
        %1838 = vmatpush.msra.mxu0 0.0
        %1839 = vmatpush.msra.mxu0 0.0
        %1840 = vmatpush.msra.mxu0 0.0
        %1841 = vmatpush.msra.mxu0 0.0
        %1842 = vmatpush.msra.mxu0 0.0
        %1843 = vmatpush.msra.mxu0 0.0
        %1844 = vmatpush.msra.mxu0 0.0
        %1845 = vmatpush.msra.mxu0 0.0
        %1846 = vmatpush.msra.mxu0 0.0
        %1847 = vmatpush.msra.mxu0 0.0
        %1848 = vmatpush.msra.mxu0 0.0
        %1849 = vmatpush.msra.mxu0 0.0
        %1850 = vmatpush.msra.mxu0 0.0
        %1851 = vmatpush.msra.mxu0 0.0
        %1852 = vmatpush.msra.mxu0 0.0
        %1853 = vmatpush.msra.mxu0 %v1836
        %1854 = vmatmul.f32.gmra.mxu0 %v1773
        %v1855 = vpop.f32.mrf.mxu0
        %v1856 = vadd.f32 0.0, %v1855
        %1857 = vmatmul.f32.gmra.mxu0 %v1776
        %v1858 = vpop.f32.mrf.mxu0
        %v1859 = vadd.f32 0.0, %v1858
        %1860 = vmatmul.f32.gmra.mxu0 %v1779
        %v1861 = vpop.f32.mrf.mxu0
        %v1862 = vadd.f32 0.0, %v1861
        %1863 = vmatmul.f32.gmra.mxu0 %v1782
        %v1864 = vpop.f32.mrf.mxu0
        %v1865 = vadd.f32 0.0, %v1864
        %1866 = vmatmul.f32.gmra.mxu0 %v1785
        %v1867 = vpop.f32.mrf.mxu0
        %v1868 = vadd.f32 0.0, %v1867
        %1869 = vmatmul.f32.gmra.mxu0 %v1788
        %v1870 = vpop.f32.mrf.mxu0
        %v1871 = vadd.f32 0.0, %v1870
        %1872 = vmatmul.f32.gmra.mxu0 %v1791
        %v1873 = vpop.f32.mrf.mxu0
        %v1874 = vadd.f32 0.0, %v1873
        %1875 = vmatmul.f32.gmra.mxu0 %v1794
        %v1876 = vpop.f32.mrf.mxu0
        %v1877 = vadd.f32 0.0, %v1876
        %1878 = vmatmul.f32.gmra.mxu0 %v1797
        %v1879 = vpop.f32.mrf.mxu0
        %v1880 = vadd.f32 0.0, %v1879
        %1881 = vmatmul.f32.gmra.mxu0 %v1800
        %v1882 = vpop.f32.mrf.mxu0
        %v1883 = vadd.f32 0.0, %v1882
        %1884 = vmatmul.f32.gmra.mxu0 %v1803
        %v1885 = vpop.f32.mrf.mxu0
        %v1886 = vadd.f32 0.0, %v1885
        %1887 = vmatmul.f32.gmra.mxu0 %v1806
        %v1888 = vpop.f32.mrf.mxu0
        %v1889 = vadd.f32 0.0, %v1888
        %1890 = vmatmul.f32.gmra.mxu0 %v1809
        %v1891 = vpop.f32.mrf.mxu0
        %v1892 = vadd.f32 0.0, %v1891
        %1893 = vmatmul.f32.gmra.mxu0 %v1812
        %v1894 = vpop.f32.mrf.mxu0
        %v1895 = vadd.f32 0.0, %v1894
        %1896 = vmatmul.f32.gmra.mxu0 %v1815
        %v1897 = vpop.f32.mrf.mxu0
        %v1898 = vadd.f32 0.0, %v1897
        %1899 = vmatmul.f32.gmra.mxu0 %v1818
        %v1900 = vpop.f32.mrf.mxu0
        %v1901 = vadd.f32 0.0, %v1900
        %1902 = vmatmul.f32.gmra.mxu0 %v1821
        %v1903 = vpop.f32.mrf.mxu0
        %v1904 = vadd.f32 0.0, %v1903
        %1905 = vmatmul.f32.gmra.mxu0 %v1824
        %v1906 = vpop.f32.mrf.mxu0
        %v1907 = vadd.f32 0.0, %v1906
        %1908 = vmatmul.f32.gmra.mxu0 %v1827
        %v1909 = vpop.f32.mrf.mxu0
        %v1910 = vadd.f32 0.0, %v1909
        %1911 = vmatmul.f32.gmra.mxu0 %v1830
        %v1912 = vpop.f32.mrf.mxu0
        %v1913 = vadd.f32 0.0, %v1912
        %1914 = vmatmul.f32.gmra.mxu0 %v1833
        %v1915 = vpop.f32.mrf.mxu0
        %v1916 = vadd.f32 0.0, %v1915
        %1917 = vdwg.mxu0
        %v1918 = vadd.f32 %v1729, %v1856
        %v1919 = vadd.f32 %v1730, %v1859
        %v1920 = vadd.f32 %v1731, %v1862
        %v1921 = vadd.f32 %v1732, %v1865
        %v1922 = vadd.f32 %v1733, %v1868
        %v1923 = vadd.f32 %v1734, %v1871
        %v1924 = vadd.f32 %v1735, %v1874
        %v1925 = vadd.f32 %v1736, %v1877
        %v1926 = vadd.f32 %v1737, %v1880
        %v1927 = vadd.f32 %v1738, %v1883
        %v1928 = vadd.f32 %v1739, %v1886
        %v1929 = vadd.f32 %v1740, %v1889
        %v1930 = vadd.f32 %v1741, %v1892
        %v1931 = vadd.f32 %v1742, %v1895
        %v1932 = vadd.f32 %v1743, %v1898
        %v1933 = vadd.f32 %v1744, %v1901
        %v1934 = vadd.f32 %v1745, %v1904
        %v1935 = vadd.f32 %v1746, %v1907
        %v1936 = vadd.f32 %v1747, %v1910
        %v1937 = vadd.f32 %v1748, %v1913
        %v1938 = vadd.f32 %v1749, %v1916
        %v1939 = vld [vmem:[#allocation2 + $0x1e] sm:$0xff]
        %v1940 = vld [vmem:[#allocation2 + $0x26] sm:$0xff]
        %v1941 = vld [vmem:[#allocation2 + $0x2e] sm:$0xff]
        %v1942 = vld [vmem:[#allocation2 + $0x36] sm:$0xff]
        %v1943 = vld [vmem:[#allocation2 + $0x3e] sm:$0xff]
        %v1944 = vld [vmem:[#allocation2 + $0x46] sm:$0xff]
        %v1945 = vld [vmem:[#allocation2 + $0x4e] sm:$0xff]
        %v1946 = vld [vmem:[#allocation2 + $0x56] sm:$0xff]
        %v1947 = vld [vmem:[#allocation2 + $0x5e] sm:$0xff]
        %v1948 = vld [vmem:[#allocation2 + $0x66] sm:$0xff]
        %v1949 = vld [vmem:[#allocation2 + $0x6e] sm:$0xff]
        %v1950 = vld [vmem:[#allocation2 + $0x76] sm:$0xff]
        %v1951 = vld [vmem:[#allocation2 + $0x7e] sm:$0xff]
        %v1952 = vld [vmem:[#allocation2 + $0x86] sm:$0xff]
        %v1953 = vld [vmem:[#allocation2 + $0x8e] sm:$0xff]
        %v1954 = vld [vmem:[#allocation2 + $0x96] sm:$0xff]
        %v1955 = vld [vmem:[#allocation2 + $0x9e] sm:$0xff]
        %v1956 = vld [vmem:[#allocation2 + $0xa6] sm:$0xff]
        %v1957 = vld [vmem:[#allocation2 + $0xae] sm:$0xff]
        %v1958 = vld [vmem:[#allocation2 + $0xb6] sm:$0xff]
        %v1959 = vld [vmem:[#allocation2 + $0xbe] sm:$0x3f]
        %v1960 = vld [vmem:[%s1 + $0x28] sm:$0x1f]
        %v1962 = vsel %vm384, %v1939, 0
        %v1965 = vsel %vm384, %v1940, 0
        %v1968 = vsel %vm384, %v1941, 0
        %v1971 = vsel %vm384, %v1942, 0
        %v1974 = vsel %vm384, %v1943, 0
        %v1977 = vsel %vm384, %v1944, 0
        %v1980 = vsel %vm384, %v1945, 0
        %v1983 = vsel %vm384, %v1946, 0
        %v1986 = vsel %vm384, %v1947, 0
        %v1989 = vsel %vm384, %v1948, 0
        %v1992 = vsel %vm384, %v1949, 0
        %v1995 = vsel %vm384, %v1950, 0
        %v1998 = vsel %vm384, %v1951, 0
        %v2001 = vsel %vm384, %v1952, 0
        %v2004 = vsel %vm384, %v1953, 0
        %v2007 = vsel %vm384, %v1954, 0
        %v2010 = vsel %vm384, %v1955, 0
        %v2013 = vsel %vm384, %v1956, 0
        %v2016 = vsel %vm384, %v1957, 0
        %v2019 = vsel %vm384, %v1958, 0
        %v2022 = vsel %vm384, %v1959, 0
        %v2025 = vsel %vm575, %v1960, 0
        %2027 = vmatpush.msra.mxu0 0.0
        %2028 = vmatpush.msra.mxu0 0.0
        %2029 = vmatpush.msra.mxu0 0.0
        %2030 = vmatpush.msra.mxu0 0.0
        %2031 = vmatpush.msra.mxu0 0.0
        %2032 = vmatpush.msra.mxu0 0.0
        %2033 = vmatpush.msra.mxu0 0.0
        %2034 = vmatpush.msra.mxu0 0.0
        %2035 = vmatpush.msra.mxu0 0.0
        %2036 = vmatpush.msra.mxu0 0.0
        %2037 = vmatpush.msra.mxu0 0.0
        %2038 = vmatpush.msra.mxu0 0.0
        %2039 = vmatpush.msra.mxu0 0.0
        %2040 = vmatpush.msra.mxu0 0.0
        %2041 = vmatpush.msra.mxu0 0.0
        %2042 = vmatpush.msra.mxu0 %v2025
        %2043 = vmatmul.f32.gmra.mxu0 %v1962
        %v2044 = vpop.f32.mrf.mxu0
        %v2045 = vadd.f32 0.0, %v2044
        %2046 = vmatmul.f32.gmra.mxu0 %v1965
        %v2047 = vpop.f32.mrf.mxu0
        %v2048 = vadd.f32 0.0, %v2047
        %2049 = vmatmul.f32.gmra.mxu0 %v1968
        %v2050 = vpop.f32.mrf.mxu0
        %v2051 = vadd.f32 0.0, %v2050
        %2052 = vmatmul.f32.gmra.mxu0 %v1971
        %v2053 = vpop.f32.mrf.mxu0
        %v2054 = vadd.f32 0.0, %v2053
        %2055 = vmatmul.f32.gmra.mxu0 %v1974
        %v2056 = vpop.f32.mrf.mxu0
        %v2057 = vadd.f32 0.0, %v2056
        %2058 = vmatmul.f32.gmra.mxu0 %v1977
        %v2059 = vpop.f32.mrf.mxu0
        %v2060 = vadd.f32 0.0, %v2059
        %2061 = vmatmul.f32.gmra.mxu0 %v1980
        %v2062 = vpop.f32.mrf.mxu0
        %v2063 = vadd.f32 0.0, %v2062
        %2064 = vmatmul.f32.gmra.mxu0 %v1983
        %v2065 = vpop.f32.mrf.mxu0
        %v2066 = vadd.f32 0.0, %v2065
        %2067 = vmatmul.f32.gmra.mxu0 %v1986
        %v2068 = vpop.f32.mrf.mxu0
        %v2069 = vadd.f32 0.0, %v2068
        %2070 = vmatmul.f32.gmra.mxu0 %v1989
        %v2071 = vpop.f32.mrf.mxu0
        %v2072 = vadd.f32 0.0, %v2071
        %2073 = vmatmul.f32.gmra.mxu0 %v1992
        %v2074 = vpop.f32.mrf.mxu0
        %v2075 = vadd.f32 0.0, %v2074
        %2076 = vmatmul.f32.gmra.mxu0 %v1995
        %v2077 = vpop.f32.mrf.mxu0
        %v2078 = vadd.f32 0.0, %v2077
        %2079 = vmatmul.f32.gmra.mxu0 %v1998
        %v2080 = vpop.f32.mrf.mxu0
        %v2081 = vadd.f32 0.0, %v2080
        %2082 = vmatmul.f32.gmra.mxu0 %v2001
        %v2083 = vpop.f32.mrf.mxu0
        %v2084 = vadd.f32 0.0, %v2083
        %2085 = vmatmul.f32.gmra.mxu0 %v2004
        %v2086 = vpop.f32.mrf.mxu0
        %v2087 = vadd.f32 0.0, %v2086
        %2088 = vmatmul.f32.gmra.mxu0 %v2007
        %v2089 = vpop.f32.mrf.mxu0
        %v2090 = vadd.f32 0.0, %v2089
        %2091 = vmatmul.f32.gmra.mxu0 %v2010
        %v2092 = vpop.f32.mrf.mxu0
        %v2093 = vadd.f32 0.0, %v2092
        %2094 = vmatmul.f32.gmra.mxu0 %v2013
        %v2095 = vpop.f32.mrf.mxu0
        %v2096 = vadd.f32 0.0, %v2095
        %2097 = vmatmul.f32.gmra.mxu0 %v2016
        %v2098 = vpop.f32.mrf.mxu0
        %v2099 = vadd.f32 0.0, %v2098
        %2100 = vmatmul.f32.gmra.mxu0 %v2019
        %v2101 = vpop.f32.mrf.mxu0
        %v2102 = vadd.f32 0.0, %v2101
        %2103 = vmatmul.f32.gmra.mxu0 %v2022
        %v2104 = vpop.f32.mrf.mxu0
        %v2105 = vadd.f32 0.0, %v2104
        %2106 = vdwg.mxu0
        %v2107 = vadd.f32 %v1918, %v2045
        %v2108 = vadd.f32 %v1919, %v2048
        %v2109 = vadd.f32 %v1920, %v2051
        %v2110 = vadd.f32 %v1921, %v2054
        %v2111 = vadd.f32 %v1922, %v2057
        %v2112 = vadd.f32 %v1923, %v2060
        %v2113 = vadd.f32 %v1924, %v2063
        %v2114 = vadd.f32 %v1925, %v2066
        %v2115 = vadd.f32 %v1926, %v2069
        %v2116 = vadd.f32 %v1927, %v2072
        %v2117 = vadd.f32 %v1928, %v2075
        %v2118 = vadd.f32 %v1929, %v2078
        %v2119 = vadd.f32 %v1930, %v2081
        %v2120 = vadd.f32 %v1931, %v2084
        %v2121 = vadd.f32 %v1932, %v2087
        %v2122 = vadd.f32 %v1933, %v2090
        %v2123 = vadd.f32 %v1934, %v2093
        %v2124 = vadd.f32 %v1935, %v2096
        %v2125 = vadd.f32 %v1936, %v2099
        %v2126 = vadd.f32 %v1937, %v2102
        %v2127 = vadd.f32 %v1938, %v2105
        %v2128 = vld [vmem:[%s2] sm:$0x1]
        %v2130 = vperm.slane %v2128, 0
        %v2132 = vadd.f32 %v2107, %v2130
        %v2133 = vadd.f32 %v2108, %v2130
        %v2134 = vadd.f32 %v2109, %v2130
        %v2135 = vadd.f32 %v2110, %v2130
        %v2136 = vadd.f32 %v2111, %v2130
        %v2137 = vadd.f32 %v2112, %v2130
        %v2138 = vadd.f32 %v2113, %v2130
        %v2139 = vadd.f32 %v2114, %v2130
        %v2140 = vadd.f32 %v2115, %v2130
        %v2141 = vadd.f32 %v2116, %v2130
        %v2142 = vadd.f32 %v2117, %v2130
        %v2143 = vadd.f32 %v2118, %v2130
        %v2144 = vadd.f32 %v2119, %v2130
        %v2145 = vadd.f32 %v2120, %v2130
        %v2146 = vadd.f32 %v2121, %v2130
        %v2147 = vadd.f32 %v2122, %v2130
        %v2148 = vadd.f32 %v2123, %v2130
        %v2149 = vadd.f32 %v2124, %v2130
        %v2150 = vadd.f32 %v2125, %v2130
        %v2151 = vadd.f32 %v2126, %v2130
        %v2152 = vadd.f32 %v2127, %v2130
        %v2153 = vmax.f32 %v2132, 0.0
        %v2154 = vmax.f32 %v2133, 0.0
        %v2155 = vmax.f32 %v2134, 0.0
        %v2156 = vmax.f32 %v2135, 0.0
        %v2157 = vmax.f32 %v2136, 0.0
        %v2158 = vmax.f32 %v2137, 0.0
        %v2159 = vmax.f32 %v2138, 0.0
        %v2160 = vmax.f32 %v2139, 0.0
        %v2161 = vmax.f32 %v2140, 0.0
        %v2162 = vmax.f32 %v2141, 0.0
        %v2163 = vmax.f32 %v2142, 0.0
        %v2164 = vmax.f32 %v2143, 0.0
        %v2165 = vmax.f32 %v2144, 0.0
        %v2166 = vmax.f32 %v2145, 0.0
        %v2167 = vmax.f32 %v2146, 0.0
        %v2168 = vmax.f32 %v2147, 0.0
        %v2169 = vmax.f32 %v2148, 0.0
        %v2170 = vmax.f32 %v2149, 0.0
        %v2171 = vmax.f32 %v2150, 0.0
        %v2172 = vmax.f32 %v2151, 0.0
        %v2173 = vmax.f32 %v2152, 0.0
        %2174 = vst.msk [vmem:[#allocation3] sm:$0xff] %vm411, %v2153
        %2175 = vst.msk [vmem:[#allocation3 + $0x8] sm:$0xff] %vm411, %v2154
        %2176 = vst.msk [vmem:[#allocation3 + $0x10] sm:$0xff] %vm411, %v2155
        %2177 = vst.msk [vmem:[#allocation3 + $0x18] sm:$0xff] %vm411, %v2156
        %2178 = vst.msk [vmem:[#allocation3 + $0x20] sm:$0xff] %vm411, %v2157
        %2179 = vst.msk [vmem:[#allocation3 + $0x28] sm:$0xff] %vm411, %v2158
        %2180 = vst.msk [vmem:[#allocation3 + $0x30] sm:$0xff] %vm411, %v2159
        %2181 = vst.msk [vmem:[#allocation3 + $0x38] sm:$0xff] %vm411, %v2160
        %2182 = vst.msk [vmem:[#allocation3 + $0x40] sm:$0xff] %vm411, %v2161
        %2183 = vst.msk [vmem:[#allocation3 + $0x48] sm:$0xff] %vm411, %v2162
        %2184 = vst.msk [vmem:[#allocation3 + $0x50] sm:$0xff] %vm411, %v2163
        %2185 = vst.msk [vmem:[#allocation3 + $0x58] sm:$0xff] %vm411, %v2164
        %2186 = vst.msk [vmem:[#allocation3 + $0x60] sm:$0xff] %vm411, %v2165
        %2187 = vst.msk [vmem:[#allocation3 + $0x68] sm:$0xff] %vm411, %v2166
        %2188 = vst.msk [vmem:[#allocation3 + $0x70] sm:$0xff] %vm411, %v2167
        %2189 = vst.msk [vmem:[#allocation3 + $0x78] sm:$0xff] %vm411, %v2168
        %2190 = vst.msk [vmem:[#allocation3 + $0x80] sm:$0xff] %vm411, %v2169
        %2191 = vst.msk [vmem:[#allocation3 + $0x88] sm:$0xff] %vm411, %v2170
        %2192 = vst.msk [vmem:[#allocation3 + $0x90] sm:$0xff] %vm411, %v2171
        %2193 = vst.msk [vmem:[#allocation3 + $0x98] sm:$0xff] %vm411, %v2172
        %vm2194 = vcmask 128000
        %2195 = vst.msk [vmem:[#allocation3 + $0xa0] sm:$0x3f] %vm2194, %v2173
        %v2196 = vld [vmem:[#allocation3] sm:$0xff]
        %v2197 = vld [vmem:[#allocation3 + $0x8] sm:$0xf]
        %v2198 = vld [vmem:[#allocation3 + $0xe] sm:$0xff]
        %v2199 = vld [vmem:[#allocation3 + $0x16] sm:$0xf]
        %v2200 = vmax.f32 %v2196, %v2198
        %v2201 = vmax.f32 %v2197, %v2199
        %v2203 = vrot.slane %v2200, 1
        %v2205 = vmax.f32 %v2200, %v2203
        %vm2206 = vcmask 122880
        %2207 = vst.msk [vmem:[#allocation4 + $0x9] sm:$0x1] %vm2206, %v2205
        %vm2208 = vcmask 124930
        %2209 = vst.msk [vmem:[#allocation4 + $0x8] sm:$0x4] %vm2208, %v2205
        %vm2210 = vcmask 126980
        %2211 = vst.msk [vmem:[#allocation4 + $0x7] sm:$0x10] %vm2210, %v2205
        %vm2212 = vcmask 129030
        %2213 = vst.msk [vmem:[#allocation4 + $0x6] sm:$0x40] %vm2212, %v2205
        %v2215 = vrot.slane %v2201, 1
        %v2217 = vmax.f32 %v2201, %v2215
        %2218 = vst.msk [vmem:[#allocation4 + $0xd] sm:$0x1] %vm2206, %v2217
        %2219 = vst.msk [vmem:[#allocation4 + $0xc] sm:$0x4] %vm2208, %v2217
        %v2220 = vld [vmem:[#allocation3 + $0x1c] sm:$0xff]
        %v2221 = vld [vmem:[#allocation3 + $0x24] sm:$0xf]
        %v2222 = vld [vmem:[#allocation3 + $0x2a] sm:$0xff]
        %v2223 = vld [vmem:[#allocation3 + $0x32] sm:$0xf]
        %v2224 = vmax.f32 %v2220, %v2222
        %v2225 = vmax.f32 %v2221, %v2223
        %v2227 = vrot.slane %v2224, 1
        %v2229 = vmax.f32 %v2224, %v2227
        %2230 = vst.msk [vmem:[#allocation4 + $0x11] sm:$0x1] %vm2206, %v2229
        %2231 = vst.msk [vmem:[#allocation4 + $0x10] sm:$0x4] %vm2208, %v2229
        %2232 = vst.msk [vmem:[#allocation4 + $0xf] sm:$0x10] %vm2210, %v2229
        %2233 = vst.msk [vmem:[#allocation4 + $0xe] sm:$0x40] %vm2212, %v2229
        %v2235 = vrot.slane %v2225, 1
        %v2237 = vmax.f32 %v2225, %v2235
        %2238 = vst.msk [vmem:[#allocation4 + $0x15] sm:$0x1] %vm2206, %v2237
        %2239 = vst.msk [vmem:[#allocation4 + $0x14] sm:$0x4] %vm2208, %v2237
        %v2240 = vld [vmem:[#allocation3 + $0x38] sm:$0xff]
        %v2241 = vld [vmem:[#allocation3 + $0x40] sm:$0xf]
        %v2242 = vld [vmem:[#allocation3 + $0x46] sm:$0xff]
        %v2243 = vld [vmem:[#allocation3 + $0x4e] sm:$0xf]
        %v2244 = vmax.f32 %v2240, %v2242
        %v2245 = vmax.f32 %v2241, %v2243
        %v2247 = vrot.slane %v2244, 1
        %v2249 = vmax.f32 %v2244, %v2247
        %2250 = vst.msk [vmem:[#allocation4 + $0x19] sm:$0x1] %vm2206, %v2249
        %2251 = vst.msk [vmem:[#allocation4 + $0x18] sm:$0x4] %vm2208, %v2249
        %2252 = vst.msk [vmem:[#allocation4 + $0x17] sm:$0x10] %vm2210, %v2249
        %2253 = vst.msk [vmem:[#allocation4 + $0x16] sm:$0x40] %vm2212, %v2249
        %v2255 = vrot.slane %v2245, 1
        %v2257 = vmax.f32 %v2245, %v2255
        %2258 = vst.msk [vmem:[#allocation4 + $0x1d] sm:$0x1] %vm2206, %v2257
        %2259 = vst.msk [vmem:[#allocation4 + $0x1c] sm:$0x4] %vm2208, %v2257
        %v2260 = vld [vmem:[#allocation3 + $0x54] sm:$0xff]
        %v2261 = vld [vmem:[#allocation3 + $0x5c] sm:$0xf]
        %v2262 = vld [vmem:[#allocation3 + $0x62] sm:$0xff]
        %v2263 = vld [vmem:[#allocation3 + $0x6a] sm:$0xf]
        %v2264 = vmax.f32 %v2260, %v2262
        %v2265 = vmax.f32 %v2261, %v2263
        %v2267 = vrot.slane %v2264, 1
        %v2269 = vmax.f32 %v2264, %v2267
        %2270 = vst.msk [vmem:[#allocation4 + $0x21] sm:$0x1] %vm2206, %v2269
        %2271 = vst.msk [vmem:[#allocation4 + $0x20] sm:$0x4] %vm2208, %v2269
        %2272 = vst.msk [vmem:[#allocation4 + $0x1f] sm:$0x10] %vm2210, %v2269
        %2273 = vst.msk [vmem:[#allocation4 + $0x1e] sm:$0x40] %vm2212, %v2269
        %v2275 = vrot.slane %v2265, 1
        %v2277 = vmax.f32 %v2265, %v2275
        %2278 = vst.msk [vmem:[#allocation4 + $0x25] sm:$0x1] %vm2206, %v2277
        %2279 = vst.msk [vmem:[#allocation4 + $0x24] sm:$0x4] %vm2208, %v2277
        %v2280 = vld [vmem:[#allocation3 + $0x70] sm:$0xff]
        %v2281 = vld [vmem:[#allocation3 + $0x78] sm:$0xf]
        %v2282 = vld [vmem:[#allocation3 + $0x7e] sm:$0xff]
        %v2283 = vld [vmem:[#allocation3 + $0x86] sm:$0xf]
        %v2284 = vmax.f32 %v2280, %v2282
        %v2285 = vmax.f32 %v2281, %v2283
        %v2287 = vrot.slane %v2284, 1
        %v2289 = vmax.f32 %v2284, %v2287
        %2290 = vst.msk [vmem:[#allocation4 + $0x29] sm:$0x1] %vm2206, %v2289
        %2291 = vst.msk [vmem:[#allocation4 + $0x28] sm:$0x4] %vm2208, %v2289
        %2292 = vst.msk [vmem:[#allocation4 + $0x27] sm:$0x10] %vm2210, %v2289
        %2293 = vst.msk [vmem:[#allocation4 + $0x26] sm:$0x40] %vm2212, %v2289
        %v2295 = vrot.slane %v2285, 1
        %v2297 = vmax.f32 %v2285, %v2295
        %2298 = vst.msk [vmem:[#allocation4 + $0x2d] sm:$0x1] %vm2206, %v2297
        %2299 = vst.msk [vmem:[#allocation4 + $0x2c] sm:$0x4] %vm2208, %v2297
        %v2300 = vld [vmem:[#allocation3 + $0x8c] sm:$0xff]
        %v2301 = vld [vmem:[#allocation3 + $0x94] sm:$0xf]
        %v2302 = vld [vmem:[#allocation3 + $0x9a] sm:$0xff]
        %v2303 = vld [vmem:[#allocation3 + $0xa2] sm:$0xf]
        %v2304 = vmax.f32 %v2300, %v2302
        %v2305 = vmax.f32 %v2301, %v2303
        %v2307 = vrot.slane %v2304, 1
        %v2309 = vmax.f32 %v2304, %v2307
        %2310 = vst.msk [vmem:[#allocation4 + $0x31] sm:$0x1] %vm2206, %v2309
        %2311 = vst.msk [vmem:[#allocation4 + $0x30] sm:$0x4] %vm2208, %v2309
        %2312 = vst.msk [vmem:[#allocation4 + $0x2f] sm:$0x10] %vm2210, %v2309
        %2313 = vst.msk [vmem:[#allocation4 + $0x2e] sm:$0x40] %vm2212, %v2309
        %v2315 = vrot.slane %v2305, 1
        %v2317 = vmax.f32 %v2305, %v2315
        %2318 = vst.msk [vmem:[#allocation4 + $0x35] sm:$0x1] %vm2206, %v2317
        %2319 = vst.msk [vmem:[#allocation4 + $0x34] sm:$0x4] %vm2208, %v2317
        %v2320 = vld [vmem:[#allocation4] sm:$0xff]
        %v2321 = vld [vmem:[#allocation4 + $0x8] sm:$0xff]
        %v2322 = vld [vmem:[#allocation4 + $0x10] sm:$0xff]
        %v2323 = vld [vmem:[#allocation4 + $0x18] sm:$0xff]
        %v2324 = vld [vmem:[#allocation4 + $0x20] sm:$0xff]
        %v2325 = vld [vmem:[#allocation4 + $0x28] sm:$0x3f]
        %v2326 = vld [vmem:[%s3] sm:$0xff]
        %v2327 = vld [vmem:[%s3 + $0x8] sm:$0xff]
        %v2328 = vld [vmem:[#allocation4 + $0x1] sm:$0xff]
        %v2329 = vld [vmem:[#allocation4 + $0x9] sm:$0xff]
        %v2330 = vld [vmem:[#allocation4 + $0x11] sm:$0xff]
        %v2331 = vld [vmem:[#allocation4 + $0x19] sm:$0xff]
        %v2332 = vld [vmem:[#allocation4 + $0x21] sm:$0xff]
        %v2333 = vld [vmem:[#allocation4 + $0x29] sm:$0x3f]
        %v2334 = vld [vmem:[%s3 + $0x10] sm:$0xff]
        %v2335 = vld [vmem:[%s3 + $0x18] sm:$0xff]
        %v2337 = vsel %vm411, %v2328, 0
        %v2340 = vsel %vm411, %v2329, 0
        %v2343 = vsel %vm411, %v2330, 0
        %v2346 = vsel %vm411, %v2331, 0
        %v2349 = vsel %vm411, %v2332, 0
        %v2352 = vsel %vm411, %v2333, 0
        %2354 = vmatpush.msra.mxu0 0.0
        %2355 = vmatpush.msra.mxu0 0.0
        %2356 = vmatpush.msra.mxu0 0.0
        %2357 = vmatpush.msra.mxu0 0.0
        %2358 = vmatpush.msra.mxu0 0.0
        %2359 = vmatpush.msra.mxu0 0.0
        %2360 = vmatpush.msra.mxu0 0.0
        %2361 = vmatpush.msra.mxu0 0.0
        %2362 = vmatpush.msra.mxu0 0.0
        %2363 = vmatpush.msra.mxu0 0.0
        %2364 = vmatpush.msra.mxu0 0.0
        %2365 = vmatpush.msra.mxu0 0.0
        %2366 = vmatpush.msra.mxu0 0.0
        %2367 = vmatpush.msra.mxu0 0.0
        %2368 = vmatpush.msra.mxu0 %v2335
        %2369 = vmatpush.msra.mxu0 %v2334
        %2370 = vmatmul.f32.gmra.mxu0 %v2337
        %v2371 = vpop.f32.mrf.mxu0
        %v2372 = vadd.f32 0.0, %v2371
        %2373 = vmatmul.f32.gmra.mxu0 %v2340
        %v2374 = vpop.f32.mrf.mxu0
        %v2375 = vadd.f32 0.0, %v2374
        %2376 = vmatmul.f32.gmra.mxu0 %v2343
        %v2377 = vpop.f32.mrf.mxu0
        %v2378 = vadd.f32 0.0, %v2377
        %2379 = vmatmul.f32.gmra.mxu0 %v2346
        %v2380 = vpop.f32.mrf.mxu0
        %v2381 = vadd.f32 0.0, %v2380
        %2382 = vmatmul.f32.gmra.mxu0 %v2349
        %v2383 = vpop.f32.mrf.mxu0
        %v2384 = vadd.f32 0.0, %v2383
        %2385 = vmatmul.f32.gmra.mxu0 %v2352
        %v2386 = vpop.f32.mrf.mxu0
        %v2387 = vadd.f32 0.0, %v2386
        %2388 = vdwg.mxu0
        %v2390 = vsel %vm411, %v2320, 0
        %v2393 = vsel %vm411, %v2321, 0
        %v2396 = vsel %vm411, %v2322, 0
        %v2399 = vsel %vm411, %v2323, 0
        %v2402 = vsel %vm411, %v2324, 0
        %v2405 = vsel %vm411, %v2325, 0
        %2407 = vmatpush.msra.mxu0 0.0
        %2408 = vmatpush.msra.mxu0 0.0
        %2409 = vmatpush.msra.mxu0 0.0
        %2410 = vmatpush.msra.mxu0 0.0
        %2411 = vmatpush.msra.mxu0 0.0
        %2412 = vmatpush.msra.mxu0 0.0
        %2413 = vmatpush.msra.mxu0 0.0
        %2414 = vmatpush.msra.mxu0 0.0
        %2415 = vmatpush.msra.mxu0 0.0
        %2416 = vmatpush.msra.mxu0 0.0
        %2417 = vmatpush.msra.mxu0 0.0
        %2418 = vmatpush.msra.mxu0 0.0
        %2419 = vmatpush.msra.mxu0 0.0
        %2420 = vmatpush.msra.mxu0 0.0
        %2421 = vmatpush.msra.mxu0 %v2327
        %2422 = vmatpush.msra.mxu0 %v2326
        %2423 = vmatmul.f32.gmra.mxu0 %v2390
        %v2424 = vpop.f32.mrf.mxu0
        %v2425 = vadd.f32 %v2372, %v2424
        %2426 = vmatmul.f32.gmra.mxu0 %v2393
        %v2427 = vpop.f32.mrf.mxu0
        %v2428 = vadd.f32 %v2375, %v2427
        %2429 = vmatmul.f32.gmra.mxu0 %v2396
        %v2430 = vpop.f32.mrf.mxu0
        %v2431 = vadd.f32 %v2378, %v2430
        %2432 = vmatmul.f32.gmra.mxu0 %v2399
        %v2433 = vpop.f32.mrf.mxu0
        %v2434 = vadd.f32 %v2381, %v2433
        %2435 = vmatmul.f32.gmra.mxu0 %v2402
        %v2436 = vpop.f32.mrf.mxu0
        %v2437 = vadd.f32 %v2384, %v2436
        %2438 = vmatmul.f32.gmra.mxu0 %v2405
        %v2439 = vpop.f32.mrf.mxu0
        %v2440 = vadd.f32 %v2387, %v2439
        %2441 = vdwg.mxu0
        %v2442 = vld [vmem:[#allocation4 + $0x2] sm:$0xff]
        %v2443 = vld [vmem:[#allocation4 + $0xa] sm:$0xff]
        %v2444 = vld [vmem:[#allocation4 + $0x12] sm:$0xff]
        %v2445 = vld [vmem:[#allocation4 + $0x1a] sm:$0xff]
        %v2446 = vld [vmem:[#allocation4 + $0x22] sm:$0xff]
        %v2447 = vld [vmem:[#allocation4 + $0x2a] sm:$0x3f]
        %v2448 = vld [vmem:[%s3 + $0x20] sm:$0xff]
        %v2449 = vld [vmem:[%s3 + $0x28] sm:$0xff]
        %v2451 = vsel %vm411, %v2442, 0
        %v2454 = vsel %vm411, %v2443, 0
        %v2457 = vsel %vm411, %v2444, 0
        %v2460 = vsel %vm411, %v2445, 0
        %v2463 = vsel %vm411, %v2446, 0
        %v2466 = vsel %vm411, %v2447, 0
        %2468 = vmatpush.msra.mxu0 0.0
        %2469 = vmatpush.msra.mxu0 0.0
        %2470 = vmatpush.msra.mxu0 0.0
        %2471 = vmatpush.msra.mxu0 0.0
        %2472 = vmatpush.msra.mxu0 0.0
        %2473 = vmatpush.msra.mxu0 0.0
        %2474 = vmatpush.msra.mxu0 0.0
        %2475 = vmatpush.msra.mxu0 0.0
        %2476 = vmatpush.msra.mxu0 0.0
        %2477 = vmatpush.msra.mxu0 0.0
        %2478 = vmatpush.msra.mxu0 0.0
        %2479 = vmatpush.msra.mxu0 0.0
        %2480 = vmatpush.msra.mxu0 0.0
        %2481 = vmatpush.msra.mxu0 0.0
        %2482 = vmatpush.msra.mxu0 %v2449
        %2483 = vmatpush.msra.mxu0 %v2448
        %2484 = vmatmul.f32.gmra.mxu0 %v2451
        %v2485 = vpop.f32.mrf.mxu0
        %v2486 = vadd.f32 0.0, %v2485
        %2487 = vmatmul.f32.gmra.mxu0 %v2454
        %v2488 = vpop.f32.mrf.mxu0
        %v2489 = vadd.f32 0.0, %v2488
        %2490 = vmatmul.f32.gmra.mxu0 %v2457
        %v2491 = vpop.f32.mrf.mxu0
        %v2492 = vadd.f32 0.0, %v2491
        %2493 = vmatmul.f32.gmra.mxu0 %v2460
        %v2494 = vpop.f32.mrf.mxu0
        %v2495 = vadd.f32 0.0, %v2494
        %2496 = vmatmul.f32.gmra.mxu0 %v2463
        %v2497 = vpop.f32.mrf.mxu0
        %v2498 = vadd.f32 0.0, %v2497
        %2499 = vmatmul.f32.gmra.mxu0 %v2466
        %v2500 = vpop.f32.mrf.mxu0
        %v2501 = vadd.f32 0.0, %v2500
        %2502 = vdwg.mxu0
        %v2503 = vadd.f32 %v2425, %v2486
        %v2504 = vadd.f32 %v2428, %v2489
        %v2505 = vadd.f32 %v2431, %v2492
        %v2506 = vadd.f32 %v2434, %v2495
        %v2507 = vadd.f32 %v2437, %v2498
        %v2508 = vadd.f32 %v2440, %v2501
        %v2509 = vld [vmem:[#allocation4 + $0x8] sm:$0xff]
        %v2510 = vld [vmem:[#allocation4 + $0x10] sm:$0xff]
        %v2511 = vld [vmem:[#allocation4 + $0x18] sm:$0xff]
        %v2512 = vld [vmem:[#allocation4 + $0x20] sm:$0xff]
        %v2513 = vld [vmem:[#allocation4 + $0x28] sm:$0xff]
        %v2514 = vld [vmem:[#allocation4 + $0x30] sm:$0x3f]
        %v2515 = vld [vmem:[%s3 + $0x30] sm:$0xff]
        %v2516 = vld [vmem:[%s3 + $0x38] sm:$0xff]
        %v2518 = vsel %vm411, %v2509, 0
        %v2521 = vsel %vm411, %v2510, 0
        %v2524 = vsel %vm411, %v2511, 0
        %v2527 = vsel %vm411, %v2512, 0
        %v2530 = vsel %vm411, %v2513, 0
        %v2533 = vsel %vm411, %v2514, 0
        %2535 = vmatpush.msra.mxu0 0.0
        %2536 = vmatpush.msra.mxu0 0.0
        %2537 = vmatpush.msra.mxu0 0.0
        %2538 = vmatpush.msra.mxu0 0.0
        %2539 = vmatpush.msra.mxu0 0.0
        %2540 = vmatpush.msra.mxu0 0.0
        %2541 = vmatpush.msra.mxu0 0.0
        %2542 = vmatpush.msra.mxu0 0.0
        %2543 = vmatpush.msra.mxu0 0.0
        %2544 = vmatpush.msra.mxu0 0.0
        %2545 = vmatpush.msra.mxu0 0.0
        %2546 = vmatpush.msra.mxu0 0.0
        %2547 = vmatpush.msra.mxu0 0.0
        %2548 = vmatpush.msra.mxu0 0.0
        %2549 = vmatpush.msra.mxu0 %v2516
        %2550 = vmatpush.msra.mxu0 %v2515
        %2551 = vmatmul.f32.gmra.mxu0 %v2518
        %v2552 = vpop.f32.mrf.mxu0
        %v2553 = vadd.f32 0.0, %v2552
        %2554 = vmatmul.f32.gmra.mxu0 %v2521
        %v2555 = vpop.f32.mrf.mxu0
        %v2556 = vadd.f32 0.0, %v2555
        %2557 = vmatmul.f32.gmra.mxu0 %v2524
        %v2558 = vpop.f32.mrf.mxu0
        %v2559 = vadd.f32 0.0, %v2558
        %2560 = vmatmul.f32.gmra.mxu0 %v2527
        %v2561 = vpop.f32.mrf.mxu0
        %v2562 = vadd.f32 0.0, %v2561
        %2563 = vmatmul.f32.gmra.mxu0 %v2530
        %v2564 = vpop.f32.mrf.mxu0
        %v2565 = vadd.f32 0.0, %v2564
        %2566 = vmatmul.f32.gmra.mxu0 %v2533
        %v2567 = vpop.f32.mrf.mxu0
        %v2568 = vadd.f32 0.0, %v2567
        %2569 = vdwg.mxu0
        %v2570 = vadd.f32 %v2503, %v2553
        %v2571 = vadd.f32 %v2504, %v2556
        %v2572 = vadd.f32 %v2505, %v2559
        %v2573 = vadd.f32 %v2506, %v2562
        %v2574 = vadd.f32 %v2507, %v2565
        %v2575 = vadd.f32 %v2508, %v2568
        %v2576 = vld [vmem:[#allocation4 + $0x9] sm:$0xff]
        %v2577 = vld [vmem:[#allocation4 + $0x11] sm:$0xff]
        %v2578 = vld [vmem:[#allocation4 + $0x19] sm:$0xff]
        %v2579 = vld [vmem:[#allocation4 + $0x21] sm:$0xff]
        %v2580 = vld [vmem:[#allocation4 + $0x29] sm:$0xff]
        %v2581 = vld [vmem:[#allocation4 + $0x31] sm:$0x3f]
        %v2582 = vld [vmem:[%s3 + $0x40] sm:$0xff]
        %v2583 = vld [vmem:[%s3 + $0x48] sm:$0xff]
        %v2585 = vsel %vm411, %v2576, 0
        %v2588 = vsel %vm411, %v2577, 0
        %v2591 = vsel %vm411, %v2578, 0
        %v2594 = vsel %vm411, %v2579, 0
        %v2597 = vsel %vm411, %v2580, 0
        %v2600 = vsel %vm411, %v2581, 0
        %2602 = vmatpush.msra.mxu0 0.0
        %2603 = vmatpush.msra.mxu0 0.0
        %2604 = vmatpush.msra.mxu0 0.0
        %2605 = vmatpush.msra.mxu0 0.0
        %2606 = vmatpush.msra.mxu0 0.0
        %2607 = vmatpush.msra.mxu0 0.0
        %2608 = vmatpush.msra.mxu0 0.0
        %2609 = vmatpush.msra.mxu0 0.0
        %2610 = vmatpush.msra.mxu0 0.0
        %2611 = vmatpush.msra.mxu0 0.0
        %2612 = vmatpush.msra.mxu0 0.0
        %2613 = vmatpush.msra.mxu0 0.0
        %2614 = vmatpush.msra.mxu0 0.0
        %2615 = vmatpush.msra.mxu0 0.0
        %2616 = vmatpush.msra.mxu0 %v2583
        %2617 = vmatpush.msra.mxu0 %v2582
        %2618 = vmatmul.f32.gmra.mxu0 %v2585
        %v2619 = vpop.f32.mrf.mxu0
        %v2620 = vadd.f32 0.0, %v2619
        %2621 = vmatmul.f32.gmra.mxu0 %v2588
        %v2622 = vpop.f32.mrf.mxu0
        %v2623 = vadd.f32 0.0, %v2622
        %2624 = vmatmul.f32.gmra.mxu0 %v2591
        %v2625 = vpop.f32.mrf.mxu0
        %v2626 = vadd.f32 0.0, %v2625
        %2627 = vmatmul.f32.gmra.mxu0 %v2594
        %v2628 = vpop.f32.mrf.mxu0
        %v2629 = vadd.f32 0.0, %v2628
        %2630 = vmatmul.f32.gmra.mxu0 %v2597
        %v2631 = vpop.f32.mrf.mxu0
        %v2632 = vadd.f32 0.0, %v2631
        %2633 = vmatmul.f32.gmra.mxu0 %v2600
        %v2634 = vpop.f32.mrf.mxu0
        %v2635 = vadd.f32 0.0, %v2634
        %2636 = vdwg.mxu0
        %v2637 = vadd.f32 %v2570, %v2620
        %v2638 = vadd.f32 %v2571, %v2623
        %v2639 = vadd.f32 %v2572, %v2626
        %v2640 = vadd.f32 %v2573, %v2629
        %v2641 = vadd.f32 %v2574, %v2632
        %v2642 = vadd.f32 %v2575, %v2635
        %v2643 = vld [vmem:[#allocation4 + $0xa] sm:$0xff]
        %v2644 = vld [vmem:[#allocation4 + $0x12] sm:$0xff]
        %v2645 = vld [vmem:[#allocation4 + $0x1a] sm:$0xff]
        %v2646 = vld [vmem:[#allocation4 + $0x22] sm:$0xff]
        %v2647 = vld [vmem:[#allocation4 + $0x2a] sm:$0xff]
        %v2648 = vld [vmem:[#allocation4 + $0x32] sm:$0x3f]
        %v2649 = vld [vmem:[%s3 + $0x50] sm:$0xff]
        %v2650 = vld [vmem:[%s3 + $0x58] sm:$0xff]
        %v2652 = vsel %vm411, %v2643, 0
        %v2655 = vsel %vm411, %v2644, 0
        %v2658 = vsel %vm411, %v2645, 0
        %v2661 = vsel %vm411, %v2646, 0
        %v2664 = vsel %vm411, %v2647, 0
        %v2667 = vsel %vm411, %v2648, 0
        %2669 = vmatpush.msra.mxu0 0.0
        %2670 = vmatpush.msra.mxu0 0.0
        %2671 = vmatpush.msra.mxu0 0.0
        %2672 = vmatpush.msra.mxu0 0.0
        %2673 = vmatpush.msra.mxu0 0.0
        %2674 = vmatpush.msra.mxu0 0.0
        %2675 = vmatpush.msra.mxu0 0.0
        %2676 = vmatpush.msra.mxu0 0.0
        %2677 = vmatpush.msra.mxu0 0.0
        %2678 = vmatpush.msra.mxu0 0.0
        %2679 = vmatpush.msra.mxu0 0.0
        %2680 = vmatpush.msra.mxu0 0.0
        %2681 = vmatpush.msra.mxu0 0.0
        %2682 = vmatpush.msra.mxu0 0.0
        %2683 = vmatpush.msra.mxu0 %v2650
        %2684 = vmatpush.msra.mxu0 %v2649
        %2685 = vmatmul.f32.gmra.mxu0 %v2652
        %v2686 = vpop.f32.mrf.mxu0
        %v2687 = vadd.f32 0.0, %v2686
        %2688 = vmatmul.f32.gmra.mxu0 %v2655
        %v2689 = vpop.f32.mrf.mxu0
        %v2690 = vadd.f32 0.0, %v2689
        %2691 = vmatmul.f32.gmra.mxu0 %v2658
        %v2692 = vpop.f32.mrf.mxu0
        %v2693 = vadd.f32 0.0, %v2692
        %2694 = vmatmul.f32.gmra.mxu0 %v2661
        %v2695 = vpop.f32.mrf.mxu0
        %v2696 = vadd.f32 0.0, %v2695
        %2697 = vmatmul.f32.gmra.mxu0 %v2664
        %v2698 = vpop.f32.mrf.mxu0
        %v2699 = vadd.f32 0.0, %v2698
        %2700 = vmatmul.f32.gmra.mxu0 %v2667
        %v2701 = vpop.f32.mrf.mxu0
        %v2702 = vadd.f32 0.0, %v2701
        %2703 = vdwg.mxu0
        %v2704 = vadd.f32 %v2637, %v2687
        %v2705 = vadd.f32 %v2638, %v2690
        %v2706 = vadd.f32 %v2639, %v2693
        %v2707 = vadd.f32 %v2640, %v2696
        %v2708 = vadd.f32 %v2641, %v2699
        %v2709 = vadd.f32 %v2642, %v2702
        %v2710 = vld [vmem:[#allocation4 + $0x10] sm:$0xff]
        %v2711 = vld [vmem:[#allocation4 + $0x18] sm:$0xff]
        %v2712 = vld [vmem:[#allocation4 + $0x20] sm:$0xff]
        %v2713 = vld [vmem:[#allocation4 + $0x28] sm:$0xff]
        %v2714 = vld [vmem:[#allocation4 + $0x30] sm:$0xff]
        %v2715 = vld [vmem:[#allocation4 + $0x38] sm:$0x3f]
        %v2716 = vld [vmem:[%s3 + $0x60] sm:$0xff]
        %v2717 = vld [vmem:[%s3 + $0x68] sm:$0xff]
        %v2719 = vsel %vm411, %v2710, 0
        %v2722 = vsel %vm411, %v2711, 0
        %v2725 = vsel %vm411, %v2712, 0
        %v2728 = vsel %vm411, %v2713, 0
        %v2731 = vsel %vm411, %v2714, 0
        %v2734 = vsel %vm411, %v2715, 0
        %2736 = vmatpush.msra.mxu0 0.0
        %2737 = vmatpush.msra.mxu0 0.0
        %2738 = vmatpush.msra.mxu0 0.0
        %2739 = vmatpush.msra.mxu0 0.0
        %2740 = vmatpush.msra.mxu0 0.0
        %2741 = vmatpush.msra.mxu0 0.0
        %2742 = vmatpush.msra.mxu0 0.0
        %2743 = vmatpush.msra.mxu0 0.0
        %2744 = vmatpush.msra.mxu0 0.0
        %2745 = vmatpush.msra.mxu0 0.0
        %2746 = vmatpush.msra.mxu0 0.0
        %2747 = vmatpush.msra.mxu0 0.0
        %2748 = vmatpush.msra.mxu0 0.0
        %2749 = vmatpush.msra.mxu0 0.0
        %2750 = vmatpush.msra.mxu0 %v2717
        %2751 = vmatpush.msra.mxu0 %v2716
        %2752 = vmatmul.f32.gmra.mxu0 %v2719
        %v2753 = vpop.f32.mrf.mxu0
        %v2754 = vadd.f32 0.0, %v2753
        %2755 = vmatmul.f32.gmra.mxu0 %v2722
        %v2756 = vpop.f32.mrf.mxu0
        %v2757 = vadd.f32 0.0, %v2756
        %2758 = vmatmul.f32.gmra.mxu0 %v2725
        %v2759 = vpop.f32.mrf.mxu0
        %v2760 = vadd.f32 0.0, %v2759
        %2761 = vmatmul.f32.gmra.mxu0 %v2728
        %v2762 = vpop.f32.mrf.mxu0
        %v2763 = vadd.f32 0.0, %v2762
        %2764 = vmatmul.f32.gmra.mxu0 %v2731
        %v2765 = vpop.f32.mrf.mxu0
        %v2766 = vadd.f32 0.0, %v2765
        %2767 = vmatmul.f32.gmra.mxu0 %v2734
        %v2768 = vpop.f32.mrf.mxu0
        %v2769 = vadd.f32 0.0, %v2768
        %2770 = vdwg.mxu0
        %v2771 = vadd.f32 %v2704, %v2754
        %v2772 = vadd.f32 %v2705, %v2757
        %v2773 = vadd.f32 %v2706, %v2760
        %v2774 = vadd.f32 %v2707, %v2763
        %v2775 = vadd.f32 %v2708, %v2766
        %v2776 = vadd.f32 %v2709, %v2769
        %v2777 = vld [vmem:[#allocation4 + $0x11] sm:$0xff]
        %v2778 = vld [vmem:[#allocation4 + $0x19] sm:$0xff]
        %v2779 = vld [vmem:[#allocation4 + $0x21] sm:$0xff]
        %v2780 = vld [vmem:[#allocation4 + $0x29] sm:$0xff]
        %v2781 = vld [vmem:[#allocation4 + $0x31] sm:$0xff]
        %v2782 = vld [vmem:[#allocation4 + $0x39] sm:$0x3f]
        %v2783 = vld [vmem:[%s3 + $0x70] sm:$0xff]
        %v2784 = vld [vmem:[%s3 + $0x78] sm:$0xff]
        %v2786 = vsel %vm411, %v2777, 0
        %v2789 = vsel %vm411, %v2778, 0
        %v2792 = vsel %vm411, %v2779, 0
        %v2795 = vsel %vm411, %v2780, 0
        %v2798 = vsel %vm411, %v2781, 0
        %v2801 = vsel %vm411, %v2782, 0
        %2803 = vmatpush.msra.mxu0 0.0
        %2804 = vmatpush.msra.mxu0 0.0
        %2805 = vmatpush.msra.mxu0 0.0
        %2806 = vmatpush.msra.mxu0 0.0
        %2807 = vmatpush.msra.mxu0 0.0
        %2808 = vmatpush.msra.mxu0 0.0
        %2809 = vmatpush.msra.mxu0 0.0
        %2810 = vmatpush.msra.mxu0 0.0
        %2811 = vmatpush.msra.mxu0 0.0
        %2812 = vmatpush.msra.mxu0 0.0
        %2813 = vmatpush.msra.mxu0 0.0
        %2814 = vmatpush.msra.mxu0 0.0
        %2815 = vmatpush.msra.mxu0 0.0
        %2816 = vmatpush.msra.mxu0 0.0
        %2817 = vmatpush.msra.mxu0 %v2784
        %2818 = vmatpush.msra.mxu0 %v2783
        %2819 = vmatmul.f32.gmra.mxu0 %v2786
        %v2820 = vpop.f32.mrf.mxu0
        %v2821 = vadd.f32 0.0, %v2820
        %2822 = vmatmul.f32.gmra.mxu0 %v2789
        %v2823 = vpop.f32.mrf.mxu0
        %v2824 = vadd.f32 0.0, %v2823
        %2825 = vmatmul.f32.gmra.mxu0 %v2792
        %v2826 = vpop.f32.mrf.mxu0
        %v2827 = vadd.f32 0.0, %v2826
        %2828 = vmatmul.f32.gmra.mxu0 %v2795
        %v2829 = vpop.f32.mrf.mxu0
        %v2830 = vadd.f32 0.0, %v2829
        %2831 = vmatmul.f32.gmra.mxu0 %v2798
        %v2832 = vpop.f32.mrf.mxu0
        %v2833 = vadd.f32 0.0, %v2832
        %2834 = vmatmul.f32.gmra.mxu0 %v2801
        %v2835 = vpop.f32.mrf.mxu0
        %v2836 = vadd.f32 0.0, %v2835
        %2837 = vdwg.mxu0
        %v2838 = vadd.f32 %v2771, %v2821
        %v2839 = vadd.f32 %v2772, %v2824
        %v2840 = vadd.f32 %v2773, %v2827
        %v2841 = vadd.f32 %v2774, %v2830
        %v2842 = vadd.f32 %v2775, %v2833
        %v2843 = vadd.f32 %v2776, %v2836
        %v2844 = vld [vmem:[#allocation4 + $0x12] sm:$0xff]
        %v2845 = vld [vmem:[#allocation4 + $0x1a] sm:$0xff]
        %v2846 = vld [vmem:[#allocation4 + $0x22] sm:$0xff]
        %v2847 = vld [vmem:[#allocation4 + $0x2a] sm:$0xff]
        %v2848 = vld [vmem:[#allocation4 + $0x32] sm:$0xff]
        %v2849 = vld [vmem:[#allocation4 + $0x3a] sm:$0x3f]
        %v2850 = vld [vmem:[%s3 + $0x80] sm:$0xff]
        %v2851 = vld [vmem:[%s3 + $0x88] sm:$0xff]
        %v2853 = vsel %vm411, %v2844, 0
        %v2856 = vsel %vm411, %v2845, 0
        %v2859 = vsel %vm411, %v2846, 0
        %v2862 = vsel %vm411, %v2847, 0
        %v2865 = vsel %vm411, %v2848, 0
        %v2868 = vsel %vm411, %v2849, 0
        %2870 = vmatpush.msra.mxu0 0.0
        %2871 = vmatpush.msra.mxu0 0.0
        %2872 = vmatpush.msra.mxu0 0.0
        %2873 = vmatpush.msra.mxu0 0.0
        %2874 = vmatpush.msra.mxu0 0.0
        %2875 = vmatpush.msra.mxu0 0.0
        %2876 = vmatpush.msra.mxu0 0.0
        %2877 = vmatpush.msra.mxu0 0.0
        %2878 = vmatpush.msra.mxu0 0.0
        %2879 = vmatpush.msra.mxu0 0.0
        %2880 = vmatpush.msra.mxu0 0.0
        %2881 = vmatpush.msra.mxu0 0.0
        %2882 = vmatpush.msra.mxu0 0.0
        %2883 = vmatpush.msra.mxu0 0.0
        %2884 = vmatpush.msra.mxu0 %v2851
        %2885 = vmatpush.msra.mxu0 %v2850
        %2886 = vmatmul.f32.gmra.mxu0 %v2853
        %v2887 = vpop.f32.mrf.mxu0
        %v2888 = vadd.f32 0.0, %v2887
        %2889 = vmatmul.f32.gmra.mxu0 %v2856
        %v2890 = vpop.f32.mrf.mxu0
        %v2891 = vadd.f32 0.0, %v2890
        %2892 = vmatmul.f32.gmra.mxu0 %v2859
        %v2893 = vpop.f32.mrf.mxu0
        %v2894 = vadd.f32 0.0, %v2893
        %2895 = vmatmul.f32.gmra.mxu0 %v2862
        %v2896 = vpop.f32.mrf.mxu0
        %v2897 = vadd.f32 0.0, %v2896
        %2898 = vmatmul.f32.gmra.mxu0 %v2865
        %v2899 = vpop.f32.mrf.mxu0
        %v2900 = vadd.f32 0.0, %v2899
        %2901 = vmatmul.f32.gmra.mxu0 %v2868
        %v2902 = vpop.f32.mrf.mxu0
        %v2903 = vadd.f32 0.0, %v2902
        %2904 = vdwg.mxu0
        %v2905 = vadd.f32 %v2838, %v2888
        %v2906 = vadd.f32 %v2839, %v2891
        %v2907 = vadd.f32 %v2840, %v2894
        %v2908 = vadd.f32 %v2841, %v2897
        %v2909 = vadd.f32 %v2842, %v2900
        %v2910 = vadd.f32 %v2843, %v2903
        %v2911 = vld [vmem:[%s4] sm:$0x1]
        %v2913 = vperm.slane %v2911, 0
        %v2915 = vadd.f32 %v2905, %v2913
        %v2916 = vadd.f32 %v2906, %v2913
        %v2917 = vadd.f32 %v2907, %v2913
        %v2918 = vadd.f32 %v2908, %v2913
        %v2919 = vadd.f32 %v2909, %v2913
        %v2920 = vadd.f32 %v2910, %v2913
        %v2921 = vmax.f32 %v2915, 0.0
        %v2922 = vmax.f32 %v2916, 0.0
        %v2923 = vmax.f32 %v2917, 0.0
        %v2924 = vmax.f32 %v2918, 0.0
        %v2925 = vmax.f32 %v2919, 0.0
        %v2926 = vmax.f32 %v2920, 0.0
        %vm2927 = vcmask 261120
        %2928 = vst.msk [vmem:[#allocation5] sm:$0xff] %vm2927, %v2921
        %2929 = vst.msk [vmem:[#allocation5 + $0x8] sm:$0xff] %vm2927, %v2922
        %2930 = vst.msk [vmem:[#allocation5 + $0x10] sm:$0xff] %vm2927, %v2923
        %2931 = vst.msk [vmem:[#allocation5 + $0x18] sm:$0xff] %vm2927, %v2924
        %2932 = vst.msk [vmem:[#allocation5 + $0x20] sm:$0xff] %vm2927, %v2925
        %vm2933 = vcmask 259072
        %2934 = vst.msk [vmem:[#allocation5 + $0x28] sm:$0x3f] %vm2933, %v2926
        %v2935 = vld [vmem:[%s6] sm:$0x1]
        %v2936 = vld [vmem:[#allocation5] sm:$0x3f]
        %v2937 = vld [vmem:[#allocation5 + $0x8] sm:$0x3f]
        %v2938 = vmax.f32 %v2936, %v2937
        %v2940 = vrot.slane %v2938, 1
        %v2942 = vmax.f32 %v2938, %v2940
        %v2943 = vld [vmem:[%s5] sm:$0xff]
        %v2944 = vld [vmem:[%s5 + $0x8] sm:$0xff]
        %v2945 = vld [vmem:[%s5 + $0x10] sm:$0xff]
        %v2946 = vld [vmem:[%s5 + $0x18] sm:$0xff]
        %v2948 = vsel %vm2927, %v2942, 0
        %2950 = vmatpush.msra.mxu0 0.0
        %2951 = vmatpush.msra.mxu0 0.0
        %2952 = vmatpush.msra.mxu0 0.0
        %2953 = vmatpush.msra.mxu0 0.0
        %2954 = vmatpush.msra.mxu0 0.0
        %2955 = vmatpush.msra.mxu0 0.0
        %2956 = vmatpush.msra.mxu0 0.0
        %2957 = vmatpush.msra.mxu0 0.0
        %2958 = vmatpush.msra.mxu0 0.0
        %2959 = vmatpush.msra.mxu0 0.0
        %2960 = vmatpush.msra.mxu0 0.0
        %2961 = vmatpush.msra.mxu0 0.0
        %2962 = vmatpush.msra.mxu0 %v2946
        %2963 = vmatpush.msra.mxu0 %v2945
        %2964 = vmatpush.msra.mxu0 %v2944
        %2965 = vmatpush.msra.mxu0 %v2943
        %2966 = vmatmul.f32.gmra.mxu0 %v2948
        %v2967 = vpop.f32.mrf.mxu0
        %v2968 = vadd.f32 0.0, %v2967
        %2969 = vdwg.mxu0
        %v2970 = vadd.f32 %v2935, %v2968
        %v2971 = vld [vmem:[%s5 + $0x20] sm:$0xff]
        %v2972 = vld [vmem:[%s5 + $0x28] sm:$0xff]
        %v2973 = vld [vmem:[%s5 + $0x30] sm:$0xff]
        %v2974 = vld [vmem:[%s5 + $0x38] sm:$0xff]
        %v2975 = vrot.slane %v2942, 2
        %v2976 = vsel %vm2927, %v2975, 0
        %2978 = vmatpush.msra.mxu0 0.0
        %2979 = vmatpush.msra.mxu0 0.0
        %2980 = vmatpush.msra.mxu0 0.0
        %2981 = vmatpush.msra.mxu0 0.0
        %2982 = vmatpush.msra.mxu0 0.0
        %2983 = vmatpush.msra.mxu0 0.0
        %2984 = vmatpush.msra.mxu0 0.0
        %2985 = vmatpush.msra.mxu0 0.0
        %2986 = vmatpush.msra.mxu0 0.0
        %2987 = vmatpush.msra.mxu0 0.0
        %2988 = vmatpush.msra.mxu0 0.0
        %2989 = vmatpush.msra.mxu0 0.0
        %2990 = vmatpush.msra.mxu0 %v2974
        %2991 = vmatpush.msra.mxu0 %v2973
        %2992 = vmatpush.msra.mxu0 %v2972
        %2993 = vmatpush.msra.mxu0 %v2971
        %2994 = vmatmul.f32.gmra.mxu0 %v2976
        %v2995 = vpop.f32.mrf.mxu0
        %v2996 = vadd.f32 0.0, %v2995
        %2997 = vdwg.mxu0
        %v2998 = vadd.f32 %v2970, %v2996
        %v2999 = vld [vmem:[%s5 + $0x40] sm:$0xff]
        %v3000 = vld [vmem:[%s5 + $0x48] sm:$0xff]
        %v3001 = vld [vmem:[%s5 + $0x50] sm:$0xff]
        %v3002 = vld [vmem:[%s5 + $0x58] sm:$0xff]
        %v3003 = vrot.slane %v2942, 4
        %v3004 = vsel %vm2927, %v3003, 0
        %3006 = vmatpush.msra.mxu0 0.0
        %3007 = vmatpush.msra.mxu0 0.0
        %3008 = vmatpush.msra.mxu0 0.0
        %3009 = vmatpush.msra.mxu0 0.0
        %3010 = vmatpush.msra.mxu0 0.0
        %3011 = vmatpush.msra.mxu0 0.0
        %3012 = vmatpush.msra.mxu0 0.0
        %3013 = vmatpush.msra.mxu0 0.0
        %3014 = vmatpush.msra.mxu0 0.0
        %3015 = vmatpush.msra.mxu0 0.0
        %3016 = vmatpush.msra.mxu0 0.0
        %3017 = vmatpush.msra.mxu0 0.0
        %3018 = vmatpush.msra.mxu0 %v3002
        %3019 = vmatpush.msra.mxu0 %v3001
        %3020 = vmatpush.msra.mxu0 %v3000
        %3021 = vmatpush.msra.mxu0 %v2999
        %3022 = vmatmul.f32.gmra.mxu0 %v3004
        %v3023 = vpop.f32.mrf.mxu0
        %v3024 = vadd.f32 0.0, %v3023
        %3025 = vdwg.mxu0
        %v3026 = vadd.f32 %v2998, %v3024
        %v3027 = vld [vmem:[#allocation5 + $0x10] sm:$0x3f]
        %v3028 = vld [vmem:[#allocation5 + $0x18] sm:$0x3f]
        %v3029 = vmax.f32 %v3027, %v3028
        %v3031 = vrot.slane %v3029, 1
        %v3033 = vmax.f32 %v3029, %v3031
        %v3034 = vld [vmem:[%s5 + $0x60] sm:$0xff]
        %v3035 = vld [vmem:[%s5 + $0x68] sm:$0xff]
        %v3036 = vld [vmem:[%s5 + $0x70] sm:$0xff]
        %v3037 = vld [vmem:[%s5 + $0x78] sm:$0xff]
        %v3039 = vsel %vm2927, %v3033, 0
        %3041 = vmatpush.msra.mxu0 0.0
        %3042 = vmatpush.msra.mxu0 0.0
        %3043 = vmatpush.msra.mxu0 0.0
        %3044 = vmatpush.msra.mxu0 0.0
        %3045 = vmatpush.msra.mxu0 0.0
        %3046 = vmatpush.msra.mxu0 0.0
        %3047 = vmatpush.msra.mxu0 0.0
        %3048 = vmatpush.msra.mxu0 0.0
        %3049 = vmatpush.msra.mxu0 0.0
        %3050 = vmatpush.msra.mxu0 0.0
        %3051 = vmatpush.msra.mxu0 0.0
        %3052 = vmatpush.msra.mxu0 0.0
        %3053 = vmatpush.msra.mxu0 %v3037
        %3054 = vmatpush.msra.mxu0 %v3036
        %3055 = vmatpush.msra.mxu0 %v3035
        %3056 = vmatpush.msra.mxu0 %v3034
        %3057 = vmatmul.f32.gmra.mxu0 %v3039
        %v3058 = vpop.f32.mrf.mxu0
        %v3059 = vadd.f32 0.0, %v3058
        %3060 = vdwg.mxu0
        %v3061 = vadd.f32 %v3026, %v3059
        %v3062 = vld [vmem:[%s5 + $0x80] sm:$0xff]
        %v3063 = vld [vmem:[%s5 + $0x88] sm:$0xff]
        %v3064 = vld [vmem:[%s5 + $0x90] sm:$0xff]
        %v3065 = vld [vmem:[%s5 + $0x98] sm:$0xff]
        %v3066 = vrot.slane %v3033, 2
        %v3067 = vsel %vm2927, %v3066, 0
        %3069 = vmatpush.msra.mxu0 0.0
        %3070 = vmatpush.msra.mxu0 0.0
        %3071 = vmatpush.msra.mxu0 0.0
        %3072 = vmatpush.msra.mxu0 0.0
        %3073 = vmatpush.msra.mxu0 0.0
        %3074 = vmatpush.msra.mxu0 0.0
        %3075 = vmatpush.msra.mxu0 0.0
        %3076 = vmatpush.msra.mxu0 0.0
        %3077 = vmatpush.msra.mxu0 0.0
        %3078 = vmatpush.msra.mxu0 0.0
        %3079 = vmatpush.msra.mxu0 0.0
        %3080 = vmatpush.msra.mxu0 0.0
        %3081 = vmatpush.msra.mxu0 %v3065
        %3082 = vmatpush.msra.mxu0 %v3064
        %3083 = vmatpush.msra.mxu0 %v3063
        %3084 = vmatpush.msra.mxu0 %v3062
        %3085 = vmatmul.f32.gmra.mxu0 %v3067
        %v3086 = vpop.f32.mrf.mxu0
        %v3087 = vadd.f32 0.0, %v3086
        %3088 = vdwg.mxu0
        %v3089 = vadd.f32 %v3061, %v3087
        %v3090 = vld [vmem:[%s5 + $0xa0] sm:$0xff]
        %v3091 = vld [vmem:[%s5 + $0xa8] sm:$0xff]
        %v3092 = vld [vmem:[%s5 + $0xb0] sm:$0xff]
        %v3093 = vld [vmem:[%s5 + $0xb8] sm:$0xff]
        %v3094 = vrot.slane %v3033, 4
        %v3095 = vsel %vm2927, %v3094, 0
        %3097 = vmatpush.msra.mxu0 0.0
        %3098 = vmatpush.msra.mxu0 0.0
        %3099 = vmatpush.msra.mxu0 0.0
        %3100 = vmatpush.msra.mxu0 0.0
        %3101 = vmatpush.msra.mxu0 0.0
        %3102 = vmatpush.msra.mxu0 0.0
        %3103 = vmatpush.msra.mxu0 0.0
        %3104 = vmatpush.msra.mxu0 0.0
        %3105 = vmatpush.msra.mxu0 0.0
        %3106 = vmatpush.msra.mxu0 0.0
        %3107 = vmatpush.msra.mxu0 0.0
        %3108 = vmatpush.msra.mxu0 0.0
        %3109 = vmatpush.msra.mxu0 %v3093
        %3110 = vmatpush.msra.mxu0 %v3092
        %3111 = vmatpush.msra.mxu0 %v3091
        %3112 = vmatpush.msra.mxu0 %v3090
        %3113 = vmatmul.f32.gmra.mxu0 %v3095
        %v3114 = vpop.f32.mrf.mxu0
        %v3115 = vadd.f32 0.0, %v3114
        %3116 = vdwg.mxu0
        %v3117 = vadd.f32 %v3089, %v3115
        %v3118 = vld [vmem:[#allocation5 + $0x20] sm:$0x3f]
        %v3119 = vld [vmem:[#allocation5 + $0x28] sm:$0x3f]
        %v3120 = vmax.f32 %v3118, %v3119
        %v3122 = vrot.slane %v3120, 1
        %v3124 = vmax.f32 %v3120, %v3122
        %v3125 = vld [vmem:[%s5 + $0xc0] sm:$0xff]
        %v3126 = vld [vmem:[%s5 + $0xc8] sm:$0xff]
        %v3127 = vld [vmem:[%s5 + $0xd0] sm:$0xff]
        %v3128 = vld [vmem:[%s5 + $0xd8] sm:$0xff]
        %v3130 = vsel %vm2927, %v3124, 0
        %3132 = vmatpush.msra.mxu0 0.0
        %3133 = vmatpush.msra.mxu0 0.0
        %3134 = vmatpush.msra.mxu0 0.0
        %3135 = vmatpush.msra.mxu0 0.0
        %3136 = vmatpush.msra.mxu0 0.0
        %3137 = vmatpush.msra.mxu0 0.0
        %3138 = vmatpush.msra.mxu0 0.0
        %3139 = vmatpush.msra.mxu0 0.0
        %3140 = vmatpush.msra.mxu0 0.0
        %3141 = vmatpush.msra.mxu0 0.0
        %3142 = vmatpush.msra.mxu0 0.0
        %3143 = vmatpush.msra.mxu0 0.0
        %3144 = vmatpush.msra.mxu0 %v3128
        %3145 = vmatpush.msra.mxu0 %v3127
        %3146 = vmatpush.msra.mxu0 %v3126
        %3147 = vmatpush.msra.mxu0 %v3125
        %3148 = vmatmul.f32.gmra.mxu0 %v3130
        %v3149 = vpop.f32.mrf.mxu0
        %v3150 = vadd.f32 0.0, %v3149
        %3151 = vdwg.mxu0
        %v3152 = vadd.f32 %v3117, %v3150
        %v3153 = vld [vmem:[%s5 + $0xe0] sm:$0xff]
        %v3154 = vld [vmem:[%s5 + $0xe8] sm:$0xff]
        %v3155 = vld [vmem:[%s5 + $0xf0] sm:$0xff]
        %v3156 = vld [vmem:[%s5 + $0xf8] sm:$0xff]
        %v3157 = vrot.slane %v3124, 2
        %v3158 = vsel %vm2927, %v3157, 0
        %3160 = vmatpush.msra.mxu0 0.0
        %3161 = vmatpush.msra.mxu0 0.0
        %3162 = vmatpush.msra.mxu0 0.0
        %3163 = vmatpush.msra.mxu0 0.0
        %3164 = vmatpush.msra.mxu0 0.0
        %3165 = vmatpush.msra.mxu0 0.0
        %3166 = vmatpush.msra.mxu0 0.0
        %3167 = vmatpush.msra.mxu0 0.0
        %3168 = vmatpush.msra.mxu0 0.0
        %3169 = vmatpush.msra.mxu0 0.0
        %3170 = vmatpush.msra.mxu0 0.0
        %3171 = vmatpush.msra.mxu0 0.0
        %3172 = vmatpush.msra.mxu0 %v3156
        %3173 = vmatpush.msra.mxu0 %v3155
        %3174 = vmatpush.msra.mxu0 %v3154
        %3175 = vmatpush.msra.mxu0 %v3153
        %3176 = vmatmul.f32.gmra.mxu0 %v3158
        %v3177 = vpop.f32.mrf.mxu0
        %v3178 = vadd.f32 0.0, %v3177
        %3179 = vdwg.mxu0
        %v3180 = vadd.f32 %v3152, %v3178
        %v3181 = vld [vmem:[%s5 + $0x100] sm:$0xff]
        %v3182 = vld [vmem:[%s5 + $0x108] sm:$0xff]
        %v3183 = vld [vmem:[%s5 + $0x110] sm:$0xff]
        %v3184 = vld [vmem:[%s5 + $0x118] sm:$0xff]
        %v3185 = vrot.slane %v3124, 4
        %v3186 = vsel %vm2927, %v3185, 0
        %3188 = vmatpush.msra.mxu0 0.0
        %3189 = vmatpush.msra.mxu0 0.0
        %3190 = vmatpush.msra.mxu0 0.0
        %3191 = vmatpush.msra.mxu0 0.0
        %3192 = vmatpush.msra.mxu0 0.0
        %3193 = vmatpush.msra.mxu0 0.0
        %3194 = vmatpush.msra.mxu0 0.0
        %3195 = vmatpush.msra.mxu0 0.0
        %3196 = vmatpush.msra.mxu0 0.0
        %3197 = vmatpush.msra.mxu0 0.0
        %3198 = vmatpush.msra.mxu0 0.0
        %3199 = vmatpush.msra.mxu0 0.0
        %3200 = vmatpush.msra.mxu0 %v3184
        %3201 = vmatpush.msra.mxu0 %v3183
        %3202 = vmatpush.msra.mxu0 %v3182
        %3203 = vmatpush.msra.mxu0 %v3181
        %3204 = vmatmul.f32.gmra.mxu0 %v3186
        %v3205 = vpop.f32.mrf.mxu0
        %v3206 = vadd.f32 0.0, %v3205
        %3207 = vdwg.mxu0
        %v3208 = vadd.f32 %v3180, %v3206
        %v3209 = vmax.f32 %v3208, 0.0
        %v3210 = vld [vmem:[%s7] sm:$0xff]
        %v3211 = vld [vmem:[%s7 + $0x8] sm:$0xff]
        %v3212 = vld [vmem:[%s7 + $0x10] sm:$0xff]
        %v3213 = vld [vmem:[%s7 + $0x18] sm:$0xff]
        %v3214 = vld [vmem:[%s7 + $0x20] sm:$0xff]
        %v3215 = vld [vmem:[%s7 + $0x28] sm:$0xff]
        %v3216 = vld [vmem:[%s7 + $0x30] sm:$0xff]
        %v3217 = vld [vmem:[%s7 + $0x38] sm:$0xff]
        %v3218 = vld [vmem:[%s8] sm:$0x1]
        %vm3219 = vcmask 523264
        %v3221 = vsel %vm3219, %v3209, 0
        %3223 = vmatpush.msra.mxu0 0.0
        %3224 = vmatpush.msra.mxu0 0.0
        %3225 = vmatpush.msra.mxu0 0.0
        %3226 = vmatpush.msra.mxu0 0.0
        %3227 = vmatpush.msra.mxu0 0.0
        %3228 = vmatpush.msra.mxu0 0.0
        %3229 = vmatpush.msra.mxu0 0.0
        %3230 = vmatpush.msra.mxu0 0.0
        %3231 = vmatpush.msra.mxu0 %v3217
        %3232 = vmatpush.msra.mxu0 %v3216
        %3233 = vmatpush.msra.mxu0 %v3215
        %3234 = vmatpush.msra.mxu0 %v3214
        %3235 = vmatpush.msra.mxu0 %v3213
        %3236 = vmatpush.msra.mxu0 %v3212
        %3237 = vmatpush.msra.mxu0 %v3211
        %3238 = vmatpush.msra.mxu0 %v3210
        %3239 = vmatmul.f32.gmra.mxu0 %v3221
        %v3240 = vpop.f32.mrf.mxu0
        %v3241 = vadd.f32 %v3218, %v3240
        %3242 = vdwg.mxu0
        %v3243 = vmax.f32 %v3241, 0.0
        %v3244 = vld [vmem:[%s9] sm:$0xff]
        %v3245 = vld [vmem:[%s9 + $0x8] sm:$0xff]
        %v3246 = vld [vmem:[%s9 + $0x10] sm:$0xff]
        %v3247 = vld [vmem:[%s9 + $0x18] sm:$0xff]
        %v3248 = vld [vmem:[%s10] sm:$0x1]
        %v3250 = vsel %vm2927, %v3243, 0
        %3252 = vmatpush.msra.mxu0 0.0
        %3253 = vmatpush.msra.mxu0 0.0
        %3254 = vmatpush.msra.mxu0 0.0
        %3255 = vmatpush.msra.mxu0 0.0
        %3256 = vmatpush.msra.mxu0 0.0
        %3257 = vmatpush.msra.mxu0 0.0
        %3258 = vmatpush.msra.mxu0 0.0
        %3259 = vmatpush.msra.mxu0 0.0
        %3260 = vmatpush.msra.mxu0 0.0
        %3261 = vmatpush.msra.mxu0 0.0
        %3262 = vmatpush.msra.mxu0 0.0
        %3263 = vmatpush.msra.mxu0 0.0
        %3264 = vmatpush.msra.mxu0 %v3247
        %3265 = vmatpush.msra.mxu0 %v3246
        %3266 = vmatpush.msra.mxu0 %v3245
        %3267 = vmatpush.msra.mxu0 %v3244
        %3268 = vmatmul.f32.gmra.mxu0 %v3250
        %v3269 = vpop.f32.mrf.mxu0
        %v3270 = vadd.f32 %v3248, %v3269
        %3271 = vdwg.mxu0
        %vm3272 = vcmask 65536
        %3273 = vst.msk [vmem:[%s378] sm:$0x1] %vm3272, %v3270
        %s3274 = sand.u32 %s269, 1
        %s3275 = scalar_lea.sflag [#allocation7], %s3274
        %s3276 = sand.u32 %s269, 1
        %s3277 = scalar_lea.vmem [#allocation6], %s3276
        // Predicated region
        $region65: #{cnn_model_overfit_forward.1} parent=63 // pred_check
          %p3278 = pneg %p279
        $region66: #{cnn_model_overfit_forward.1} parent=63 // pred_check_branch
          %3280 = sbr.rel (%p3278) target = $region68
        $region67: #{cnn_model_overfit_forward.1} parent=63 // pred_region
          %3282 = vsyncadd %s3275, 0
          %s3283 = scalar_lea.hbm %s11, %s25
          %s3285 = sshll.u32 %s3277, 4
          %s3286 = int_to_ptr.vmem [resolvable:$true] %s3285
          %s3287 = sshll.u32 %s3283, 4
          %s3288 = int_to_ptr.hbm [resolvable:$true] %s3287
          %3290 = dma.vmem_to_hbm [thread:$0]  %s3286, 16, %s3288, %s3275
        $region68: #{cnn_model_overfit_forward.1} parent=63 // pred_fallthru
          _
      $region64: #{cnn_model_overfit_forward.1} parent=5 // pred_fallthru
        _
      %p3291 = scmp.le.s32.totalorder 2, %s20
      // Predicated region
      $region69: #{cnn_model_overfit_forward.1} parent=5 // pred_check
        %p3292 = pneg %p3291
      $region70: #{cnn_model_overfit_forward.1} parent=5 // pred_check_branch
        %3294 = sbr.rel (%p3292) target = $region72
      $region71: #{cnn_model_overfit_forward.1} parent=5 // pred_region
        %s3295 = ssub.s32 %s20, 2
        // Predicated region
        $region73: #{cnn_model_overfit_forward.1} parent=71 // pred_check
          %p3296 = pneg %p285
        $region74: #{cnn_model_overfit_forward.1} parent=71 // pred_check_branch
          %3298 = sbr.rel (%p3296) target = $region76
        $region75: #{cnn_model_overfit_forward.1} parent=71 // pred_region
          %s3299 = sand.u32 %s270, 1
          %s3300 = scalar_lea.sflag [#allocation7], %s3299
          %s3301 = sand.u32 %s270, 1
          %s3302 = scalar_lea.vmem [#allocation6], %s3301
          %3304 = dma.done %s3300, 16
        $region76: #{cnn_model_overfit_forward.1} parent=71 // pred_fallthru
          _
      $region72: #{cnn_model_overfit_forward.1} parent=5 // pred_fallthru
        _
    $region6: #{cnn_model_overfit_forward.1} parent=1 // loop_footer
      %s24 = sadd.s32 1, %s20
    $region7: #{cnn_model_overfit_forward.1} parent=1 // loop_footer_branch
      %19 = sbr.rel target = $region3
    $region8: #{cnn_model_overfit_forward.1} parent=1 // loop_exit
      _
    %3305 = vsyncpa [#allocation7], 1
    %s3306 = scalar_lea.sflag [#allocation7], 1
    %3307 = vsyncpa %s3306, 1

</llo_original>
